<compile_context>
chip_gen: v6e
topology: v6e:2x2x1
jax: 0.10.0
libtpu: 0.0.40
codegen_flags: <defaults>
</compile_context>

<pallas_src>
import functools
import numpy as np

import jax
import jax.numpy as jnp
from jax.experimental import pallas as pl
from jax.experimental.pallas import tpu as pltpu


# ----------------------------------------------------------------------------
# Fused Pallas kernel: conv1 -> conv2 -> conv3 -> dueling head
# ----------------------------------------------------------------------------

def _ddqn_fused_kernel(compute_dtype,
                       p1_ref, w1_ref, b1_ref,
                       sel2_ref, w2_ref, b2_ref,
                       sel3_ref, w3_ref, b3_ref,
                       wh1_ref, bh1_ref, wh2_ref, bh2_ref,
                       o_ref):
    def mm(a, b):
        return jnp.dot(a.astype(compute_dtype), b.astype(compute_dtype),
                       preferred_element_type=jnp.float32)

    # ---- conv1: single matmul on pre-extracted patches (rows = (b, oh1, ow1)) --
    h1 = jnp.maximum(mm(p1_ref[...], w1_ref[...]) + b1_ref[...], 0.0)   # (B*OH1*OW1, 32)

    # ---- conv2 (k=3, s=2): per-tap row gather (0/1 selection matmul) + acc ----
    n_t2 = w2_ref.shape[0]
    acc2 = mm(mm(sel2_ref[0], h1), w2_ref[0])
    for t in range(1, n_t2):
        acc2 = acc2 + mm(mm(sel2_ref[t], h1), w2_ref[t])
    h2 = jnp.maximum(acc2 + b2_ref[...], 0.0)                           # (B*OH2*OW2, 64)

    # ---- conv3 (k=2, s=1): same per-tap structure, all output positions at
    #      once; output rows are POSITION-major (pos*B + b). ----
    n_t3 = w3_ref.shape[0]
    acc3 = mm(mm(sel3_ref[0], h2), w3_ref[0])
    for t in range(1, n_t3):
        acc3 = acc3 + mm(mm(sel3_ref[t], h2), w3_ref[t])
    h3 = jnp.maximum(acc3 + b3_ref[...], 0.0)                           # (npos*B, 64)

    # ---- fused dueling FC1 (merged [adv | val] weights); the NCHW flatten is
    #      folded into wh1's row order, so each conv3 position feeds its own
    #      (64, 1024) weight slab -- no runtime transpose/reshape. ----
    npos = wh1_ref.shape[0]
    bsz = o_ref.shape[0]
    hid = mm(h3[0:bsz, :], wh1_ref[0])
    for p in range(1, npos):
        hid = hid + mm(h3[p * bsz:(p + 1) * bsz, :], wh1_ref[p])
    hidden = jnp.maximum(hid + bh1_ref[...], 0.0)                       # (B, 1024)

    # ---- fused dueling FC2 (block-diagonal weights) + combine ----
    out2 = mm(hidden, wh2_ref[...]) + bh2_ref[...]                      # (B, nactions + 1)
    nactions = o_ref.shape[1]
    adv = out2[:, :nactions]
    val = out2[:, nactions:nactions + 1]
    q = val + adv - jnp.mean(adv, axis=1, keepdims=True)
    o_ref[...] = q.astype(o_ref.dtype)


# ----------------------------------------------------------------------------
# Host-side helpers (run once / as cheap wrapper glue)
# ----------------------------------------------------------------------------

def _conv_out_dim(h, k, s):
    return (h - k) // s + 1


def im2col(x, k, s):
    """x: (N, H, W, C) -> patches (N*OH*OW, k*k*C), flatten order (kh, kw, cin)."""
    N, H, W, C = x.shape
    OH = (H - k) // s + 1
    OW = (W - k) // s + 1
    cols = []
    for kh in range(k):
        for kw in range(k):
            cols.append(x[:, kh:kh + s * OH:s, kw:kw + s * OW:s, :])
    patches = jnp.concatenate(cols, axis=-1)                  # (N, OH, OW, k*k*C)
    return patches.reshape(N * OH * OW, k * k * C), (N, OH, OW)


@functools.lru_cache(maxsize=None)
def _conv_selection_matrices(batch, oh1, ow1):
    """Constant 0/1 matrices that implement the conv2/conv3 strided spatial tap
    gathers as (tiny) matmuls inside the kernel."""
    oh2, ow2 = (oh1 - 3) // 2 + 1, (ow1 - 3) // 2 + 1     # conv2: k=3, s=2
    oh3, ow3 = oh2 - 1, ow2 - 1                           # conv3: k=2, s=1
    n1, n2, n3 = oh1 * ow1, oh2 * ow2, oh3 * ow3

    # conv2: per tap t=(kh,kw), sel2[t] maps h1 rows (b, i, j) -> rows (b, p, q).
    sel2 = np.zeros((9, batch * n2, batch * n1), np.float32)
    for kh in range(3):
        for kw in range(3):
            t = kh * 3 + kw
            for b in range(batch):
                for p in range(oh2):
                    for q in range(ow2):
                        sel2[t, b * n2 + p * ow2 + q,
                             b * n1 + (2 * p + kh) * ow1 + (2 * q + kw)] = 1.0

    # conv3: per tap, sel3[t] maps h2 rows (b, p, q) -> POSITION-major rows
    # (pos*B + b), so FC1 can consume contiguous per-position row blocks.
    sel3 = np.zeros((4, batch * n3, batch * n2), np.float32)
    for kh in range(2):
        for kw in range(2):
            t = kh * 2 + kw
            for p in range(oh3):
                for q in range(ow3):
                    pos = p * ow3 + q
                    for b in range(batch):
                        sel3[t, pos * batch + b,
                             b * n2 + (p + kh) * ow2 + (q + kw)] = 1.0
    return sel2, sel3


def build_fused_params(params, input_shape, nactions):
    """One-time weight repacking: HWIO->2D/3D conv mats, dueling-branch fusion,
    and folding the NCHW flatten into the FC1 row order."""
    C, H, W = input_shape
    h1, w1 = _conv_out_dim(H, 4, 2), _conv_out_dim(W, 4, 2)
    h2, w2 = _conv_out_dim(h1, 3, 2), _conv_out_dim(w1, 3, 2)
    h3, w3 = _conv_out_dim(h2, 2, 1), _conv_out_dim(w2, 2, 1)
    npos = h3 * w3
    c3 = params["conv3_w"].shape[-1]                # 64
    hidden = params["fca1_w"].shape[1]              # 512

    # FC1 rows are indexed by the torch NCHW flatten (c*npos + p).  Re-order to
    # (p, c) position-major so the conv output feeds the head with no transpose.
    perm = (np.arange(c3)[None, :] * npos + np.arange(npos)[:, None]).reshape(-1)
    wa1 = params["fca1_w"][perm]                    # (npos*c3, 512)
    wv1 = params["fcv1_w"][perm]
    wh1 = jnp.concatenate([wa1, wv1], axis=1).reshape(npos, c3, 2 * hidden)
    bh1 = jnp.concatenate([params["fca1_b"], params["fcv1_b"]]).reshape(1, -1)

    # Block-diagonal fused second layer: cols [0:nactions] = advantage, last = value.
    wh2 = jnp.zeros((2 * hidden, nactions + 1), jnp.float32)
    wh2 = wh2.at[:hidden, :nactions].set(params["fca2_w"])
    wh2 = wh2.at[hidden:, nactions:].set(params["fcv2_w"])
    bh2 = jnp.concatenate([params["fca2_b"], params["fcv2_b"]]).reshape(1, -1)

    k1 = params["conv1_w"].shape[0]
    cin = params["conv1_w"].shape[2]
    c1 = params["conv1_w"].shape[-1]
    c2in = params["conv2_w"].shape[2]
    return dict(
        w1=params["conv1_w"].reshape(k1 * k1 * cin, c1),
        b1=params["conv1_b"].reshape(1, -1),
        w2=params["conv2_w"].reshape(9, c2in, -1),
        b2=params["conv2_b"].reshape(1, -1),
        w3=params["conv3_w"].reshape(4, c3, -1),
        b3=params["conv3_b"].reshape(1, -1),
        wh1=wh1, bh1=bh1, wh2=wh2, bh2=bh2,
    )


def ddqn_forward(fused, x_nchw, compute_dtype=jnp.float32):
    """Pallas implementation of DDQN.forward (input NCHW, like PyTorch)."""
    B, C, H, W = x_nchw.shape
    x = jnp.transpose(x_nchw, (0, 2, 3, 1))                       # -> NHWC
    p1, (_, oh1, ow1) = im2col(x, 4, 2)                           # conv1 patches (tiny)
    sel2_np, sel3_np = _conv_selection_matrices(B, oh1, ow1)
    sel2 = jnp.asarray(sel2_np)
    sel3 = jnp.asarray(sel3_np)
    nactions = fused["wh2"].shape[1] - 1

    args = (p1, fused["w1"], fused["b1"],
            sel2, fused["w2"], fused["b2"],
            sel3, fused["w3"], fused["b3"],
            fused["wh1"], fused["bh1"], fused["wh2"], fused["bh2"])

    return pl.pallas_call(
        functools.partial(_ddqn_fused_kernel, compute_dtype),
        out_shape=jax.ShapeDtypeStruct((B, nactions), jnp.float32),
        in_specs=[pl.BlockSpec(memory_space=pltpu.MemorySpace.VMEM)] * len(args),
        out_specs=pl.BlockSpec(memory_space=pltpu.MemorySpace.VMEM),
    )(*args)


# ----------------------------------------------------------------------------
# Parameter init (torch-equivalent layouts) + pure-JAX reference
# ----------------------------------------------------------------------------

def init_params(key, input_shape, nactions):
    C, H, W = input_shape
    h1, w1 = _conv_out_dim(H, 4, 2), _conv_out_dim(W, 4, 2)
    h2, w2 = _conv_out_dim(h1, 3, 2), _conv_out_dim(w1, 3, 2)
    h3, w3 = _conv_out_dim(h2, 2, 1), _conv_out_dim(w2, 2, 1)
    conv_out_size = 64 * h3 * w3

    keys = jax.random.split(key, 14)

    def u(k_, shape, fan_in):
        bound = 1.0 / np.sqrt(fan_in)
        return jax.random.uniform(k_, shape, jnp.float32, -bound, bound)

    # Conv weights stored HWIO; FC weights stored (in, out) with `in` indexed by
    # the torch NCHW flatten.  (Real torch checkpoints would need OIHW->HWIO and
    # (out,in)->(in,out) permutes before build_fused_params.)
    params = dict(
        conv1_w=u(keys[0], (4, 4, C, 32), C * 4 * 4),
        conv1_b=u(keys[1], (32,), C * 4 * 4),
        conv2_w=u(keys[2], (3, 3, 32, 64), 32 * 3 * 3),
        conv2_b=u(keys[3], (64,), 32 * 3 * 3),
        conv3_w=u(keys[4], (2, 2, 64, 64), 64 * 2 * 2),
        conv3_b=u(keys[5], (64,), 64 * 2 * 2),
        fca1_w=u(keys[6], (conv_out_size, 512), conv_out_size),
        fca1_b=u(keys[7], (512,), conv_out_size),
        fca2_w=u(keys[8], (512, nactions), 512),
        fca2_b=u(keys[9], (nactions,), 512),
        fcv1_w=u(keys[10], (conv_out_size, 512), conv_out_size),
        fcv1_b=u(keys[11], (512,), conv_out_size),
        fcv2_w=u(keys[12], (512, 1), 512),
        fcv2_b=u(keys[13], (1,), 512),
    )
    return params, conv_out_size


def ddqn_reference(params, x_nchw):
    """Pure-JAX reference mirroring the PyTorch module (for correctness check).
    Uses HIGHEST precision so the f32 check against the kernel is meaningful."""
    prec = jax.lax.Precision.HIGHEST
    x = jnp.transpose(x_nchw, (0, 2, 3, 1))

    def conv(h, w, b, s):
        y = jax.lax.conv_general_dilated(
            h, w, (s, s), "VALID",
            dimension_numbers=("NHWC", "HWIO", "NHWC"), precision=prec)
        return jnp.maximum(y + b, 0.0)

    def fc(h, w, b):
        return jnp.dot(h, w, precision=prec) + b

    h = conv(x, params["conv1_w"], params["conv1_b"], 2)
    h = conv(h, params["conv2_w"], params["conv2_b"], 2)
    h = conv(h, params["conv3_w"], params["conv3_b"], 1)
    feat = jnp.transpose(h, (0, 3, 1, 2)).reshape(x_nchw.shape[0], -1)  # NCHW .view(B,-1)
    adv = fc(jnp.maximum(fc(feat, params["fca1_w"], params["fca1_b"]), 0.0),
             params["fca2_w"], params["fca2_b"])
    val = fc(jnp.maximum(fc(feat, params["fcv1_w"], params["fcv1_b"]), 0.0),
             params["fcv2_w"], params["fcv2_b"])
    return val + adv - adv.mean(axis=1, keepdims=True)


if __name__ == "__main__":
    batch = 2
    input_shape = (4, 16, 16)   # (C, H, W), PyTorch convention
    nactions = 6

    key = jax.random.PRNGKey(0)
    pkey, xkey = jax.random.split(key)
    params, conv_out_size = init_params(pkey, input_shape, nactions)
    fused = build_fused_params(params, input_shape, nactions)

    x = jax.random.normal(xkey, (batch, *input_shape), jnp.float32)  # NCHW

    fwd = jax.jit(ddqn_forward)
    q = jax.block_until_ready(fwd(fused, x))

    q_ref = jax.block_until_ready(ddqn_reference(params, x))
    assert q.shape == (batch, nactions)
    np.testing.assert_allclose(np.asarray(q), np.asarray(q_ref), rtol=5e-4, atol=5e-4)

    print("KERNEL_OK")
</pallas_src>

<mosaic_0001>
module attributes {stable_mosaic.version = 11 : i64} {
  func.func @_ddqn_fused_kernel(%arg0: memref<98x64xf32, #tpu.memory_space<vmem>>, %arg1: memref<64x32xf32, #tpu.memory_space<vmem>>, %arg2: memref<1x32xf32, #tpu.memory_space<vmem>>, %arg3: memref<9x18x98xf32, #tpu.memory_space<vmem>>, %arg4: memref<9x32x64xf32, #tpu.memory_space<vmem>>, %arg5: memref<1x64xf32, #tpu.memory_space<vmem>>, %arg6: memref<4x8x18xf32, #tpu.memory_space<vmem>>, %arg7: memref<4x64x64xf32, #tpu.memory_space<vmem>>, %arg8: memref<1x64xf32, #tpu.memory_space<vmem>>, %arg9: memref<4x64x1024xf32, #tpu.memory_space<vmem>>, %arg10: memref<1x1024xf32, #tpu.memory_space<vmem>>, %arg11: memref<1024x7xf32, #tpu.memory_space<vmem>>, %arg12: memref<1x7xf32, #tpu.memory_space<vmem>>, %arg13: memref<2x6xf32, #tpu.memory_space<vmem>>) attributes {dimension_semantics = [], scalar_prefetch = 0 : i64, scratch_operands = 0 : i64, tpu.core_type = #tpu.core_type<tc>} {
    %c0 = arith.constant 0 : index
    %c0_0 = arith.constant 0 : index
    %0 = vector.load %arg0[%c0, %c0_0] : memref<98x64xf32, #tpu.memory_space<vmem>>, vector<98x64xf32>
    %c0_1 = arith.constant 0 : index
    %c0_2 = arith.constant 0 : index
    %1 = vector.load %arg1[%c0_1, %c0_2] : memref<64x32xf32, #tpu.memory_space<vmem>>, vector<64x32xf32>
    %cst = arith.constant dense<0.000000e+00> : vector<98x32xf32>
    %2 = tpu.matmul %0, %1, %cst {dimension_numbers = #tpu.dot_dimension_numbers<[1], [0], [0], [1], [0, 0, 1, 1], [], []>} : vector<98x64xf32>, vector<64x32xf32>, vector<98x32xf32> -> vector<98x32xf32>
    %c0_3 = arith.constant 0 : index
    %c0_4 = arith.constant 0 : index
    %3 = vector.load %arg2[%c0_3, %c0_4] : memref<1x32xf32, #tpu.memory_space<vmem>>, vector<1x32xf32>
    %4 = vector.broadcast %3 : vector<1x32xf32> to vector<98x32xf32>
    %5 = arith.addf %2, %4 : vector<98x32xf32>
    %cst_5 = arith.constant 0.000000e+00 : f32
    %6 = vector.broadcast %cst_5 : f32 to vector<98x32xf32>
    %7 = arith.maximumf %5, %6 : vector<98x32xf32>
    %c0_6 = arith.constant 0 : index
    %c0_7 = arith.constant 0 : index
    %c0_8 = arith.constant 0 : index
    %8 = vector.load %arg3[%c0_6, %c0_7, %c0_8] : memref<9x18x98xf32, #tpu.memory_space<vmem>>, vector<1x18x98xf32>
    %9 = vector.shape_cast %8 : vector<1x18x98xf32> to vector<18x98xf32>
    %cst_9 = arith.constant dense<0.000000e+00> : vector<18x32xf32>
    %10 = tpu.matmul %9, %7, %cst_9 {dimension_numbers = #tpu.dot_dimension_numbers<[1], [0], [0], [1], [0, 0, 1, 1], [], []>} : vector<18x98xf32>, vector<98x32xf32>, vector<18x32xf32> -> vector<18x32xf32>
    %c0_10 = arith.constant 0 : index
    %c0_11 = arith.constant 0 : index
    %c0_12 = arith.constant 0 : index
    %11 = vector.load %arg4[%c0_10, %c0_11, %c0_12] : memref<9x32x64xf32, #tpu.memory_space<vmem>>, vector<1x32x64xf32>
    %12 = vector.shape_cast %11 : vector<1x32x64xf32> to vector<32x64xf32>
    %cst_13 = arith.constant dense<0.000000e+00> : vector<18x64xf32>
    %13 = tpu.matmul %10, %12, %cst_13 {dimension_numbers = #tpu.dot_dimension_numbers<[1], [0], [0], [1], [0, 0, 1, 1], [], []>} : vector<18x32xf32>, vector<32x64xf32>, vector<18x64xf32> -> vector<18x64xf32>
    %c1 = arith.constant 1 : index
    %c0_14 = arith.constant 0 : index
    %c0_15 = arith.constant 0 : index
    %14 = vector.load %arg3[%c1, %c0_14, %c0_15] : memref<9x18x98xf32, #tpu.memory_space<vmem>>, vector<1x18x98xf32>
    %15 = vector.shape_cast %14 : vector<1x18x98xf32> to vector<18x98xf32>
    %cst_16 = arith.constant dense<0.000000e+00> : vector<18x32xf32>
    %16 = tpu.matmul %15, %7, %cst_16 {dimension_numbers = #tpu.dot_dimension_numbers<[1], [0], [0], [1], [0, 0, 1, 1], [], []>} : vector<18x98xf32>, vector<98x32xf32>, vector<18x32xf32> -> vector<18x32xf32>
    %c1_17 = arith.constant 1 : index
    %c0_18 = arith.constant 0 : index
    %c0_19 = arith.constant 0 : index
    %17 = vector.load %arg4[%c1_17, %c0_18, %c0_19] : memref<9x32x64xf32, #tpu.memory_space<vmem>>, vector<1x32x64xf32>
    %18 = vector.shape_cast %17 : vector<1x32x64xf32> to vector<32x64xf32>
    %cst_20 = arith.constant dense<0.000000e+00> : vector<18x64xf32>
    %19 = tpu.matmul %16, %18, %cst_20 {dimension_numbers = #tpu.dot_dimension_numbers<[1], [0], [0], [1], [0, 0, 1, 1], [], []>} : vector<18x32xf32>, vector<32x64xf32>, vector<18x64xf32> -> vector<18x64xf32>
    %20 = arith.addf %13, %19 : vector<18x64xf32>
    %c2 = arith.constant 2 : index
    %c0_21 = arith.constant 0 : index
    %c0_22 = arith.constant 0 : index
    %21 = vector.load %arg3[%c2, %c0_21, %c0_22] : memref<9x18x98xf32, #tpu.memory_space<vmem>>, vector<1x18x98xf32>
    %22 = vector.shape_cast %21 : vector<1x18x98xf32> to vector<18x98xf32>
    %cst_23 = arith.constant dense<0.000000e+00> : vector<18x32xf32>
    %23 = tpu.matmul %22, %7, %cst_23 {dimension_numbers = #tpu.dot_dimension_numbers<[1], [0], [0], [1], [0, 0, 1, 1], [], []>} : vector<18x98xf32>, vector<98x32xf32>, vector<18x32xf32> -> vector<18x32xf32>
    %c2_24 = arith.constant 2 : index
    %c0_25 = arith.constant 0 : index
    %c0_26 = arith.constant 0 : index
    %24 = vector.load %arg4[%c2_24, %c0_25, %c0_26] : memref<9x32x64xf32, #tpu.memory_space<vmem>>, vector<1x32x64xf32>
    %25 = vector.shape_cast %24 : vector<1x32x64xf32> to vector<32x64xf32>
    %cst_27 = arith.constant dense<0.000000e+00> : vector<18x64xf32>
    %26 = tpu.matmul %23, %25, %cst_27 {dimension_numbers = #tpu.dot_dimension_numbers<[1], [0], [0], [1], [0, 0, 1, 1], [], []>} : vector<18x32xf32>, vector<32x64xf32>, vector<18x64xf32> -> vector<18x64xf32>
    %27 = arith.addf %20, %26 : vector<18x64xf32>
    %c3 = arith.constant 3 : index
    %c0_28 = arith.constant 0 : index
    %c0_29 = arith.constant 0 : index
    %28 = vector.load %arg3[%c3, %c0_28, %c0_29] : memref<9x18x98xf32, #tpu.memory_space<vmem>>, vector<1x18x98xf32>
    %29 = vector.shape_cast %28 : vector<1x18x98xf32> to vector<18x98xf32>
    %cst_30 = arith.constant dense<0.000000e+00> : vector<18x32xf32>
    %30 = tpu.matmul %29, %7, %cst_30 {dimension_numbers = #tpu.dot_dimension_numbers<[1], [0], [0], [1], [0, 0, 1, 1], [], []>} : vector<18x98xf32>, vector<98x32xf32>, vector<18x32xf32> -> vector<18x32xf32>
    %c3_31 = arith.constant 3 : index
    %c0_32 = arith.constant 0 : index
    %c0_33 = arith.constant 0 : index
    %31 = vector.load %arg4[%c3_31, %c0_32, %c0_33] : memref<9x32x64xf32, #tpu.memory_space<vmem>>, vector<1x32x64xf32>
    %32 = vector.shape_cast %31 : vector<1x32x64xf32> to vector<32x64xf32>
    %cst_34 = arith.constant dense<0.000000e+00> : vector<18x64xf32>
    %33 = tpu.matmul %30, %32, %cst_34 {dimension_numbers = #tpu.dot_dimension_numbers<[1], [0], [0], [1], [0, 0, 1, 1], [], []>} : vector<18x32xf32>, vector<32x64xf32>, vector<18x64xf32> -> vector<18x64xf32>
    %34 = arith.addf %27, %33 : vector<18x64xf32>
    %c4 = arith.constant 4 : index
    %c0_35 = arith.constant 0 : index
    %c0_36 = arith.constant 0 : index
    %35 = vector.load %arg3[%c4, %c0_35, %c0_36] : memref<9x18x98xf32, #tpu.memory_space<vmem>>, vector<1x18x98xf32>
    %36 = vector.shape_cast %35 : vector<1x18x98xf32> to vector<18x98xf32>
    %cst_37 = arith.constant dense<0.000000e+00> : vector<18x32xf32>
    %37 = tpu.matmul %36, %7, %cst_37 {dimension_numbers = #tpu.dot_dimension_numbers<[1], [0], [0], [1], [0, 0, 1, 1], [], []>} : vector<18x98xf32>, vector<98x32xf32>, vector<18x32xf32> -> vector<18x32xf32>
    %c4_38 = arith.constant 4 : index
    %c0_39 = arith.constant 0 : index
    %c0_40 = arith.constant 0 : index
    %38 = vector.load %arg4[%c4_38, %c0_39, %c0_40] : memref<9x32x64xf32, #tpu.memory_space<vmem>>, vector<1x32x64xf32>
    %39 = vector.shape_cast %38 : vector<1x32x64xf32> to vector<32x64xf32>
    %cst_41 = arith.constant dense<0.000000e+00> : vector<18x64xf32>
    %40 = tpu.matmul %37, %39, %cst_41 {dimension_numbers = #tpu.dot_dimension_numbers<[1], [0], [0], [1], [0, 0, 1, 1], [], []>} : vector<18x32xf32>, vector<32x64xf32>, vector<18x64xf32> -> vector<18x64xf32>
    %41 = arith.addf %34, %40 : vector<18x64xf32>
    %c5 = arith.constant 5 : index
    %c0_42 = arith.constant 0 : index
    %c0_43 = arith.constant 0 : index
    %42 = vector.load %arg3[%c5, %c0_42, %c0_43] : memref<9x18x98xf32, #tpu.memory_space<vmem>>, vector<1x18x98xf32>
    %43 = vector.shape_cast %42 : vector<1x18x98xf32> to vector<18x98xf32>
    %cst_44 = arith.constant dense<0.000000e+00> : vector<18x32xf32>
    %44 = tpu.matmul %43, %7, %cst_44 {dimension_numbers = #tpu.dot_dimension_numbers<[1], [0], [0], [1], [0, 0, 1, 1], [], []>} : vector<18x98xf32>, vector<98x32xf32>, vector<18x32xf32> -> vector<18x32xf32>
    %c5_45 = arith.constant 5 : index
    %c0_46 = arith.constant 0 : index
    %c0_47 = arith.constant 0 : index
    %45 = vector.load %arg4[%c5_45, %c0_46, %c0_47] : memref<9x32x64xf32, #tpu.memory_space<vmem>>, vector<1x32x64xf32>
    %46 = vector.shape_cast %45 : vector<1x32x64xf32> to vector<32x64xf32>
    %cst_48 = arith.constant dense<0.000000e+00> : vector<18x64xf32>
    %47 = tpu.matmul %44, %46, %cst_48 {dimension_numbers = #tpu.dot_dimension_numbers<[1], [0], [0], [1], [0, 0, 1, 1], [], []>} : vector<18x32xf32>, vector<32x64xf32>, vector<18x64xf32> -> vector<18x64xf32>
    %48 = arith.addf %41, %47 : vector<18x64xf32>
    %c6 = arith.constant 6 : index
    %c0_49 = arith.constant 0 : index
    %c0_50 = arith.constant 0 : index
    %49 = vector.load %arg3[%c6, %c0_49, %c0_50] : memref<9x18x98xf32, #tpu.memory_space<vmem>>, vector<1x18x98xf32>
    %50 = vector.shape_cast %49 : vector<1x18x98xf32> to vector<18x98xf32>
    %cst_51 = arith.constant dense<0.000000e+00> : vector<18x32xf32>
    %51 = tpu.matmul %50, %7, %cst_51 {dimension_numbers = #tpu.dot_dimension_numbers<[1], [0], [0], [1], [0, 0, 1, 1], [], []>} : vector<18x98xf32>, vector<98x32xf32>, vector<18x32xf32> -> vector<18x32xf32>
    %c6_52 = arith.constant 6 : index
    %c0_53 = arith.constant 0 : index
    %c0_54 = arith.constant 0 : index
    %52 = vector.load %arg4[%c6_52, %c0_53, %c0_54] : memref<9x32x64xf32, #tpu.memory_space<vmem>>, vector<1x32x64xf32>
    %53 = vector.shape_cast %52 : vector<1x32x64xf32> to vector<32x64xf32>
    %cst_55 = arith.constant dense<0.000000e+00> : vector<18x64xf32>
    %54 = tpu.matmul %51, %53, %cst_55 {dimension_numbers = #tpu.dot_dimension_numbers<[1], [0], [0], [1], [0, 0, 1, 1], [], []>} : vector<18x32xf32>, vector<32x64xf32>, vector<18x64xf32> -> vector<18x64xf32>
    %55 = arith.addf %48, %54 : vector<18x64xf32>
    %c7 = arith.constant 7 : index
    %c0_56 = arith.constant 0 : index
    %c0_57 = arith.constant 0 : index
    %56 = vector.load %arg3[%c7, %c0_56, %c0_57] : memref<9x18x98xf32, #tpu.memory_space<vmem>>, vector<1x18x98xf32>
    %57 = vector.shape_cast %56 : vector<1x18x98xf32> to vector<18x98xf32>
    %cst_58 = arith.constant dense<0.000000e+00> : vector<18x32xf32>
    %58 = tpu.matmul %57, %7, %cst_58 {dimension_numbers = #tpu.dot_dimension_numbers<[1], [0], [0], [1], [0, 0, 1, 1], [], []>} : vector<18x98xf32>, vector<98x32xf32>, vector<18x32xf32> -> vector<18x32xf32>
    %c7_59 = arith.constant 7 : index
    %c0_60 = arith.constant 0 : index
    %c0_61 = arith.constant 0 : index
    %59 = vector.load %arg4[%c7_59, %c0_60, %c0_61] : memref<9x32x64xf32, #tpu.memory_space<vmem>>, vector<1x32x64xf32>
    %60 = vector.shape_cast %59 : vector<1x32x64xf32> to vector<32x64xf32>
    %cst_62 = arith.constant dense<0.000000e+00> : vector<18x64xf32>
    %61 = tpu.matmul %58, %60, %cst_62 {dimension_numbers = #tpu.dot_dimension_numbers<[1], [0], [0], [1], [0, 0, 1, 1], [], []>} : vector<18x32xf32>, vector<32x64xf32>, vector<18x64xf32> -> vector<18x64xf32>
    %62 = arith.addf %55, %61 : vector<18x64xf32>
    %c8 = arith.constant 8 : index
    %c0_63 = arith.constant 0 : index
    %c0_64 = arith.constant 0 : index
    %63 = vector.load %arg3[%c8, %c0_63, %c0_64] : memref<9x18x98xf32, #tpu.memory_space<vmem>>, vector<1x18x98xf32>
    %64 = vector.shape_cast %63 : vector<1x18x98xf32> to vector<18x98xf32>
    %cst_65 = arith.constant dense<0.000000e+00> : vector<18x32xf32>
    %65 = tpu.matmul %64, %7, %cst_65 {dimension_numbers = #tpu.dot_dimension_numbers<[1], [0], [0], [1], [0, 0, 1, 1], [], []>} : vector<18x98xf32>, vector<98x32xf32>, vector<18x32xf32> -> vector<18x32xf32>
    %c8_66 = arith.constant 8 : index
    %c0_67 = arith.constant 0 : index
    %c0_68 = arith.constant 0 : index
    %66 = vector.load %arg4[%c8_66, %c0_67, %c0_68] : memref<9x32x64xf32, #tpu.memory_space<vmem>>, vector<1x32x64xf32>
    %67 = vector.shape_cast %66 : vector<1x32x64xf32> to vector<32x64xf32>
    %cst_69 = arith.constant dense<0.000000e+00> : vector<18x64xf32>
    %68 = tpu.matmul %65, %67, %cst_69 {dimension_numbers = #tpu.dot_dimension_numbers<[1], [0], [0], [1], [0, 0, 1, 1], [], []>} : vector<18x32xf32>, vector<32x64xf32>, vector<18x64xf32> -> vector<18x64xf32>
    %69 = arith.addf %62, %68 : vector<18x64xf32>
    %c0_70 = arith.constant 0 : index
    %c0_71 = arith.constant 0 : index
    %70 = vector.load %arg5[%c0_70, %c0_71] : memref<1x64xf32, #tpu.memory_space<vmem>>, vector<1x64xf32>
    %71 = vector.broadcast %70 : vector<1x64xf32> to vector<18x64xf32>
    %72 = arith.addf %69, %71 : vector<18x64xf32>
    %cst_72 = arith.constant 0.000000e+00 : f32
    %73 = vector.broadcast %cst_72 : f32 to vector<18x64xf32>
    %74 = arith.maximumf %72, %73 : vector<18x64xf32>
    %c0_73 = arith.constant 0 : index
    %c0_74 = arith.constant 0 : index
    %c0_75 = arith.constant 0 : index
    %75 = vector.load %arg6[%c0_73, %c0_74, %c0_75] : memref<4x8x18xf32, #tpu.memory_space<vmem>>, vector<1x8x18xf32>
    %76 = vector.shape_cast %75 : vector<1x8x18xf32> to vector<8x18xf32>
    %cst_76 = arith.constant dense<0.000000e+00> : vector<8x64xf32>
    %77 = tpu.matmul %76, %74, %cst_76 {dimension_numbers = #tpu.dot_dimension_numbers<[1], [0], [0], [1], [0, 0, 1, 1], [], []>} : vector<8x18xf32>, vector<18x64xf32>, vector<8x64xf32> -> vector<8x64xf32>
    %c0_77 = arith.constant 0 : index
    %c0_78 = arith.constant 0 : index
    %c0_79 = arith.constant 0 : index
    %78 = vector.load %arg7[%c0_77, %c0_78, %c0_79] : memref<4x64x64xf32, #tpu.memory_space<vmem>>, vector<1x64x64xf32>
    %79 = vector.shape_cast %78 : vector<1x64x64xf32> to vector<64x64xf32>
    %cst_80 = arith.constant dense<0.000000e+00> : vector<8x64xf32>
    %80 = tpu.matmul %77, %79, %cst_80 {dimension_numbers = #tpu.dot_dimension_numbers<[1], [0], [0], [1], [0, 0, 1, 1], [], []>} : vector<8x64xf32>, vector<64x64xf32>, vector<8x64xf32> -> vector<8x64xf32>
    %c1_81 = arith.constant 1 : index
    %c0_82 = arith.constant 0 : index
    %c0_83 = arith.constant 0 : index
    %81 = vector.load %arg6[%c1_81, %c0_82, %c0_83] : memref<4x8x18xf32, #tpu.memory_space<vmem>>, vector<1x8x18xf32>
    %82 = vector.shape_cast %81 : vector<1x8x18xf32> to vector<8x18xf32>
    %cst_84 = arith.constant dense<0.000000e+00> : vector<8x64xf32>
    %83 = tpu.matmul %82, %74, %cst_84 {dimension_numbers = #tpu.dot_dimension_numbers<[1], [0], [0], [1], [0, 0, 1, 1], [], []>} : vector<8x18xf32>, vector<18x64xf32>, vector<8x64xf32> -> vector<8x64xf32>
    %c1_85 = arith.constant 1 : index
    %c0_86 = arith.constant 0 : index
    %c0_87 = arith.constant 0 : index
    %84 = vector.load %arg7[%c1_85, %c0_86, %c0_87] : memref<4x64x64xf32, #tpu.memory_space<vmem>>, vector<1x64x64xf32>
    %85 = vector.shape_cast %84 : vector<1x64x64xf32> to vector<64x64xf32>
    %cst_88 = arith.constant dense<0.000000e+00> : vector<8x64xf32>
    %86 = tpu.matmul %83, %85, %cst_88 {dimension_numbers = #tpu.dot_dimension_numbers<[1], [0], [0], [1], [0, 0, 1, 1], [], []>} : vector<8x64xf32>, vector<64x64xf32>, vector<8x64xf32> -> vector<8x64xf32>
    %87 = arith.addf %80, %86 : vector<8x64xf32>
    %c2_89 = arith.constant 2 : index
    %c0_90 = arith.constant 0 : index
    %c0_91 = arith.constant 0 : index
    %88 = vector.load %arg6[%c2_89, %c0_90, %c0_91] : memref<4x8x18xf32, #tpu.memory_space<vmem>>, vector<1x8x18xf32>
    %89 = vector.shape_cast %88 : vector<1x8x18xf32> to vector<8x18xf32>
    %cst_92 = arith.constant dense<0.000000e+00> : vector<8x64xf32>
    %90 = tpu.matmul %89, %74, %cst_92 {dimension_numbers = #tpu.dot_dimension_numbers<[1], [0], [0], [1], [0, 0, 1, 1], [], []>} : vector<8x18xf32>, vector<18x64xf32>, vector<8x64xf32> -> vector<8x64xf32>
    %c2_93 = arith.constant 2 : index
    %c0_94 = arith.constant 0 : index
    %c0_95 = arith.constant 0 : index
    %91 = vector.load %arg7[%c2_93, %c0_94, %c0_95] : memref<4x64x64xf32, #tpu.memory_space<vmem>>, vector<1x64x64xf32>
    %92 = vector.shape_cast %91 : vector<1x64x64xf32> to vector<64x64xf32>
    %cst_96 = arith.constant dense<0.000000e+00> : vector<8x64xf32>
    %93 = tpu.matmul %90, %92, %cst_96 {dimension_numbers = #tpu.dot_dimension_numbers<[1], [0], [0], [1], [0, 0, 1, 1], [], []>} : vector<8x64xf32>, vector<64x64xf32>, vector<8x64xf32> -> vector<8x64xf32>
    %94 = arith.addf %87, %93 : vector<8x64xf32>
    %c3_97 = arith.constant 3 : index
    %c0_98 = arith.constant 0 : index
    %c0_99 = arith.constant 0 : index
    %95 = vector.load %arg6[%c3_97, %c0_98, %c0_99] : memref<4x8x18xf32, #tpu.memory_space<vmem>>, vector<1x8x18xf32>
    %96 = vector.shape_cast %95 : vector<1x8x18xf32> to vector<8x18xf32>
    %cst_100 = arith.constant dense<0.000000e+00> : vector<8x64xf32>
    %97 = tpu.matmul %96, %74, %cst_100 {dimension_numbers = #tpu.dot_dimension_numbers<[1], [0], [0], [1], [0, 0, 1, 1], [], []>} : vector<8x18xf32>, vector<18x64xf32>, vector<8x64xf32> -> vector<8x64xf32>
    %c3_101 = arith.constant 3 : index
    %c0_102 = arith.constant 0 : index
    %c0_103 = arith.constant 0 : index
    %98 = vector.load %arg7[%c3_101, %c0_102, %c0_103] : memref<4x64x64xf32, #tpu.memory_space<vmem>>, vector<1x64x64xf32>
    %99 = vector.shape_cast %98 : vector<1x64x64xf32> to vector<64x64xf32>
    %cst_104 = arith.constant dense<0.000000e+00> : vector<8x64xf32>
    %100 = tpu.matmul %97, %99, %cst_104 {dimension_numbers = #tpu.dot_dimension_numbers<[1], [0], [0], [1], [0, 0, 1, 1], [], []>} : vector<8x64xf32>, vector<64x64xf32>, vector<8x64xf32> -> vector<8x64xf32>
    %101 = arith.addf %94, %100 : vector<8x64xf32>
    %c0_105 = arith.constant 0 : index
    %c0_106 = arith.constant 0 : index
    %102 = vector.load %arg8[%c0_105, %c0_106] : memref<1x64xf32, #tpu.memory_space<vmem>>, vector<1x64xf32>
    %103 = vector.broadcast %102 : vector<1x64xf32> to vector<8x64xf32>
    %104 = arith.addf %101, %103 : vector<8x64xf32>
    %cst_107 = arith.constant 0.000000e+00 : f32
    %105 = vector.broadcast %cst_107 : f32 to vector<8x64xf32>
    %106 = arith.maximumf %104, %105 : vector<8x64xf32>
    %107 = vector.extract_strided_slice %106 {offsets = [0, 0], sizes = [2, 64], strides = [1, 1]} : vector<8x64xf32> to vector<2x64xf32>
    %c0_108 = arith.constant 0 : index
    %c0_109 = arith.constant 0 : index
    %c0_110 = arith.constant 0 : index
    %108 = vector.load %arg9[%c0_108, %c0_109, %c0_110] : memref<4x64x1024xf32, #tpu.memory_space<vmem>>, vector<1x64x1024xf32>
    %109 = vector.shape_cast %108 : vector<1x64x1024xf32> to vector<64x1024xf32>
    %cst_111 = arith.constant dense<0.000000e+00> : vector<2x1024xf32>
    %110 = tpu.matmul %107, %109, %cst_111 {dimension_numbers = #tpu.dot_dimension_numbers<[1], [0], [0], [1], [0, 0, 1, 1], [], []>} : vector<2x64xf32>, vector<64x1024xf32>, vector<2x1024xf32> -> vector<2x1024xf32>
    %111 = vector.extract_strided_slice %106 {offsets = [2, 0], sizes = [2, 64], strides = [1, 1]} : vector<8x64xf32> to vector<2x64xf32>
    %c1_112 = arith.constant 1 : index
    %c0_113 = arith.constant 0 : index
    %c0_114 = arith.constant 0 : index
    %112 = vector.load %arg9[%c1_112, %c0_113, %c0_114] : memref<4x64x1024xf32, #tpu.memory_space<vmem>>, vector<1x64x1024xf32>
    %113 = vector.shape_cast %112 : vector<1x64x1024xf32> to vector<64x1024xf32>
    %cst_115 = arith.constant dense<0.000000e+00> : vector<2x1024xf32>
    %114 = tpu.matmul %111, %113, %cst_115 {dimension_numbers = #tpu.dot_dimension_numbers<[1], [0], [0], [1], [0, 0, 1, 1], [], []>} : vector<2x64xf32>, vector<64x1024xf32>, vector<2x1024xf32> -> vector<2x1024xf32>
    %115 = arith.addf %110, %114 : vector<2x1024xf32>
    %116 = vector.extract_strided_slice %106 {offsets = [4, 0], sizes = [2, 64], strides = [1, 1]} : vector<8x64xf32> to vector<2x64xf32>
    %c2_116 = arith.constant 2 : index
    %c0_117 = arith.constant 0 : index
    %c0_118 = arith.constant 0 : index
    %117 = vector.load %arg9[%c2_116, %c0_117, %c0_118] : memref<4x64x1024xf32, #tpu.memory_space<vmem>>, vector<1x64x1024xf32>
    %118 = vector.shape_cast %117 : vector<1x64x1024xf32> to vector<64x1024xf32>
    %cst_119 = arith.constant dense<0.000000e+00> : vector<2x1024xf32>
    %119 = tpu.matmul %116, %118, %cst_119 {dimension_numbers = #tpu.dot_dimension_numbers<[1], [0], [0], [1], [0, 0, 1, 1], [], []>} : vector<2x64xf32>, vector<64x1024xf32>, vector<2x1024xf32> -> vector<2x1024xf32>
    %120 = arith.addf %115, %119 : vector<2x1024xf32>
    %121 = vector.extract_strided_slice %106 {offsets = [6, 0], sizes = [2, 64], strides = [1, 1]} : vector<8x64xf32> to vector<2x64xf32>
    %c3_120 = arith.constant 3 : index
    %c0_121 = arith.constant 0 : index
    %c0_122 = arith.constant 0 : index
    %122 = vector.load %arg9[%c3_120, %c0_121, %c0_122] : memref<4x64x1024xf32, #tpu.memory_space<vmem>>, vector<1x64x1024xf32>
    %123 = vector.shape_cast %122 : vector<1x64x1024xf32> to vector<64x1024xf32>
    %cst_123 = arith.constant dense<0.000000e+00> : vector<2x1024xf32>
    %124 = tpu.matmul %121, %123, %cst_123 {dimension_numbers = #tpu.dot_dimension_numbers<[1], [0], [0], [1], [0, 0, 1, 1], [], []>} : vector<2x64xf32>, vector<64x1024xf32>, vector<2x1024xf32> -> vector<2x1024xf32>
    %125 = arith.addf %120, %124 : vector<2x1024xf32>
    %c0_124 = arith.constant 0 : index
    %c0_125 = arith.constant 0 : index
    %126 = vector.load %arg10[%c0_124, %c0_125] : memref<1x1024xf32, #tpu.memory_space<vmem>>, vector<1x1024xf32>
    %127 = vector.broadcast %126 : vector<1x1024xf32> to vector<2x1024xf32>
    %128 = arith.addf %125, %127 : vector<2x1024xf32>
    %cst_126 = arith.constant 0.000000e+00 : f32
    %129 = vector.broadcast %cst_126 : f32 to vector<2x1024xf32>
    %130 = arith.maximumf %128, %129 : vector<2x1024xf32>
    %c0_127 = arith.constant 0 : index
    %c0_128 = arith.constant 0 : index
    %131 = vector.load %arg11[%c0_127, %c0_128] : memref<1024x7xf32, #tpu.memory_space<vmem>>, vector<1024x7xf32>
    %cst_129 = arith.constant dense<0.000000e+00> : vector<2x7xf32>
    %132 = tpu.matmul %130, %131, %cst_129 {dimension_numbers = #tpu.dot_dimension_numbers<[1], [0], [0], [1], [0, 0, 1, 1], [], []>} : vector<2x1024xf32>, vector<1024x7xf32>, vector<2x7xf32> -> vector<2x7xf32>
    %c0_130 = arith.constant 0 : index
    %c0_131 = arith.constant 0 : index
    %133 = vector.load %arg12[%c0_130, %c0_131] : memref<1x7xf32, #tpu.memory_space<vmem>>, vector<1x7xf32>
    %134 = vector.broadcast %133 : vector<1x7xf32> to vector<2x7xf32>
    %135 = arith.addf %132, %134 : vector<2x7xf32>
    %136 = vector.extract_strided_slice %135 {offsets = [0, 0], sizes = [2, 6], strides = [1, 1]} : vector<2x7xf32> to vector<2x6xf32>
    %137 = vector.extract_strided_slice %135 {offsets = [0, 6], sizes = [2, 1], strides = [1, 1]} : vector<2x7xf32> to vector<2x1xf32>
    %138 = vector.broadcast %137 : vector<2x1xf32> to vector<2x6xf32>
    %139 = arith.addf %138, %136 : vector<2x6xf32>
    %cst_132 = arith.constant dense<0.000000e+00> : vector<2xf32>
    %140 = vector.multi_reduction <add>, %136, %cst_132 [1] : vector<2x6xf32> to vector<2xf32>
    %141 = vector.shape_cast %140 : vector<2xf32> to vector<2x1xf32>
    %cst_133 = arith.constant 6.000000e+00 : f32
    %142 = vector.broadcast %cst_133 : f32 to vector<2x1xf32>
    %143 = arith.divf %141, %142 : vector<2x1xf32>
    %144 = vector.broadcast %143 : vector<2x1xf32> to vector<2x6xf32>
    %145 = arith.subf %139, %144 : vector<2x6xf32>
    %c0_134 = arith.constant 0 : index
    %c0_135 = arith.constant 0 : index
    %146 = vector.load %arg13[%c0_134, %c0_135] : memref<2x6xf32, #tpu.memory_space<vmem>>, vector<2x6xf32>
    tpu.vector_store %arg13[%c0_134, %c0_135], %145 {strides = array<i32>} : memref<2x6xf32, #tpu.memory_space<vmem>>, vector<2x6xf32>,
    return
  }
}

</mosaic_0001>

<llo_original>
// kernel: ddqn_forward.1
$region0: #{ddqn_forward.1}
  #allocation0 [shape = 'u32[]', space=smem, size = 0x4, offset = 0x4, fixed_abs, tag = 'smem constant byte address 0x4 - core index']
  #allocation1 [shape = 'u32[144,128]{1,0:T(1,128)}', space=vmem, size = 0x12000, scoped, tag = 'internal scratch']
  %s0 = inlined_call_operand.vmem [shape: f32[98,64], index: 0, kind: input, shape index: {}]
  %s1 = inlined_call_operand.vmem [shape: f32[64,32], index: 1, kind: input, shape index: {}]
  %s2 = inlined_call_operand.vmem [shape: f32[1,32], index: 2, kind: input, shape index: {}]
  %s3 = inlined_call_operand.vmem [shape: f32[9,18,98], index: 3, kind: input, shape index: {}]
  %s4 = inlined_call_operand.vmem [shape: f32[9,32,64], index: 4, kind: input, shape index: {}]
  %s5 = inlined_call_operand.vmem [shape: f32[1,64], index: 5, kind: input, shape index: {}]
  %s6 = inlined_call_operand.vmem [shape: f32[4,8,18], index: 6, kind: input, shape index: {}]
  %s7 = inlined_call_operand.vmem [shape: f32[4,64,64], index: 7, kind: input, shape index: {}]
  %s8 = inlined_call_operand.vmem [shape: f32[1,64], index: 8, kind: input, shape index: {}]
  %s9 = inlined_call_operand.vmem [shape: f32[4,64,1024], index: 9, kind: input, shape index: {}]
  %s10 = inlined_call_operand.vmem [shape: f32[1,1024], index: 10, kind: input, shape index: {}]
  %s11 = inlined_call_operand.vmem [shape: f32[1024,7], index: 11, kind: input, shape index: {}]
  %s12 = inlined_call_operand.vmem [shape: f32[1,7], index: 12, kind: input, shape index: {}]
  %s13 = inlined_call_operand.hbm [shape: f32[2,6], index: 13, kind: output, shape index: {}]
  %s14 = sld [smem:[#allocation0]]
  $region62: #{ddqn_forward.1} parent=0
    _
  %s16 = ssub.s32 1, %s14
  %s17 = scalar_select 0, %s16, %s14
  $region1: #{ddqn_forward.1} parent=0
    #allocation2 [shape = 'u8[1024]{0}', space=vmem, size = 0x400, scoped, tag = 'output window, operand 0, single buffered']
    #allocation3 [shape = 's32[1]{0}', space=sflag, size = 0x4, scoped, tag = 'scoped memory for ddqn_forward.1']
    %18 = vsyncpa [#allocation3], 0
    // Predicated region
    $region2: #{ddqn_forward.1} parent=1 // pred_check
      _
    $region3: #{ddqn_forward.1} parent=1 // pred_check_branch
      %20 = sbr.rel (0) target = $region5
    $region4: #{ddqn_forward.1} parent=1 // pred_region
      _
    $region5: #{ddqn_forward.1} parent=1 // pred_fallthru
      _
    // Predicated region
    $region6: #{ddqn_forward.1} parent=1 // pred_check
      _
    $region7: #{ddqn_forward.1} parent=1 // pred_check_branch
      %22 = sbr.rel (0) target = $region9
    $region8: #{ddqn_forward.1} parent=1 // pred_region
      _
    $region9: #{ddqn_forward.1} parent=1 // pred_fallthru
      _
    // Predicated region
    $region10: #{ddqn_forward.1} parent=1 // pred_check
      _
    $region11: #{ddqn_forward.1} parent=1 // pred_check_branch
      %24 = sbr.rel (0) target = $region13
    $region12: #{ddqn_forward.1} parent=1 // pred_region
      _
    $region13: #{ddqn_forward.1} parent=1 // pred_fallthru
      _
    // Predicated region
    $region14: #{ddqn_forward.1} parent=1 // pred_check
      _
    $region15: #{ddqn_forward.1} parent=1 // pred_check_branch
      %26 = sbr.rel (0) target = $region17
    $region16: #{ddqn_forward.1} parent=1 // pred_region
      _
    $region17: #{ddqn_forward.1} parent=1 // pred_fallthru
      _
    // Predicated region
    $region18: #{ddqn_forward.1} parent=1 // pred_check
      _
    $region19: #{ddqn_forward.1} parent=1 // pred_check_branch
      %28 = sbr.rel (0) target = $region21
    $region20: #{ddqn_forward.1} parent=1 // pred_region
      _
    $region21: #{ddqn_forward.1} parent=1 // pred_fallthru
      _
    // Predicated region
    $region22: #{ddqn_forward.1} parent=1 // pred_check
      _
    $region23: #{ddqn_forward.1} parent=1 // pred_check_branch
      %30 = sbr.rel (0) target = $region25
    $region24: #{ddqn_forward.1} parent=1 // pred_region
      _
    $region25: #{ddqn_forward.1} parent=1 // pred_fallthru
      _
    // Predicated region
    $region26: #{ddqn_forward.1} parent=1 // pred_check
      _
    $region27: #{ddqn_forward.1} parent=1 // pred_check_branch
      %32 = sbr.rel (0) target = $region29
    $region28: #{ddqn_forward.1} parent=1 // pred_region
      _
    $region29: #{ddqn_forward.1} parent=1 // pred_fallthru
      _
    // Predicated region
    $region30: #{ddqn_forward.1} parent=1 // pred_check
      _
    $region31: #{ddqn_forward.1} parent=1 // pred_check_branch
      %34 = sbr.rel (0) target = $region33
    $region32: #{ddqn_forward.1} parent=1 // pred_region
      _
    $region33: #{ddqn_forward.1} parent=1 // pred_fallthru
      _
    // Predicated region
    $region34: #{ddqn_forward.1} parent=1 // pred_check
      _
    $region35: #{ddqn_forward.1} parent=1 // pred_check_branch
      %36 = sbr.rel (0) target = $region37
    $region36: #{ddqn_forward.1} parent=1 // pred_region
      _
    $region37: #{ddqn_forward.1} parent=1 // pred_fallthru
      _
    // Predicated region
    $region38: #{ddqn_forward.1} parent=1 // pred_check
      _
    $region39: #{ddqn_forward.1} parent=1 // pred_check_branch
      %38 = sbr.rel (0) target = $region41
    $region40: #{ddqn_forward.1} parent=1 // pred_region
      _
    $region41: #{ddqn_forward.1} parent=1 // pred_fallthru
      _
    // Predicated region
    $region42: #{ddqn_forward.1} parent=1 // pred_check
      _
    $region43: #{ddqn_forward.1} parent=1 // pred_check_branch
      %40 = sbr.rel (0) target = $region45
    $region44: #{ddqn_forward.1} parent=1 // pred_region
      _
    $region45: #{ddqn_forward.1} parent=1 // pred_fallthru
      _
    // Predicated region
    $region46: #{ddqn_forward.1} parent=1 // pred_check
      _
    $region47: #{ddqn_forward.1} parent=1 // pred_check_branch
      %42 = sbr.rel (0) target = $region49
    $region48: #{ddqn_forward.1} parent=1 // pred_region
      _
    $region49: #{ddqn_forward.1} parent=1 // pred_fallthru
      _
    // Predicated region
    $region50: #{ddqn_forward.1} parent=1 // pred_check
      _
    $region51: #{ddqn_forward.1} parent=1 // pred_check_branch
      %44 = sbr.rel (0) target = $region53
    $region52: #{ddqn_forward.1} parent=1 // pred_region
      _
    $region53: #{ddqn_forward.1} parent=1 // pred_fallthru
      _
    %v45 = vld [vmem:[%s0] sm:$0xff]
    %v46 = vld [vmem:[%s0 + $0x8] sm:$0xff]
    %v47 = vld [vmem:[%s0 + $0x10] sm:$0xff]
    %v48 = vld [vmem:[%s0 + $0x18] sm:$0xff]
    %v49 = vld [vmem:[%s0 + $0x20] sm:$0xff]
    %v50 = vld [vmem:[%s0 + $0x28] sm:$0xff]
    %v51 = vld [vmem:[%s0 + $0x30] sm:$0xff]
    %v52 = vld [vmem:[%s0 + $0x38] sm:$0xff]
    %v53 = vld [vmem:[%s0 + $0x40] sm:$0xff]
    %v54 = vld [vmem:[%s0 + $0x48] sm:$0xff]
    %v55 = vld [vmem:[%s0 + $0x50] sm:$0xff]
    %v56 = vld [vmem:[%s0 + $0x58] sm:$0xff]
    %v57 = vld [vmem:[%s0 + $0x60] sm:$0x3]
    %v58 = vld [vmem:[%s1] sm:$0xff]
    %v59 = vld [vmem:[%s1 + $0x8] sm:$0xff]
    %v60 = vld [vmem:[%s1 + $0x10] sm:$0xff]
    %v61 = vld [vmem:[%s1 + $0x18] sm:$0xff]
    %v62 = vld [vmem:[%s1 + $0x20] sm:$0xff]
    %v63 = vld [vmem:[%s1 + $0x28] sm:$0xff]
    %v64 = vld [vmem:[%s1 + $0x30] sm:$0xff]
    %v65 = vld [vmem:[%s1 + $0x38] sm:$0xff]
    %v66 = vld [vmem:[%s2] sm:$0x1]
    %v68 = vlaneseq
    %v69 = vshrl.u32 %v68, 7
    %v70 = vsub.s32 0, %v69
    %v71 = vrot.slane %v66, %v70
    %vm73 = vcmask 523264
    %v75 = vsel %vm73, %v45, 0
    %v78 = vsel %vm73, %v46, 0
    %v81 = vsel %vm73, %v47, 0
    %v84 = vsel %vm73, %v48, 0
    %v87 = vsel %vm73, %v49, 0
    %v90 = vsel %vm73, %v50, 0
    %v93 = vsel %vm73, %v51, 0
    %v96 = vsel %vm73, %v52, 0
    %v99 = vsel %vm73, %v53, 0
    %v102 = vsel %vm73, %v54, 0
    %v105 = vsel %vm73, %v55, 0
    %v108 = vsel %vm73, %v56, 0
    %v111 = vsel %vm73, %v57, 0
    %113 = vmatprep.subr.mxu0 0.0
    %114 = vmatpush1.msra.mxu0 0.0
    %115 = vmatprep.subr.mxu0 0.0
    %116 = vmatpush1.msra.mxu0 0.0
    %117 = vmatprep.subr.mxu0 0.0
    %118 = vmatpush1.msra.mxu0 0.0
    %119 = vmatprep.subr.mxu0 0.0
    %120 = vmatpush1.msra.mxu0 0.0
    %121 = vmatprep.subr.mxu0 0.0
    %122 = vmatpush1.msra.mxu0 0.0
    %123 = vmatprep.subr.mxu0 0.0
    %124 = vmatpush1.msra.mxu0 0.0
    %125 = vmatprep.subr.mxu0 0.0
    %126 = vmatpush1.msra.mxu0 0.0
    %127 = vmatprep.subr.mxu0 0.0
    %128 = vmatpush1.msra.mxu0 0.0
    %129 = vmatprep.subr.mxu0 0.0
    %130 = vmatpush1.msra.mxu0 %v65
    %131 = vmatprep.subr.mxu0 0.0
    %132 = vmatpush1.msra.mxu0 %v64
    %133 = vmatprep.subr.mxu0 0.0
    %134 = vmatpush1.msra.mxu0 %v63
    %135 = vmatprep.subr.mxu0 0.0
    %136 = vmatpush1.msra.mxu0 %v62
    %137 = vmatprep.subr.mxu0 0.0
    %138 = vmatpush1.msra.mxu0 %v61
    %139 = vmatprep.subr.mxu0 0.0
    %140 = vmatpush1.msra.mxu0 %v60
    %141 = vmatprep.subr.mxu0 0.0
    %142 = vmatpush1.msra.mxu0 %v59
    %143 = vmatprep.subr.mxu0 0.0
    %144 = vmatpush1.msra.mxu0 %v58
    %145 = vmatprep.subr.mxu0 0.0
    %146 = vmatpush2.msra.mxu0 0.0
    %147 = vmatprep.subr.mxu0 0.0
    %148 = vmatpush2.msra.mxu0 0.0
    %149 = vmatprep.subr.mxu0 0.0
    %150 = vmatpush2.msra.mxu0 0.0
    %151 = vmatprep.subr.mxu0 0.0
    %152 = vmatpush2.msra.mxu0 0.0
    %153 = vmatprep.subr.mxu0 0.0
    %154 = vmatpush2.msra.mxu0 0.0
    %155 = vmatprep.subr.mxu0 0.0
    %156 = vmatpush2.msra.mxu0 0.0
    %157 = vmatprep.subr.mxu0 0.0
    %158 = vmatpush2.msra.mxu0 0.0
    %159 = vmatprep.subr.mxu0 0.0
    %160 = vmatpush2.msra.mxu0 0.0
    %161 = vmatprep.subr.mxu0 0.0
    %162 = vmatpush2.msra.mxu0 0.0
    %163 = vmatprep.subr.mxu0 0.0
    %164 = vmatpush2.msra.mxu0 0.0
    %165 = vmatprep.subr.mxu0 0.0
    %166 = vmatpush2.msra.mxu0 0.0
    %167 = vmatprep.subr.mxu0 0.0
    %168 = vmatpush2.msra.mxu0 0.0
    %169 = vmatprep.subr.mxu0 0.0
    %170 = vmatpush2.msra.mxu0 0.0
    %171 = vmatprep.subr.mxu0 0.0
    %172 = vmatpush2.msra.mxu0 0.0
    %173 = vmatprep.subr.mxu0 0.0
    %174 = vmatpush2.msra.mxu0 0.0
    %175 = vmatprep.subr.mxu0 0.0
    %176 = vmatpush2.msra.mxu0 0.0
    %177 = vmatprep.mubr.f32.mxu0 0.0
    %178 = vmatmul.mubr.f32.gmra.mxu0 %v75
    %v179 = vpop.f32.mrf.mxu0
    %v180 = vadd.f32 %v71, %v179
    %v181 = vpop.f32.mrf.mxu0
    %182 = vmatprep.mubr.f32.mxu0 0.0
    %183 = vmatmul.mubr.f32.gmra.mxu0 %v78
    %v184 = vpop.f32.mrf.mxu0
    %v185 = vadd.f32 %v71, %v184
    %v186 = vpop.f32.mrf.mxu0
    %187 = vmatprep.mubr.f32.mxu0 0.0
    %188 = vmatmul.mubr.f32.gmra.mxu0 %v81
    %v189 = vpop.f32.mrf.mxu0
    %v190 = vadd.f32 %v71, %v189
    %v191 = vpop.f32.mrf.mxu0
    %192 = vmatprep.mubr.f32.mxu0 0.0
    %193 = vmatmul.mubr.f32.gmra.mxu0 %v84
    %v194 = vpop.f32.mrf.mxu0
    %v195 = vadd.f32 %v71, %v194
    %v196 = vpop.f32.mrf.mxu0
    %197 = vmatprep.mubr.f32.mxu0 0.0
    %198 = vmatmul.mubr.f32.gmra.mxu0 %v87
    %v199 = vpop.f32.mrf.mxu0
    %v200 = vadd.f32 %v71, %v199
    %v201 = vpop.f32.mrf.mxu0
    %202 = vmatprep.mubr.f32.mxu0 0.0
    %203 = vmatmul.mubr.f32.gmra.mxu0 %v90
    %v204 = vpop.f32.mrf.mxu0
    %v205 = vadd.f32 %v71, %v204
    %v206 = vpop.f32.mrf.mxu0
    %207 = vmatprep.mubr.f32.mxu0 0.0
    %208 = vmatmul.mubr.f32.gmra.mxu0 %v93
    %v209 = vpop.f32.mrf.mxu0
    %v210 = vadd.f32 %v71, %v209
    %v211 = vpop.f32.mrf.mxu0
    %212 = vmatprep.mubr.f32.mxu0 0.0
    %213 = vmatmul.mubr.f32.gmra.mxu0 %v96
    %v214 = vpop.f32.mrf.mxu0
    %v215 = vadd.f32 %v71, %v214
    %v216 = vpop.f32.mrf.mxu0
    %217 = vmatprep.mubr.f32.mxu0 0.0
    %218 = vmatmul.mubr.f32.gmra.mxu0 %v99
    %v219 = vpop.f32.mrf.mxu0
    %v220 = vadd.f32 %v71, %v219
    %v221 = vpop.f32.mrf.mxu0
    %222 = vmatprep.mubr.f32.mxu0 0.0
    %223 = vmatmul.mubr.f32.gmra.mxu0 %v102
    %v224 = vpop.f32.mrf.mxu0
    %v225 = vadd.f32 %v71, %v224
    %v226 = vpop.f32.mrf.mxu0
    %227 = vmatprep.mubr.f32.mxu0 0.0
    %228 = vmatmul.mubr.f32.gmra.mxu0 %v105
    %v229 = vpop.f32.mrf.mxu0
    %v230 = vadd.f32 %v71, %v229
    %v231 = vpop.f32.mrf.mxu0
    %232 = vmatprep.mubr.f32.mxu0 0.0
    %233 = vmatmul.mubr.f32.gmra.mxu0 %v108
    %v234 = vpop.f32.mrf.mxu0
    %v235 = vadd.f32 %v71, %v234
    %v236 = vpop.f32.mrf.mxu0
    %237 = vmatprep.mubr.f32.mxu0 0.0
    %238 = vmatmul.mubr.f32.gmra.mxu0 %v111
    %v239 = vpop.f32.mrf.mxu0
    %v240 = vadd.f32 %v71, %v239
    %v241 = vpop.f32.mrf.mxu0
    %242 = vdwg.mxu0
    %v243 = vmax.f32 %v180, 0.0
    %v244 = vmax.f32 %v185, 0.0
    %v245 = vmax.f32 %v190, 0.0
    %v246 = vmax.f32 %v195, 0.0
    %v247 = vmax.f32 %v200, 0.0
    %v248 = vmax.f32 %v205, 0.0
    %v249 = vmax.f32 %v210, 0.0
    %v250 = vmax.f32 %v215, 0.0
    %v251 = vmax.f32 %v220, 0.0
    %v252 = vmax.f32 %v225, 0.0
    %v253 = vmax.f32 %v230, 0.0
    %v254 = vmax.f32 %v235, 0.0
    %v255 = vmax.f32 %v240, 0.0
    %v256 = vld [vmem:[%s3] sm:$0xff]
    %v257 = vld [vmem:[%s3 + $0x8] sm:$0xff]
    %v258 = vld [vmem:[%s3 + $0x10] sm:$0x3]
    %vm259 = vcmask 801792
    %v261 = vsel %vm259, %v256, 0
    %v264 = vsel %vm259, %v257, 0
    %v267 = vsel %vm259, %v258, 0
    %vm269 = vcmask 1041408
    %v271 = vsel %vm269, %v255, 0
    %273 = vmatprep.subr.mxu0 0.0
    %274 = vmatpush1.msra.mxu0 0.0
    %275 = vmatprep.subr.mxu0 0.0
    %276 = vmatpush1.msra.mxu0 0.0
    %277 = vmatprep.subr.mxu0 0.0
    %278 = vmatpush1.msra.mxu0 0.0
    %279 = vmatprep.subr.mxu0 0.0
    %280 = vmatpush1.msra.mxu0 %v271
    %281 = vmatprep.subr.mxu0 0.0
    %282 = vmatpush1.msra.mxu0 %v254
    %283 = vmatprep.subr.mxu0 0.0
    %284 = vmatpush1.msra.mxu0 %v253
    %285 = vmatprep.subr.mxu0 0.0
    %286 = vmatpush1.msra.mxu0 %v252
    %287 = vmatprep.subr.mxu0 0.0
    %288 = vmatpush1.msra.mxu0 %v251
    %289 = vmatprep.subr.mxu0 0.0
    %290 = vmatpush1.msra.mxu0 %v250
    %291 = vmatprep.subr.mxu0 0.0
    %292 = vmatpush1.msra.mxu0 %v249
    %293 = vmatprep.subr.mxu0 0.0
    %294 = vmatpush1.msra.mxu0 %v248
    %295 = vmatprep.subr.mxu0 0.0
    %296 = vmatpush1.msra.mxu0 %v247
    %297 = vmatprep.subr.mxu0 0.0
    %298 = vmatpush1.msra.mxu0 %v246
    %299 = vmatprep.subr.mxu0 0.0
    %300 = vmatpush1.msra.mxu0 %v245
    %301 = vmatprep.subr.mxu0 0.0
    %302 = vmatpush1.msra.mxu0 %v244
    %303 = vmatprep.subr.mxu0 0.0
    %304 = vmatpush1.msra.mxu0 %v243
    %305 = vmatprep.subr.mxu0 0.0
    %306 = vmatpush2.msra.mxu0 0.0
    %307 = vmatprep.subr.mxu0 0.0
    %308 = vmatpush2.msra.mxu0 0.0
    %309 = vmatprep.subr.mxu0 0.0
    %310 = vmatpush2.msra.mxu0 0.0
    %311 = vmatprep.subr.mxu0 0.0
    %312 = vmatpush2.msra.mxu0 0.0
    %313 = vmatprep.subr.mxu0 0.0
    %314 = vmatpush2.msra.mxu0 0.0
    %315 = vmatprep.subr.mxu0 0.0
    %316 = vmatpush2.msra.mxu0 0.0
    %317 = vmatprep.subr.mxu0 0.0
    %318 = vmatpush2.msra.mxu0 0.0
    %319 = vmatprep.subr.mxu0 0.0
    %320 = vmatpush2.msra.mxu0 0.0
    %321 = vmatprep.subr.mxu0 0.0
    %322 = vmatpush2.msra.mxu0 0.0
    %323 = vmatprep.subr.mxu0 0.0
    %324 = vmatpush2.msra.mxu0 0.0
    %325 = vmatprep.subr.mxu0 0.0
    %326 = vmatpush2.msra.mxu0 0.0
    %327 = vmatprep.subr.mxu0 0.0
    %328 = vmatpush2.msra.mxu0 0.0
    %329 = vmatprep.subr.mxu0 0.0
    %330 = vmatpush2.msra.mxu0 0.0
    %331 = vmatprep.subr.mxu0 0.0
    %332 = vmatpush2.msra.mxu0 0.0
    %333 = vmatprep.subr.mxu0 0.0
    %334 = vmatpush2.msra.mxu0 0.0
    %335 = vmatprep.subr.mxu0 0.0
    %336 = vmatpush2.msra.mxu0 0.0
    %337 = vmatprep.mubr.f32.mxu0 0.0
    %338 = vmatmul.mubr.f32.gmra.mxu0 %v261
    %v339 = vpop.f32.mrf.mxu0
    %v340 = vadd.f32 0.0, %v339
    %v341 = vpop.f32.mrf.mxu0
    %342 = vmatprep.mubr.f32.mxu0 0.0
    %343 = vmatmul.mubr.f32.gmra.mxu0 %v264
    %v344 = vpop.f32.mrf.mxu0
    %v345 = vadd.f32 0.0, %v344
    %v346 = vpop.f32.mrf.mxu0
    %347 = vmatprep.mubr.f32.mxu0 0.0
    %348 = vmatmul.mubr.f32.gmra.mxu0 %v267
    %v349 = vpop.f32.mrf.mxu0
    %v350 = vadd.f32 0.0, %v349
    %v351 = vpop.f32.mrf.mxu0
    %352 = vdwg.mxu0
    %v353 = vld [vmem:[%s4] sm:$0xff]
    %v354 = vld [vmem:[%s4 + $0x8] sm:$0xff]
    %v355 = vld [vmem:[%s4 + $0x10] sm:$0xff]
    %v356 = vld [vmem:[%s4 + $0x18] sm:$0xff]
    %s357 = scalar_lea.vmem %s3, 24
    %v358 = vld [vmem:[%s357] sm:$0xff]
    %v359 = vld [vmem:[%s357 + $0x8] sm:$0xff]
    %v360 = vld [vmem:[%s357 + $0x10] sm:$0x3]
    %v362 = vsel %vm259, %v358, 0
    %v365 = vsel %vm259, %v359, 0
    %v368 = vsel %vm259, %v360, 0
    %370 = vmatprep.subr.mxu0 0.0
    %371 = vmatpush1.msra.mxu0 0.0
    %372 = vmatprep.subr.mxu0 0.0
    %373 = vmatpush1.msra.mxu0 0.0
    %374 = vmatprep.subr.mxu0 0.0
    %375 = vmatpush1.msra.mxu0 0.0
    %376 = vmatprep.subr.mxu0 0.0
    %377 = vmatpush1.msra.mxu0 %v271
    %378 = vmatprep.subr.mxu0 0.0
    %379 = vmatpush1.msra.mxu0 %v254
    %380 = vmatprep.subr.mxu0 0.0
    %381 = vmatpush1.msra.mxu0 %v253
    %382 = vmatprep.subr.mxu0 0.0
    %383 = vmatpush1.msra.mxu0 %v252
    %384 = vmatprep.subr.mxu0 0.0
    %385 = vmatpush1.msra.mxu0 %v251
    %386 = vmatprep.subr.mxu0 0.0
    %387 = vmatpush1.msra.mxu0 %v250
    %388 = vmatprep.subr.mxu0 0.0
    %389 = vmatpush1.msra.mxu0 %v249
    %390 = vmatprep.subr.mxu0 0.0
    %391 = vmatpush1.msra.mxu0 %v248
    %392 = vmatprep.subr.mxu0 0.0
    %393 = vmatpush1.msra.mxu0 %v247
    %394 = vmatprep.subr.mxu0 0.0
    %395 = vmatpush1.msra.mxu0 %v246
    %396 = vmatprep.subr.mxu0 0.0
    %397 = vmatpush1.msra.mxu0 %v245
    %398 = vmatprep.subr.mxu0 0.0
    %399 = vmatpush1.msra.mxu0 %v244
    %400 = vmatprep.subr.mxu0 0.0
    %401 = vmatpush1.msra.mxu0 %v243
    %402 = vmatprep.subr.mxu0 0.0
    %403 = vmatpush2.msra.mxu0 0.0
    %404 = vmatprep.subr.mxu0 0.0
    %405 = vmatpush2.msra.mxu0 0.0
    %406 = vmatprep.subr.mxu0 0.0
    %407 = vmatpush2.msra.mxu0 0.0
    %408 = vmatprep.subr.mxu0 0.0
    %409 = vmatpush2.msra.mxu0 0.0
    %410 = vmatprep.subr.mxu0 0.0
    %411 = vmatpush2.msra.mxu0 0.0
    %412 = vmatprep.subr.mxu0 0.0
    %413 = vmatpush2.msra.mxu0 0.0
    %414 = vmatprep.subr.mxu0 0.0
    %415 = vmatpush2.msra.mxu0 0.0
    %416 = vmatprep.subr.mxu0 0.0
    %417 = vmatpush2.msra.mxu0 0.0
    %418 = vmatprep.subr.mxu0 0.0
    %419 = vmatpush2.msra.mxu0 0.0
    %420 = vmatprep.subr.mxu0 0.0
    %421 = vmatpush2.msra.mxu0 0.0
    %422 = vmatprep.subr.mxu0 0.0
    %423 = vmatpush2.msra.mxu0 0.0
    %424 = vmatprep.subr.mxu0 0.0
    %425 = vmatpush2.msra.mxu0 0.0
    %426 = vmatprep.subr.mxu0 0.0
    %427 = vmatpush2.msra.mxu0 0.0
    %428 = vmatprep.subr.mxu0 0.0
    %429 = vmatpush2.msra.mxu0 0.0
    %430 = vmatprep.subr.mxu0 0.0
    %431 = vmatpush2.msra.mxu0 0.0
    %432 = vmatprep.subr.mxu0 0.0
    %433 = vmatpush2.msra.mxu0 0.0
    %434 = vmatprep.mubr.f32.mxu0 0.0
    %435 = vmatmul.mubr.f32.gmra.mxu0 %v362
    %v436 = vpop.f32.mrf.mxu0
    %v437 = vadd.f32 0.0, %v436
    %v438 = vpop.f32.mrf.mxu0
    %439 = vmatprep.mubr.f32.mxu0 0.0
    %440 = vmatmul.mubr.f32.gmra.mxu0 %v365
    %v441 = vpop.f32.mrf.mxu0
    %v442 = vadd.f32 0.0, %v441
    %v443 = vpop.f32.mrf.mxu0
    %444 = vmatprep.mubr.f32.mxu0 0.0
    %445 = vmatmul.mubr.f32.gmra.mxu0 %v368
    %v446 = vpop.f32.mrf.mxu0
    %v447 = vadd.f32 0.0, %v446
    %v448 = vpop.f32.mrf.mxu0
    %449 = vdwg.mxu0
    %s450 = scalar_lea.vmem %s4, 32
    %v451 = vld [vmem:[%s450] sm:$0xff]
    %v452 = vld [vmem:[%s450 + $0x8] sm:$0xff]
    %v453 = vld [vmem:[%s450 + $0x10] sm:$0xff]
    %v454 = vld [vmem:[%s450 + $0x18] sm:$0xff]
    %vm455 = vcmask 261120
    %v457 = vsel %vm455, %v437, 0
    %v460 = vsel %vm455, %v442, 0
    %v463 = vsel %vm455, %v447, 0
    %465 = vmatprep.subr.mxu0 0.0
    %466 = vmatpush1.msra.mxu0 0.0
    %467 = vmatprep.subr.mxu0 0.0
    %468 = vmatpush1.msra.mxu0 0.0
    %469 = vmatprep.subr.mxu0 0.0
    %470 = vmatpush1.msra.mxu0 0.0
    %471 = vmatprep.subr.mxu0 0.0
    %472 = vmatpush1.msra.mxu0 0.0
    %473 = vmatprep.subr.mxu0 0.0
    %474 = vmatpush1.msra.mxu0 0.0
    %475 = vmatprep.subr.mxu0 0.0
    %476 = vmatpush1.msra.mxu0 0.0
    %477 = vmatprep.subr.mxu0 0.0
    %478 = vmatpush1.msra.mxu0 0.0
    %479 = vmatprep.subr.mxu0 0.0
    %480 = vmatpush1.msra.mxu0 0.0
    %481 = vmatprep.subr.mxu0 0.0
    %482 = vmatpush1.msra.mxu0 0.0
    %483 = vmatprep.subr.mxu0 0.0
    %484 = vmatpush1.msra.mxu0 0.0
    %485 = vmatprep.subr.mxu0 0.0
    %486 = vmatpush1.msra.mxu0 0.0
    %487 = vmatprep.subr.mxu0 0.0
    %488 = vmatpush1.msra.mxu0 0.0
    %489 = vmatprep.subr.mxu0 0.0
    %490 = vmatpush1.msra.mxu0 %v454
    %491 = vmatprep.subr.mxu0 0.0
    %492 = vmatpush1.msra.mxu0 %v453
    %493 = vmatprep.subr.mxu0 0.0
    %494 = vmatpush1.msra.mxu0 %v452
    %495 = vmatprep.subr.mxu0 0.0
    %496 = vmatpush1.msra.mxu0 %v451
    %497 = vmatprep.subr.mxu0 0.0
    %498 = vmatpush2.msra.mxu0 0.0
    %499 = vmatprep.subr.mxu0 0.0
    %500 = vmatpush2.msra.mxu0 0.0
    %501 = vmatprep.subr.mxu0 0.0
    %502 = vmatpush2.msra.mxu0 0.0
    %503 = vmatprep.subr.mxu0 0.0
    %504 = vmatpush2.msra.mxu0 0.0
    %505 = vmatprep.subr.mxu0 0.0
    %506 = vmatpush2.msra.mxu0 0.0
    %507 = vmatprep.subr.mxu0 0.0
    %508 = vmatpush2.msra.mxu0 0.0
    %509 = vmatprep.subr.mxu0 0.0
    %510 = vmatpush2.msra.mxu0 0.0
    %511 = vmatprep.subr.mxu0 0.0
    %512 = vmatpush2.msra.mxu0 0.0
    %513 = vmatprep.subr.mxu0 0.0
    %514 = vmatpush2.msra.mxu0 0.0
    %515 = vmatprep.subr.mxu0 0.0
    %516 = vmatpush2.msra.mxu0 0.0
    %517 = vmatprep.subr.mxu0 0.0
    %518 = vmatpush2.msra.mxu0 0.0
    %519 = vmatprep.subr.mxu0 0.0
    %520 = vmatpush2.msra.mxu0 0.0
    %521 = vmatprep.subr.mxu0 0.0
    %522 = vmatpush2.msra.mxu0 0.0
    %523 = vmatprep.subr.mxu0 0.0
    %524 = vmatpush2.msra.mxu0 0.0
    %525 = vmatprep.subr.mxu0 0.0
    %526 = vmatpush2.msra.mxu0 0.0
    %527 = vmatprep.subr.mxu0 0.0
    %528 = vmatpush2.msra.mxu0 0.0
    %529 = vmatprep.mubr.f32.mxu0 0.0
    %530 = vmatmul.mubr.f32.gmra.mxu0 %v457
    %v531 = vpop.f32.mrf.mxu0
    %v532 = vadd.f32 0.0, %v531
    %v533 = vpop.f32.mrf.mxu0
    %534 = vmatprep.mubr.f32.mxu0 0.0
    %535 = vmatmul.mubr.f32.gmra.mxu0 %v460
    %v536 = vpop.f32.mrf.mxu0
    %v537 = vadd.f32 0.0, %v536
    %v538 = vpop.f32.mrf.mxu0
    %539 = vmatprep.mubr.f32.mxu0 0.0
    %540 = vmatmul.mubr.f32.gmra.mxu0 %v463
    %v541 = vpop.f32.mrf.mxu0
    %v542 = vadd.f32 0.0, %v541
    %v543 = vpop.f32.mrf.mxu0
    %544 = vdwg.mxu0
    %v546 = vsel %vm455, %v340, 0
    %v549 = vsel %vm455, %v345, 0
    %v552 = vsel %vm455, %v350, 0
    %554 = vmatprep.subr.mxu0 0.0
    %555 = vmatpush1.msra.mxu0 0.0
    %556 = vmatprep.subr.mxu0 0.0
    %557 = vmatpush1.msra.mxu0 0.0
    %558 = vmatprep.subr.mxu0 0.0
    %559 = vmatpush1.msra.mxu0 0.0
    %560 = vmatprep.subr.mxu0 0.0
    %561 = vmatpush1.msra.mxu0 0.0
    %562 = vmatprep.subr.mxu0 0.0
    %563 = vmatpush1.msra.mxu0 0.0
    %564 = vmatprep.subr.mxu0 0.0
    %565 = vmatpush1.msra.mxu0 0.0
    %566 = vmatprep.subr.mxu0 0.0
    %567 = vmatpush1.msra.mxu0 0.0
    %568 = vmatprep.subr.mxu0 0.0
    %569 = vmatpush1.msra.mxu0 0.0
    %570 = vmatprep.subr.mxu0 0.0
    %571 = vmatpush1.msra.mxu0 0.0
    %572 = vmatprep.subr.mxu0 0.0
    %573 = vmatpush1.msra.mxu0 0.0
    %574 = vmatprep.subr.mxu0 0.0
    %575 = vmatpush1.msra.mxu0 0.0
    %576 = vmatprep.subr.mxu0 0.0
    %577 = vmatpush1.msra.mxu0 0.0
    %578 = vmatprep.subr.mxu0 0.0
    %579 = vmatpush1.msra.mxu0 %v356
    %580 = vmatprep.subr.mxu0 0.0
    %581 = vmatpush1.msra.mxu0 %v355
    %582 = vmatprep.subr.mxu0 0.0
    %583 = vmatpush1.msra.mxu0 %v354
    %584 = vmatprep.subr.mxu0 0.0
    %585 = vmatpush1.msra.mxu0 %v353
    %586 = vmatprep.subr.mxu0 0.0
    %587 = vmatpush2.msra.mxu0 0.0
    %588 = vmatprep.subr.mxu0 0.0
    %589 = vmatpush2.msra.mxu0 0.0
    %590 = vmatprep.subr.mxu0 0.0
    %591 = vmatpush2.msra.mxu0 0.0
    %592 = vmatprep.subr.mxu0 0.0
    %593 = vmatpush2.msra.mxu0 0.0
    %594 = vmatprep.subr.mxu0 0.0
    %595 = vmatpush2.msra.mxu0 0.0
    %596 = vmatprep.subr.mxu0 0.0
    %597 = vmatpush2.msra.mxu0 0.0
    %598 = vmatprep.subr.mxu0 0.0
    %599 = vmatpush2.msra.mxu0 0.0
    %600 = vmatprep.subr.mxu0 0.0
    %601 = vmatpush2.msra.mxu0 0.0
    %602 = vmatprep.subr.mxu0 0.0
    %603 = vmatpush2.msra.mxu0 0.0
    %604 = vmatprep.subr.mxu0 0.0
    %605 = vmatpush2.msra.mxu0 0.0
    %606 = vmatprep.subr.mxu0 0.0
    %607 = vmatpush2.msra.mxu0 0.0
    %608 = vmatprep.subr.mxu0 0.0
    %609 = vmatpush2.msra.mxu0 0.0
    %610 = vmatprep.subr.mxu0 0.0
    %611 = vmatpush2.msra.mxu0 0.0
    %612 = vmatprep.subr.mxu0 0.0
    %613 = vmatpush2.msra.mxu0 0.0
    %614 = vmatprep.subr.mxu0 0.0
    %615 = vmatpush2.msra.mxu0 0.0
    %616 = vmatprep.subr.mxu0 0.0
    %617 = vmatpush2.msra.mxu0 0.0
    %618 = vmatprep.mubr.f32.mxu0 0.0
    %619 = vmatmul.mubr.f32.gmra.mxu0 %v546
    %v620 = vpop.f32.mrf.mxu0
    %v621 = vadd.f32 %v532, %v620
    %v622 = vpop.f32.mrf.mxu0
    %623 = vmatprep.mubr.f32.mxu0 0.0
    %624 = vmatmul.mubr.f32.gmra.mxu0 %v549
    %v625 = vpop.f32.mrf.mxu0
    %v626 = vadd.f32 %v537, %v625
    %v627 = vpop.f32.mrf.mxu0
    %628 = vmatprep.mubr.f32.mxu0 0.0
    %629 = vmatmul.mubr.f32.gmra.mxu0 %v552
    %v630 = vpop.f32.mrf.mxu0
    %v631 = vadd.f32 %v542, %v630
    %v632 = vpop.f32.mrf.mxu0
    %633 = vdwg.mxu0
    %s634 = scalar_lea.vmem %s3, 48
    %v635 = vld [vmem:[%s634] sm:$0xff]
    %v636 = vld [vmem:[%s634 + $0x8] sm:$0xff]
    %v637 = vld [vmem:[%s634 + $0x10] sm:$0x3]
    %v639 = vsel %vm259, %v635, 0
    %v642 = vsel %vm259, %v636, 0
    %v645 = vsel %vm259, %v637, 0
    %647 = vmatprep.subr.mxu0 0.0
    %648 = vmatpush1.msra.mxu0 0.0
    %649 = vmatprep.subr.mxu0 0.0
    %650 = vmatpush1.msra.mxu0 0.0
    %651 = vmatprep.subr.mxu0 0.0
    %652 = vmatpush1.msra.mxu0 0.0
    %653 = vmatprep.subr.mxu0 0.0
    %654 = vmatpush1.msra.mxu0 %v271
    %655 = vmatprep.subr.mxu0 0.0
    %656 = vmatpush1.msra.mxu0 %v254
    %657 = vmatprep.subr.mxu0 0.0
    %658 = vmatpush1.msra.mxu0 %v253
    %659 = vmatprep.subr.mxu0 0.0
    %660 = vmatpush1.msra.mxu0 %v252
    %661 = vmatprep.subr.mxu0 0.0
    %662 = vmatpush1.msra.mxu0 %v251
    %663 = vmatprep.subr.mxu0 0.0
    %664 = vmatpush1.msra.mxu0 %v250
    %665 = vmatprep.subr.mxu0 0.0
    %666 = vmatpush1.msra.mxu0 %v249
    %667 = vmatprep.subr.mxu0 0.0
    %668 = vmatpush1.msra.mxu0 %v248
    %669 = vmatprep.subr.mxu0 0.0
    %670 = vmatpush1.msra.mxu0 %v247
    %671 = vmatprep.subr.mxu0 0.0
    %672 = vmatpush1.msra.mxu0 %v246
    %673 = vmatprep.subr.mxu0 0.0
    %674 = vmatpush1.msra.mxu0 %v245
    %675 = vmatprep.subr.mxu0 0.0
    %676 = vmatpush1.msra.mxu0 %v244
    %677 = vmatprep.subr.mxu0 0.0
    %678 = vmatpush1.msra.mxu0 %v243
    %679 = vmatprep.subr.mxu0 0.0
    %680 = vmatpush2.msra.mxu0 0.0
    %681 = vmatprep.subr.mxu0 0.0
    %682 = vmatpush2.msra.mxu0 0.0
    %683 = vmatprep.subr.mxu0 0.0
    %684 = vmatpush2.msra.mxu0 0.0
    %685 = vmatprep.subr.mxu0 0.0
    %686 = vmatpush2.msra.mxu0 0.0
    %687 = vmatprep.subr.mxu0 0.0
    %688 = vmatpush2.msra.mxu0 0.0
    %689 = vmatprep.subr.mxu0 0.0
    %690 = vmatpush2.msra.mxu0 0.0
    %691 = vmatprep.subr.mxu0 0.0
    %692 = vmatpush2.msra.mxu0 0.0
    %693 = vmatprep.subr.mxu0 0.0
    %694 = vmatpush2.msra.mxu0 0.0
    %695 = vmatprep.subr.mxu0 0.0
    %696 = vmatpush2.msra.mxu0 0.0
    %697 = vmatprep.subr.mxu0 0.0
    %698 = vmatpush2.msra.mxu0 0.0
    %699 = vmatprep.subr.mxu0 0.0
    %700 = vmatpush2.msra.mxu0 0.0
    %701 = vmatprep.subr.mxu0 0.0
    %702 = vmatpush2.msra.mxu0 0.0
    %703 = vmatprep.subr.mxu0 0.0
    %704 = vmatpush2.msra.mxu0 0.0
    %705 = vmatprep.subr.mxu0 0.0
    %706 = vmatpush2.msra.mxu0 0.0
    %707 = vmatprep.subr.mxu0 0.0
    %708 = vmatpush2.msra.mxu0 0.0
    %709 = vmatprep.subr.mxu0 0.0
    %710 = vmatpush2.msra.mxu0 0.0
    %711 = vmatprep.mubr.f32.mxu0 0.0
    %712 = vmatmul.mubr.f32.gmra.mxu0 %v639
    %v713 = vpop.f32.mrf.mxu0
    %v714 = vadd.f32 0.0, %v713
    %v715 = vpop.f32.mrf.mxu0
    %716 = vmatprep.mubr.f32.mxu0 0.0
    %717 = vmatmul.mubr.f32.gmra.mxu0 %v642
    %v718 = vpop.f32.mrf.mxu0
    %v719 = vadd.f32 0.0, %v718
    %v720 = vpop.f32.mrf.mxu0
    %721 = vmatprep.mubr.f32.mxu0 0.0
    %722 = vmatmul.mubr.f32.gmra.mxu0 %v645
    %v723 = vpop.f32.mrf.mxu0
    %v724 = vadd.f32 0.0, %v723
    %v725 = vpop.f32.mrf.mxu0
    %726 = vdwg.mxu0
    %s727 = scalar_lea.vmem %s4, 64
    %v728 = vld [vmem:[%s727] sm:$0xff]
    %v729 = vld [vmem:[%s727 + $0x8] sm:$0xff]
    %v730 = vld [vmem:[%s727 + $0x10] sm:$0xff]
    %v731 = vld [vmem:[%s727 + $0x18] sm:$0xff]
    %v733 = vsel %vm455, %v714, 0
    %v736 = vsel %vm455, %v719, 0
    %v739 = vsel %vm455, %v724, 0
    %741 = vmatprep.subr.mxu0 0.0
    %742 = vmatpush1.msra.mxu0 0.0
    %743 = vmatprep.subr.mxu0 0.0
    %744 = vmatpush1.msra.mxu0 0.0
    %745 = vmatprep.subr.mxu0 0.0
    %746 = vmatpush1.msra.mxu0 0.0
    %747 = vmatprep.subr.mxu0 0.0
    %748 = vmatpush1.msra.mxu0 0.0
    %749 = vmatprep.subr.mxu0 0.0
    %750 = vmatpush1.msra.mxu0 0.0
    %751 = vmatprep.subr.mxu0 0.0
    %752 = vmatpush1.msra.mxu0 0.0
    %753 = vmatprep.subr.mxu0 0.0
    %754 = vmatpush1.msra.mxu0 0.0
    %755 = vmatprep.subr.mxu0 0.0
    %756 = vmatpush1.msra.mxu0 0.0
    %757 = vmatprep.subr.mxu0 0.0
    %758 = vmatpush1.msra.mxu0 0.0
    %759 = vmatprep.subr.mxu0 0.0
    %760 = vmatpush1.msra.mxu0 0.0
    %761 = vmatprep.subr.mxu0 0.0
    %762 = vmatpush1.msra.mxu0 0.0
    %763 = vmatprep.subr.mxu0 0.0
    %764 = vmatpush1.msra.mxu0 0.0
    %765 = vmatprep.subr.mxu0 0.0
    %766 = vmatpush1.msra.mxu0 %v731
    %767 = vmatprep.subr.mxu0 0.0
    %768 = vmatpush1.msra.mxu0 %v730
    %769 = vmatprep.subr.mxu0 0.0
    %770 = vmatpush1.msra.mxu0 %v729
    %771 = vmatprep.subr.mxu0 0.0
    %772 = vmatpush1.msra.mxu0 %v728
    %773 = vmatprep.subr.mxu0 0.0
    %774 = vmatpush2.msra.mxu0 0.0
    %775 = vmatprep.subr.mxu0 0.0
    %776 = vmatpush2.msra.mxu0 0.0
    %777 = vmatprep.subr.mxu0 0.0
    %778 = vmatpush2.msra.mxu0 0.0
    %779 = vmatprep.subr.mxu0 0.0
    %780 = vmatpush2.msra.mxu0 0.0
    %781 = vmatprep.subr.mxu0 0.0
    %782 = vmatpush2.msra.mxu0 0.0
    %783 = vmatprep.subr.mxu0 0.0
    %784 = vmatpush2.msra.mxu0 0.0
    %785 = vmatprep.subr.mxu0 0.0
    %786 = vmatpush2.msra.mxu0 0.0
    %787 = vmatprep.subr.mxu0 0.0
    %788 = vmatpush2.msra.mxu0 0.0
    %789 = vmatprep.subr.mxu0 0.0
    %790 = vmatpush2.msra.mxu0 0.0
    %791 = vmatprep.subr.mxu0 0.0
    %792 = vmatpush2.msra.mxu0 0.0
    %793 = vmatprep.subr.mxu0 0.0
    %794 = vmatpush2.msra.mxu0 0.0
    %795 = vmatprep.subr.mxu0 0.0
    %796 = vmatpush2.msra.mxu0 0.0
    %797 = vmatprep.subr.mxu0 0.0
    %798 = vmatpush2.msra.mxu0 0.0
    %799 = vmatprep.subr.mxu0 0.0
    %800 = vmatpush2.msra.mxu0 0.0
    %801 = vmatprep.subr.mxu0 0.0
    %802 = vmatpush2.msra.mxu0 0.0
    %803 = vmatprep.subr.mxu0 0.0
    %804 = vmatpush2.msra.mxu0 0.0
    %805 = vmatprep.mubr.f32.mxu0 0.0
    %806 = vmatmul.mubr.f32.gmra.mxu0 %v733
    %v807 = vpop.f32.mrf.mxu0
    %v808 = vadd.f32 0.0, %v807
    %v809 = vpop.f32.mrf.mxu0
    %810 = vmatprep.mubr.f32.mxu0 0.0
    %811 = vmatmul.mubr.f32.gmra.mxu0 %v736
    %v812 = vpop.f32.mrf.mxu0
    %v813 = vadd.f32 0.0, %v812
    %v814 = vpop.f32.mrf.mxu0
    %815 = vmatprep.mubr.f32.mxu0 0.0
    %816 = vmatmul.mubr.f32.gmra.mxu0 %v739
    %v817 = vpop.f32.mrf.mxu0
    %v818 = vadd.f32 0.0, %v817
    %v819 = vpop.f32.mrf.mxu0
    %820 = vdwg.mxu0
    %v821 = vadd.f32 %v621, %v808
    %v822 = vadd.f32 %v626, %v813
    %v823 = vadd.f32 %v631, %v818
    %s824 = scalar_lea.vmem %s3, 72
    %v825 = vld [vmem:[%s824] sm:$0xff]
    %v826 = vld [vmem:[%s824 + $0x8] sm:$0xff]
    %v827 = vld [vmem:[%s824 + $0x10] sm:$0x3]
    %v829 = vsel %vm259, %v825, 0
    %v832 = vsel %vm259, %v826, 0
    %v835 = vsel %vm259, %v827, 0
    %837 = vmatprep.subr.mxu0 0.0
    %838 = vmatpush1.msra.mxu0 0.0
    %839 = vmatprep.subr.mxu0 0.0
    %840 = vmatpush1.msra.mxu0 0.0
    %841 = vmatprep.subr.mxu0 0.0
    %842 = vmatpush1.msra.mxu0 0.0
    %843 = vmatprep.subr.mxu0 0.0
    %844 = vmatpush1.msra.mxu0 %v271
    %845 = vmatprep.subr.mxu0 0.0
    %846 = vmatpush1.msra.mxu0 %v254
    %847 = vmatprep.subr.mxu0 0.0
    %848 = vmatpush1.msra.mxu0 %v253
    %849 = vmatprep.subr.mxu0 0.0
    %850 = vmatpush1.msra.mxu0 %v252
    %851 = vmatprep.subr.mxu0 0.0
    %852 = vmatpush1.msra.mxu0 %v251
    %853 = vmatprep.subr.mxu0 0.0
    %854 = vmatpush1.msra.mxu0 %v250
    %855 = vmatprep.subr.mxu0 0.0
    %856 = vmatpush1.msra.mxu0 %v249
    %857 = vmatprep.subr.mxu0 0.0
    %858 = vmatpush1.msra.mxu0 %v248
    %859 = vmatprep.subr.mxu0 0.0
    %860 = vmatpush1.msra.mxu0 %v247
    %861 = vmatprep.subr.mxu0 0.0
    %862 = vmatpush1.msra.mxu0 %v246
    %863 = vmatprep.subr.mxu0 0.0
    %864 = vmatpush1.msra.mxu0 %v245
    %865 = vmatprep.subr.mxu0 0.0
    %866 = vmatpush1.msra.mxu0 %v244
    %867 = vmatprep.subr.mxu0 0.0
    %868 = vmatpush1.msra.mxu0 %v243
    %869 = vmatprep.subr.mxu0 0.0
    %870 = vmatpush2.msra.mxu0 0.0
    %871 = vmatprep.subr.mxu0 0.0
    %872 = vmatpush2.msra.mxu0 0.0
    %873 = vmatprep.subr.mxu0 0.0
    %874 = vmatpush2.msra.mxu0 0.0
    %875 = vmatprep.subr.mxu0 0.0
    %876 = vmatpush2.msra.mxu0 0.0
    %877 = vmatprep.subr.mxu0 0.0
    %878 = vmatpush2.msra.mxu0 0.0
    %879 = vmatprep.subr.mxu0 0.0
    %880 = vmatpush2.msra.mxu0 0.0
    %881 = vmatprep.subr.mxu0 0.0
    %882 = vmatpush2.msra.mxu0 0.0
    %883 = vmatprep.subr.mxu0 0.0
    %884 = vmatpush2.msra.mxu0 0.0
    %885 = vmatprep.subr.mxu0 0.0
    %886 = vmatpush2.msra.mxu0 0.0
    %887 = vmatprep.subr.mxu0 0.0
    %888 = vmatpush2.msra.mxu0 0.0
    %889 = vmatprep.subr.mxu0 0.0
    %890 = vmatpush2.msra.mxu0 0.0
    %891 = vmatprep.subr.mxu0 0.0
    %892 = vmatpush2.msra.mxu0 0.0
    %893 = vmatprep.subr.mxu0 0.0
    %894 = vmatpush2.msra.mxu0 0.0
    %895 = vmatprep.subr.mxu0 0.0
    %896 = vmatpush2.msra.mxu0 0.0
    %897 = vmatprep.subr.mxu0 0.0
    %898 = vmatpush2.msra.mxu0 0.0
    %899 = vmatprep.subr.mxu0 0.0
    %900 = vmatpush2.msra.mxu0 0.0
    %901 = vmatprep.mubr.f32.mxu0 0.0
    %902 = vmatmul.mubr.f32.gmra.mxu0 %v829
    %v903 = vpop.f32.mrf.mxu0
    %v904 = vadd.f32 0.0, %v903
    %v905 = vpop.f32.mrf.mxu0
    %906 = vmatprep.mubr.f32.mxu0 0.0
    %907 = vmatmul.mubr.f32.gmra.mxu0 %v832
    %v908 = vpop.f32.mrf.mxu0
    %v909 = vadd.f32 0.0, %v908
    %v910 = vpop.f32.mrf.mxu0
    %911 = vmatprep.mubr.f32.mxu0 0.0
    %912 = vmatmul.mubr.f32.gmra.mxu0 %v835
    %v913 = vpop.f32.mrf.mxu0
    %v914 = vadd.f32 0.0, %v913
    %v915 = vpop.f32.mrf.mxu0
    %916 = vdwg.mxu0
    %s917 = scalar_lea.vmem %s4, 96
    %v918 = vld [vmem:[%s917] sm:$0xff]
    %v919 = vld [vmem:[%s917 + $0x8] sm:$0xff]
    %v920 = vld [vmem:[%s917 + $0x10] sm:$0xff]
    %v921 = vld [vmem:[%s917 + $0x18] sm:$0xff]
    %v923 = vsel %vm455, %v904, 0
    %v926 = vsel %vm455, %v909, 0
    %v929 = vsel %vm455, %v914, 0
    %931 = vmatprep.subr.mxu0 0.0
    %932 = vmatpush1.msra.mxu0 0.0
    %933 = vmatprep.subr.mxu0 0.0
    %934 = vmatpush1.msra.mxu0 0.0
    %935 = vmatprep.subr.mxu0 0.0
    %936 = vmatpush1.msra.mxu0 0.0
    %937 = vmatprep.subr.mxu0 0.0
    %938 = vmatpush1.msra.mxu0 0.0
    %939 = vmatprep.subr.mxu0 0.0
    %940 = vmatpush1.msra.mxu0 0.0
    %941 = vmatprep.subr.mxu0 0.0
    %942 = vmatpush1.msra.mxu0 0.0
    %943 = vmatprep.subr.mxu0 0.0
    %944 = vmatpush1.msra.mxu0 0.0
    %945 = vmatprep.subr.mxu0 0.0
    %946 = vmatpush1.msra.mxu0 0.0
    %947 = vmatprep.subr.mxu0 0.0
    %948 = vmatpush1.msra.mxu0 0.0
    %949 = vmatprep.subr.mxu0 0.0
    %950 = vmatpush1.msra.mxu0 0.0
    %951 = vmatprep.subr.mxu0 0.0
    %952 = vmatpush1.msra.mxu0 0.0
    %953 = vmatprep.subr.mxu0 0.0
    %954 = vmatpush1.msra.mxu0 0.0
    %955 = vmatprep.subr.mxu0 0.0
    %956 = vmatpush1.msra.mxu0 %v921
    %957 = vmatprep.subr.mxu0 0.0
    %958 = vmatpush1.msra.mxu0 %v920
    %959 = vmatprep.subr.mxu0 0.0
    %960 = vmatpush1.msra.mxu0 %v919
    %961 = vmatprep.subr.mxu0 0.0
    %962 = vmatpush1.msra.mxu0 %v918
    %963 = vmatprep.subr.mxu0 0.0
    %964 = vmatpush2.msra.mxu0 0.0
    %965 = vmatprep.subr.mxu0 0.0
    %966 = vmatpush2.msra.mxu0 0.0
    %967 = vmatprep.subr.mxu0 0.0
    %968 = vmatpush2.msra.mxu0 0.0
    %969 = vmatprep.subr.mxu0 0.0
    %970 = vmatpush2.msra.mxu0 0.0
    %971 = vmatprep.subr.mxu0 0.0
    %972 = vmatpush2.msra.mxu0 0.0
    %973 = vmatprep.subr.mxu0 0.0
    %974 = vmatpush2.msra.mxu0 0.0
    %975 = vmatprep.subr.mxu0 0.0
    %976 = vmatpush2.msra.mxu0 0.0
    %977 = vmatprep.subr.mxu0 0.0
    %978 = vmatpush2.msra.mxu0 0.0
    %979 = vmatprep.subr.mxu0 0.0
    %980 = vmatpush2.msra.mxu0 0.0
    %981 = vmatprep.subr.mxu0 0.0
    %982 = vmatpush2.msra.mxu0 0.0
    %983 = vmatprep.subr.mxu0 0.0
    %984 = vmatpush2.msra.mxu0 0.0
    %985 = vmatprep.subr.mxu0 0.0
    %986 = vmatpush2.msra.mxu0 0.0
    %987 = vmatprep.subr.mxu0 0.0
    %988 = vmatpush2.msra.mxu0 0.0
    %989 = vmatprep.subr.mxu0 0.0
    %990 = vmatpush2.msra.mxu0 0.0
    %991 = vmatprep.subr.mxu0 0.0
    %992 = vmatpush2.msra.mxu0 0.0
    %993 = vmatprep.subr.mxu0 0.0
    %994 = vmatpush2.msra.mxu0 0.0
    %995 = vmatprep.mubr.f32.mxu0 0.0
    %996 = vmatmul.mubr.f32.gmra.mxu0 %v923
    %v997 = vpop.f32.mrf.mxu0
    %v998 = vadd.f32 0.0, %v997
    %v999 = vpop.f32.mrf.mxu0
    %1000 = vmatprep.mubr.f32.mxu0 0.0
    %1001 = vmatmul.mubr.f32.gmra.mxu0 %v926
    %v1002 = vpop.f32.mrf.mxu0
    %v1003 = vadd.f32 0.0, %v1002
    %v1004 = vpop.f32.mrf.mxu0
    %1005 = vmatprep.mubr.f32.mxu0 0.0
    %1006 = vmatmul.mubr.f32.gmra.mxu0 %v929
    %v1007 = vpop.f32.mrf.mxu0
    %v1008 = vadd.f32 0.0, %v1007
    %v1009 = vpop.f32.mrf.mxu0
    %1010 = vdwg.mxu0
    %v1011 = vadd.f32 %v821, %v998
    %v1012 = vadd.f32 %v822, %v1003
    %v1013 = vadd.f32 %v823, %v1008
    %s1014 = scalar_lea.vmem %s3, 96
    %v1015 = vld [vmem:[%s1014] sm:$0xff]
    %v1016 = vld [vmem:[%s1014 + $0x8] sm:$0xff]
    %v1017 = vld [vmem:[%s1014 + $0x10] sm:$0x3]
    %v1019 = vsel %vm259, %v1015, 0
    %v1022 = vsel %vm259, %v1016, 0
    %v1025 = vsel %vm259, %v1017, 0
    %1027 = vmatprep.subr.mxu0 0.0
    %1028 = vmatpush1.msra.mxu0 0.0
    %1029 = vmatprep.subr.mxu0 0.0
    %1030 = vmatpush1.msra.mxu0 0.0
    %1031 = vmatprep.subr.mxu0 0.0
    %1032 = vmatpush1.msra.mxu0 0.0
    %1033 = vmatprep.subr.mxu0 0.0
    %1034 = vmatpush1.msra.mxu0 %v271
    %1035 = vmatprep.subr.mxu0 0.0
    %1036 = vmatpush1.msra.mxu0 %v254
    %1037 = vmatprep.subr.mxu0 0.0
    %1038 = vmatpush1.msra.mxu0 %v253
    %1039 = vmatprep.subr.mxu0 0.0
    %1040 = vmatpush1.msra.mxu0 %v252
    %1041 = vmatprep.subr.mxu0 0.0
    %1042 = vmatpush1.msra.mxu0 %v251
    %1043 = vmatprep.subr.mxu0 0.0
    %1044 = vmatpush1.msra.mxu0 %v250
    %1045 = vmatprep.subr.mxu0 0.0
    %1046 = vmatpush1.msra.mxu0 %v249
    %1047 = vmatprep.subr.mxu0 0.0
    %1048 = vmatpush1.msra.mxu0 %v248
    %1049 = vmatprep.subr.mxu0 0.0
    %1050 = vmatpush1.msra.mxu0 %v247
    %1051 = vmatprep.subr.mxu0 0.0
    %1052 = vmatpush1.msra.mxu0 %v246
    %1053 = vmatprep.subr.mxu0 0.0
    %1054 = vmatpush1.msra.mxu0 %v245
    %1055 = vmatprep.subr.mxu0 0.0
    %1056 = vmatpush1.msra.mxu0 %v244
    %1057 = vmatprep.subr.mxu0 0.0
    %1058 = vmatpush1.msra.mxu0 %v243
    %1059 = vmatprep.subr.mxu0 0.0
    %1060 = vmatpush2.msra.mxu0 0.0
    %1061 = vmatprep.subr.mxu0 0.0
    %1062 = vmatpush2.msra.mxu0 0.0
    %1063 = vmatprep.subr.mxu0 0.0
    %1064 = vmatpush2.msra.mxu0 0.0
    %1065 = vmatprep.subr.mxu0 0.0
    %1066 = vmatpush2.msra.mxu0 0.0
    %1067 = vmatprep.subr.mxu0 0.0
    %1068 = vmatpush2.msra.mxu0 0.0
    %1069 = vmatprep.subr.mxu0 0.0
    %1070 = vmatpush2.msra.mxu0 0.0
    %1071 = vmatprep.subr.mxu0 0.0
    %1072 = vmatpush2.msra.mxu0 0.0
    %1073 = vmatprep.subr.mxu0 0.0
    %1074 = vmatpush2.msra.mxu0 0.0
    %1075 = vmatprep.subr.mxu0 0.0
    %1076 = vmatpush2.msra.mxu0 0.0
    %1077 = vmatprep.subr.mxu0 0.0
    %1078 = vmatpush2.msra.mxu0 0.0
    %1079 = vmatprep.subr.mxu0 0.0
    %1080 = vmatpush2.msra.mxu0 0.0
    %1081 = vmatprep.subr.mxu0 0.0
    %1082 = vmatpush2.msra.mxu0 0.0
    %1083 = vmatprep.subr.mxu0 0.0
    %1084 = vmatpush2.msra.mxu0 0.0
    %1085 = vmatprep.subr.mxu0 0.0
    %1086 = vmatpush2.msra.mxu0 0.0
    %1087 = vmatprep.subr.mxu0 0.0
    %1088 = vmatpush2.msra.mxu0 0.0
    %1089 = vmatprep.subr.mxu0 0.0
    %1090 = vmatpush2.msra.mxu0 0.0
    %1091 = vmatprep.mubr.f32.mxu0 0.0
    %1092 = vmatmul.mubr.f32.gmra.mxu0 %v1019
    %v1093 = vpop.f32.mrf.mxu0
    %v1094 = vadd.f32 0.0, %v1093
    %v1095 = vpop.f32.mrf.mxu0
    %1096 = vmatprep.mubr.f32.mxu0 0.0
    %1097 = vmatmul.mubr.f32.gmra.mxu0 %v1022
    %v1098 = vpop.f32.mrf.mxu0
    %v1099 = vadd.f32 0.0, %v1098
    %v1100 = vpop.f32.mrf.mxu0
    %1101 = vmatprep.mubr.f32.mxu0 0.0
    %1102 = vmatmul.mubr.f32.gmra.mxu0 %v1025
    %v1103 = vpop.f32.mrf.mxu0
    %v1104 = vadd.f32 0.0, %v1103
    %v1105 = vpop.f32.mrf.mxu0
    %1106 = vdwg.mxu0
    %s1107 = scalar_lea.vmem %s4, 128
    %v1108 = vld [vmem:[%s1107] sm:$0xff]
    %v1109 = vld [vmem:[%s1107 + $0x8] sm:$0xff]
    %v1110 = vld [vmem:[%s1107 + $0x10] sm:$0xff]
    %v1111 = vld [vmem:[%s1107 + $0x18] sm:$0xff]
    %v1113 = vsel %vm455, %v1094, 0
    %v1116 = vsel %vm455, %v1099, 0
    %v1119 = vsel %vm455, %v1104, 0
    %1121 = vmatprep.subr.mxu0 0.0
    %1122 = vmatpush1.msra.mxu0 0.0
    %1123 = vmatprep.subr.mxu0 0.0
    %1124 = vmatpush1.msra.mxu0 0.0
    %1125 = vmatprep.subr.mxu0 0.0
    %1126 = vmatpush1.msra.mxu0 0.0
    %1127 = vmatprep.subr.mxu0 0.0
    %1128 = vmatpush1.msra.mxu0 0.0
    %1129 = vmatprep.subr.mxu0 0.0
    %1130 = vmatpush1.msra.mxu0 0.0
    %1131 = vmatprep.subr.mxu0 0.0
    %1132 = vmatpush1.msra.mxu0 0.0
    %1133 = vmatprep.subr.mxu0 0.0
    %1134 = vmatpush1.msra.mxu0 0.0
    %1135 = vmatprep.subr.mxu0 0.0
    %1136 = vmatpush1.msra.mxu0 0.0
    %1137 = vmatprep.subr.mxu0 0.0
    %1138 = vmatpush1.msra.mxu0 0.0
    %1139 = vmatprep.subr.mxu0 0.0
    %1140 = vmatpush1.msra.mxu0 0.0
    %1141 = vmatprep.subr.mxu0 0.0
    %1142 = vmatpush1.msra.mxu0 0.0
    %1143 = vmatprep.subr.mxu0 0.0
    %1144 = vmatpush1.msra.mxu0 0.0
    %1145 = vmatprep.subr.mxu0 0.0
    %1146 = vmatpush1.msra.mxu0 %v1111
    %1147 = vmatprep.subr.mxu0 0.0
    %1148 = vmatpush1.msra.mxu0 %v1110
    %1149 = vmatprep.subr.mxu0 0.0
    %1150 = vmatpush1.msra.mxu0 %v1109
    %1151 = vmatprep.subr.mxu0 0.0
    %1152 = vmatpush1.msra.mxu0 %v1108
    %1153 = vmatprep.subr.mxu0 0.0
    %1154 = vmatpush2.msra.mxu0 0.0
    %1155 = vmatprep.subr.mxu0 0.0
    %1156 = vmatpush2.msra.mxu0 0.0
    %1157 = vmatprep.subr.mxu0 0.0
    %1158 = vmatpush2.msra.mxu0 0.0
    %1159 = vmatprep.subr.mxu0 0.0
    %1160 = vmatpush2.msra.mxu0 0.0
    %1161 = vmatprep.subr.mxu0 0.0
    %1162 = vmatpush2.msra.mxu0 0.0
    %1163 = vmatprep.subr.mxu0 0.0
    %1164 = vmatpush2.msra.mxu0 0.0
    %1165 = vmatprep.subr.mxu0 0.0
    %1166 = vmatpush2.msra.mxu0 0.0
    %1167 = vmatprep.subr.mxu0 0.0
    %1168 = vmatpush2.msra.mxu0 0.0
    %1169 = vmatprep.subr.mxu0 0.0
    %1170 = vmatpush2.msra.mxu0 0.0
    %1171 = vmatprep.subr.mxu0 0.0
    %1172 = vmatpush2.msra.mxu0 0.0
    %1173 = vmatprep.subr.mxu0 0.0
    %1174 = vmatpush2.msra.mxu0 0.0
    %1175 = vmatprep.subr.mxu0 0.0
    %1176 = vmatpush2.msra.mxu0 0.0
    %1177 = vmatprep.subr.mxu0 0.0
    %1178 = vmatpush2.msra.mxu0 0.0
    %1179 = vmatprep.subr.mxu0 0.0
    %1180 = vmatpush2.msra.mxu0 0.0
    %1181 = vmatprep.subr.mxu0 0.0
    %1182 = vmatpush2.msra.mxu0 0.0
    %1183 = vmatprep.subr.mxu0 0.0
    %1184 = vmatpush2.msra.mxu0 0.0
    %1185 = vmatprep.mubr.f32.mxu0 0.0
    %1186 = vmatmul.mubr.f32.gmra.mxu0 %v1113
    %v1187 = vpop.f32.mrf.mxu0
    %v1188 = vadd.f32 0.0, %v1187
    %v1189 = vpop.f32.mrf.mxu0
    %1190 = vmatprep.mubr.f32.mxu0 0.0
    %1191 = vmatmul.mubr.f32.gmra.mxu0 %v1116
    %v1192 = vpop.f32.mrf.mxu0
    %v1193 = vadd.f32 0.0, %v1192
    %v1194 = vpop.f32.mrf.mxu0
    %1195 = vmatprep.mubr.f32.mxu0 0.0
    %1196 = vmatmul.mubr.f32.gmra.mxu0 %v1119
    %v1197 = vpop.f32.mrf.mxu0
    %v1198 = vadd.f32 0.0, %v1197
    %v1199 = vpop.f32.mrf.mxu0
    %1200 = vdwg.mxu0
    %v1201 = vadd.f32 %v1011, %v1188
    %v1202 = vadd.f32 %v1012, %v1193
    %v1203 = vadd.f32 %v1013, %v1198
    %s1204 = scalar_lea.vmem %s3, 120
    %v1205 = vld [vmem:[%s1204] sm:$0xff]
    %v1206 = vld [vmem:[%s1204 + $0x8] sm:$0xff]
    %v1207 = vld [vmem:[%s1204 + $0x10] sm:$0x3]
    %v1209 = vsel %vm259, %v1205, 0
    %v1212 = vsel %vm259, %v1206, 0
    %v1215 = vsel %vm259, %v1207, 0
    %1217 = vmatprep.subr.mxu0 0.0
    %1218 = vmatpush1.msra.mxu0 0.0
    %1219 = vmatprep.subr.mxu0 0.0
    %1220 = vmatpush1.msra.mxu0 0.0
    %1221 = vmatprep.subr.mxu0 0.0
    %1222 = vmatpush1.msra.mxu0 0.0
    %1223 = vmatprep.subr.mxu0 0.0
    %1224 = vmatpush1.msra.mxu0 %v271
    %1225 = vmatprep.subr.mxu0 0.0
    %1226 = vmatpush1.msra.mxu0 %v254
    %1227 = vmatprep.subr.mxu0 0.0
    %1228 = vmatpush1.msra.mxu0 %v253
    %1229 = vmatprep.subr.mxu0 0.0
    %1230 = vmatpush1.msra.mxu0 %v252
    %1231 = vmatprep.subr.mxu0 0.0
    %1232 = vmatpush1.msra.mxu0 %v251
    %1233 = vmatprep.subr.mxu0 0.0
    %1234 = vmatpush1.msra.mxu0 %v250
    %1235 = vmatprep.subr.mxu0 0.0
    %1236 = vmatpush1.msra.mxu0 %v249
    %1237 = vmatprep.subr.mxu0 0.0
    %1238 = vmatpush1.msra.mxu0 %v248
    %1239 = vmatprep.subr.mxu0 0.0
    %1240 = vmatpush1.msra.mxu0 %v247
    %1241 = vmatprep.subr.mxu0 0.0
    %1242 = vmatpush1.msra.mxu0 %v246
    %1243 = vmatprep.subr.mxu0 0.0
    %1244 = vmatpush1.msra.mxu0 %v245
    %1245 = vmatprep.subr.mxu0 0.0
    %1246 = vmatpush1.msra.mxu0 %v244
    %1247 = vmatprep.subr.mxu0 0.0
    %1248 = vmatpush1.msra.mxu0 %v243
    %1249 = vmatprep.subr.mxu0 0.0
    %1250 = vmatpush2.msra.mxu0 0.0
    %1251 = vmatprep.subr.mxu0 0.0
    %1252 = vmatpush2.msra.mxu0 0.0
    %1253 = vmatprep.subr.mxu0 0.0
    %1254 = vmatpush2.msra.mxu0 0.0
    %1255 = vmatprep.subr.mxu0 0.0
    %1256 = vmatpush2.msra.mxu0 0.0
    %1257 = vmatprep.subr.mxu0 0.0
    %1258 = vmatpush2.msra.mxu0 0.0
    %1259 = vmatprep.subr.mxu0 0.0
    %1260 = vmatpush2.msra.mxu0 0.0
    %1261 = vmatprep.subr.mxu0 0.0
    %1262 = vmatpush2.msra.mxu0 0.0
    %1263 = vmatprep.subr.mxu0 0.0
    %1264 = vmatpush2.msra.mxu0 0.0
    %1265 = vmatprep.subr.mxu0 0.0
    %1266 = vmatpush2.msra.mxu0 0.0
    %1267 = vmatprep.subr.mxu0 0.0
    %1268 = vmatpush2.msra.mxu0 0.0
    %1269 = vmatprep.subr.mxu0 0.0
    %1270 = vmatpush2.msra.mxu0 0.0
    %1271 = vmatprep.subr.mxu0 0.0
    %1272 = vmatpush2.msra.mxu0 0.0
    %1273 = vmatprep.subr.mxu0 0.0
    %1274 = vmatpush2.msra.mxu0 0.0
    %1275 = vmatprep.subr.mxu0 0.0
    %1276 = vmatpush2.msra.mxu0 0.0
    %1277 = vmatprep.subr.mxu0 0.0
    %1278 = vmatpush2.msra.mxu0 0.0
    %1279 = vmatprep.subr.mxu0 0.0
    %1280 = vmatpush2.msra.mxu0 0.0
    %1281 = vmatprep.mubr.f32.mxu0 0.0
    %1282 = vmatmul.mubr.f32.gmra.mxu0 %v1209
    %v1283 = vpop.f32.mrf.mxu0
    %v1284 = vadd.f32 0.0, %v1283
    %v1285 = vpop.f32.mrf.mxu0
    %1286 = vmatprep.mubr.f32.mxu0 0.0
    %1287 = vmatmul.mubr.f32.gmra.mxu0 %v1212
    %v1288 = vpop.f32.mrf.mxu0
    %v1289 = vadd.f32 0.0, %v1288
    %v1290 = vpop.f32.mrf.mxu0
    %1291 = vmatprep.mubr.f32.mxu0 0.0
    %1292 = vmatmul.mubr.f32.gmra.mxu0 %v1215
    %v1293 = vpop.f32.mrf.mxu0
    %v1294 = vadd.f32 0.0, %v1293
    %v1295 = vpop.f32.mrf.mxu0
    %1296 = vdwg.mxu0
    %s1297 = scalar_lea.vmem %s4, 160
    %v1298 = vld [vmem:[%s1297] sm:$0xff]
    %v1299 = vld [vmem:[%s1297 + $0x8] sm:$0xff]
    %v1300 = vld [vmem:[%s1297 + $0x10] sm:$0xff]
    %v1301 = vld [vmem:[%s1297 + $0x18] sm:$0xff]
    %v1303 = vsel %vm455, %v1284, 0
    %v1306 = vsel %vm455, %v1289, 0
    %v1309 = vsel %vm455, %v1294, 0
    %1311 = vmatprep.subr.mxu0 0.0
    %1312 = vmatpush1.msra.mxu0 0.0
    %1313 = vmatprep.subr.mxu0 0.0
    %1314 = vmatpush1.msra.mxu0 0.0
    %1315 = vmatprep.subr.mxu0 0.0
    %1316 = vmatpush1.msra.mxu0 0.0
    %1317 = vmatprep.subr.mxu0 0.0
    %1318 = vmatpush1.msra.mxu0 0.0
    %1319 = vmatprep.subr.mxu0 0.0
    %1320 = vmatpush1.msra.mxu0 0.0
    %1321 = vmatprep.subr.mxu0 0.0
    %1322 = vmatpush1.msra.mxu0 0.0
    %1323 = vmatprep.subr.mxu0 0.0
    %1324 = vmatpush1.msra.mxu0 0.0
    %1325 = vmatprep.subr.mxu0 0.0
    %1326 = vmatpush1.msra.mxu0 0.0
    %1327 = vmatprep.subr.mxu0 0.0
    %1328 = vmatpush1.msra.mxu0 0.0
    %1329 = vmatprep.subr.mxu0 0.0
    %1330 = vmatpush1.msra.mxu0 0.0
    %1331 = vmatprep.subr.mxu0 0.0
    %1332 = vmatpush1.msra.mxu0 0.0
    %1333 = vmatprep.subr.mxu0 0.0
    %1334 = vmatpush1.msra.mxu0 0.0
    %1335 = vmatprep.subr.mxu0 0.0
    %1336 = vmatpush1.msra.mxu0 %v1301
    %1337 = vmatprep.subr.mxu0 0.0
    %1338 = vmatpush1.msra.mxu0 %v1300
    %1339 = vmatprep.subr.mxu0 0.0
    %1340 = vmatpush1.msra.mxu0 %v1299
    %1341 = vmatprep.subr.mxu0 0.0
    %1342 = vmatpush1.msra.mxu0 %v1298
    %1343 = vmatprep.subr.mxu0 0.0
    %1344 = vmatpush2.msra.mxu0 0.0
    %1345 = vmatprep.subr.mxu0 0.0
    %1346 = vmatpush2.msra.mxu0 0.0
    %1347 = vmatprep.subr.mxu0 0.0
    %1348 = vmatpush2.msra.mxu0 0.0
    %1349 = vmatprep.subr.mxu0 0.0
    %1350 = vmatpush2.msra.mxu0 0.0
    %1351 = vmatprep.subr.mxu0 0.0
    %1352 = vmatpush2.msra.mxu0 0.0
    %1353 = vmatprep.subr.mxu0 0.0
    %1354 = vmatpush2.msra.mxu0 0.0
    %1355 = vmatprep.subr.mxu0 0.0
    %1356 = vmatpush2.msra.mxu0 0.0
    %1357 = vmatprep.subr.mxu0 0.0
    %1358 = vmatpush2.msra.mxu0 0.0
    %1359 = vmatprep.subr.mxu0 0.0
    %1360 = vmatpush2.msra.mxu0 0.0
    %1361 = vmatprep.subr.mxu0 0.0
    %1362 = vmatpush2.msra.mxu0 0.0
    %1363 = vmatprep.subr.mxu0 0.0
    %1364 = vmatpush2.msra.mxu0 0.0
    %1365 = vmatprep.subr.mxu0 0.0
    %1366 = vmatpush2.msra.mxu0 0.0
    %1367 = vmatprep.subr.mxu0 0.0
    %1368 = vmatpush2.msra.mxu0 0.0
    %1369 = vmatprep.subr.mxu0 0.0
    %1370 = vmatpush2.msra.mxu0 0.0
    %1371 = vmatprep.subr.mxu0 0.0
    %1372 = vmatpush2.msra.mxu0 0.0
    %1373 = vmatprep.subr.mxu0 0.0
    %1374 = vmatpush2.msra.mxu0 0.0
    %1375 = vmatprep.mubr.f32.mxu0 0.0
    %1376 = vmatmul.mubr.f32.gmra.mxu0 %v1303
    %v1377 = vpop.f32.mrf.mxu0
    %v1378 = vadd.f32 0.0, %v1377
    %v1379 = vpop.f32.mrf.mxu0
    %1380 = vmatprep.mubr.f32.mxu0 0.0
    %1381 = vmatmul.mubr.f32.gmra.mxu0 %v1306
    %v1382 = vpop.f32.mrf.mxu0
    %v1383 = vadd.f32 0.0, %v1382
    %v1384 = vpop.f32.mrf.mxu0
    %1385 = vmatprep.mubr.f32.mxu0 0.0
    %1386 = vmatmul.mubr.f32.gmra.mxu0 %v1309
    %v1387 = vpop.f32.mrf.mxu0
    %v1388 = vadd.f32 0.0, %v1387
    %v1389 = vpop.f32.mrf.mxu0
    %1390 = vdwg.mxu0
    %v1391 = vadd.f32 %v1201, %v1378
    %v1392 = vadd.f32 %v1202, %v1383
    %v1393 = vadd.f32 %v1203, %v1388
    %s1394 = scalar_lea.vmem %s3, 144
    %v1395 = vld [vmem:[%s1394] sm:$0xff]
    %v1396 = vld [vmem:[%s1394 + $0x8] sm:$0xff]
    %v1397 = vld [vmem:[%s1394 + $0x10] sm:$0x3]
    %v1399 = vsel %vm259, %v1395, 0
    %v1402 = vsel %vm259, %v1396, 0
    %v1405 = vsel %vm259, %v1397, 0
    %1407 = vmatprep.subr.mxu0 0.0
    %1408 = vmatpush1.msra.mxu0 0.0
    %1409 = vmatprep.subr.mxu0 0.0
    %1410 = vmatpush1.msra.mxu0 0.0
    %1411 = vmatprep.subr.mxu0 0.0
    %1412 = vmatpush1.msra.mxu0 0.0
    %1413 = vmatprep.subr.mxu0 0.0
    %1414 = vmatpush1.msra.mxu0 %v271
    %1415 = vmatprep.subr.mxu0 0.0
    %1416 = vmatpush1.msra.mxu0 %v254
    %1417 = vmatprep.subr.mxu0 0.0
    %1418 = vmatpush1.msra.mxu0 %v253
    %1419 = vmatprep.subr.mxu0 0.0
    %1420 = vmatpush1.msra.mxu0 %v252
    %1421 = vmatprep.subr.mxu0 0.0
    %1422 = vmatpush1.msra.mxu0 %v251
    %1423 = vmatprep.subr.mxu0 0.0
    %1424 = vmatpush1.msra.mxu0 %v250
    %1425 = vmatprep.subr.mxu0 0.0
    %1426 = vmatpush1.msra.mxu0 %v249
    %1427 = vmatprep.subr.mxu0 0.0
    %1428 = vmatpush1.msra.mxu0 %v248
    %1429 = vmatprep.subr.mxu0 0.0
    %1430 = vmatpush1.msra.mxu0 %v247
    %1431 = vmatprep.subr.mxu0 0.0
    %1432 = vmatpush1.msra.mxu0 %v246
    %1433 = vmatprep.subr.mxu0 0.0
    %1434 = vmatpush1.msra.mxu0 %v245
    %1435 = vmatprep.subr.mxu0 0.0
    %1436 = vmatpush1.msra.mxu0 %v244
    %1437 = vmatprep.subr.mxu0 0.0
    %1438 = vmatpush1.msra.mxu0 %v243
    %1439 = vmatprep.subr.mxu0 0.0
    %1440 = vmatpush2.msra.mxu0 0.0
    %1441 = vmatprep.subr.mxu0 0.0
    %1442 = vmatpush2.msra.mxu0 0.0
    %1443 = vmatprep.subr.mxu0 0.0
    %1444 = vmatpush2.msra.mxu0 0.0
    %1445 = vmatprep.subr.mxu0 0.0
    %1446 = vmatpush2.msra.mxu0 0.0
    %1447 = vmatprep.subr.mxu0 0.0
    %1448 = vmatpush2.msra.mxu0 0.0
    %1449 = vmatprep.subr.mxu0 0.0
    %1450 = vmatpush2.msra.mxu0 0.0
    %1451 = vmatprep.subr.mxu0 0.0
    %1452 = vmatpush2.msra.mxu0 0.0
    %1453 = vmatprep.subr.mxu0 0.0
    %1454 = vmatpush2.msra.mxu0 0.0
    %1455 = vmatprep.subr.mxu0 0.0
    %1456 = vmatpush2.msra.mxu0 0.0
    %1457 = vmatprep.subr.mxu0 0.0
    %1458 = vmatpush2.msra.mxu0 0.0
    %1459 = vmatprep.subr.mxu0 0.0
    %1460 = vmatpush2.msra.mxu0 0.0
    %1461 = vmatprep.subr.mxu0 0.0
    %1462 = vmatpush2.msra.mxu0 0.0
    %1463 = vmatprep.subr.mxu0 0.0
    %1464 = vmatpush2.msra.mxu0 0.0
    %1465 = vmatprep.subr.mxu0 0.0
    %1466 = vmatpush2.msra.mxu0 0.0
    %1467 = vmatprep.subr.mxu0 0.0
    %1468 = vmatpush2.msra.mxu0 0.0
    %1469 = vmatprep.subr.mxu0 0.0
    %1470 = vmatpush2.msra.mxu0 0.0
    %1471 = vmatprep.mubr.f32.mxu0 0.0
    %1472 = vmatmul.mubr.f32.gmra.mxu0 %v1399
    %v1473 = vpop.f32.mrf.mxu0
    %v1474 = vadd.f32 0.0, %v1473
    %v1475 = vpop.f32.mrf.mxu0
    %1476 = vmatprep.mubr.f32.mxu0 0.0
    %1477 = vmatmul.mubr.f32.gmra.mxu0 %v1402
    %v1478 = vpop.f32.mrf.mxu0
    %v1479 = vadd.f32 0.0, %v1478
    %v1480 = vpop.f32.mrf.mxu0
    %1481 = vmatprep.mubr.f32.mxu0 0.0
    %1482 = vmatmul.mubr.f32.gmra.mxu0 %v1405
    %v1483 = vpop.f32.mrf.mxu0
    %v1484 = vadd.f32 0.0, %v1483
    %v1485 = vpop.f32.mrf.mxu0
    %1486 = vdwg.mxu0
    %s1487 = scalar_lea.vmem %s4, 192
    %v1488 = vld [vmem:[%s1487] sm:$0xff]
    %v1489 = vld [vmem:[%s1487 + $0x8] sm:$0xff]
    %v1490 = vld [vmem:[%s1487 + $0x10] sm:$0xff]
    %v1491 = vld [vmem:[%s1487 + $0x18] sm:$0xff]
    %v1493 = vsel %vm455, %v1474, 0
    %v1496 = vsel %vm455, %v1479, 0
    %v1499 = vsel %vm455, %v1484, 0
    %1501 = vmatprep.subr.mxu0 0.0
    %1502 = vmatpush1.msra.mxu0 0.0
    %1503 = vmatprep.subr.mxu0 0.0
    %1504 = vmatpush1.msra.mxu0 0.0
    %1505 = vmatprep.subr.mxu0 0.0
    %1506 = vmatpush1.msra.mxu0 0.0
    %1507 = vmatprep.subr.mxu0 0.0
    %1508 = vmatpush1.msra.mxu0 0.0
    %1509 = vmatprep.subr.mxu0 0.0
    %1510 = vmatpush1.msra.mxu0 0.0
    %1511 = vmatprep.subr.mxu0 0.0
    %1512 = vmatpush1.msra.mxu0 0.0
    %1513 = vmatprep.subr.mxu0 0.0
    %1514 = vmatpush1.msra.mxu0 0.0
    %1515 = vmatprep.subr.mxu0 0.0
    %1516 = vmatpush1.msra.mxu0 0.0
    %1517 = vmatprep.subr.mxu0 0.0
    %1518 = vmatpush1.msra.mxu0 0.0
    %1519 = vmatprep.subr.mxu0 0.0
    %1520 = vmatpush1.msra.mxu0 0.0
    %1521 = vmatprep.subr.mxu0 0.0
    %1522 = vmatpush1.msra.mxu0 0.0
    %1523 = vmatprep.subr.mxu0 0.0
    %1524 = vmatpush1.msra.mxu0 0.0
    %1525 = vmatprep.subr.mxu0 0.0
    %1526 = vmatpush1.msra.mxu0 %v1491
    %1527 = vmatprep.subr.mxu0 0.0
    %1528 = vmatpush1.msra.mxu0 %v1490
    %1529 = vmatprep.subr.mxu0 0.0
    %1530 = vmatpush1.msra.mxu0 %v1489
    %1531 = vmatprep.subr.mxu0 0.0
    %1532 = vmatpush1.msra.mxu0 %v1488
    %1533 = vmatprep.subr.mxu0 0.0
    %1534 = vmatpush2.msra.mxu0 0.0
    %1535 = vmatprep.subr.mxu0 0.0
    %1536 = vmatpush2.msra.mxu0 0.0
    %1537 = vmatprep.subr.mxu0 0.0
    %1538 = vmatpush2.msra.mxu0 0.0
    %1539 = vmatprep.subr.mxu0 0.0
    %1540 = vmatpush2.msra.mxu0 0.0
    %1541 = vmatprep.subr.mxu0 0.0
    %1542 = vmatpush2.msra.mxu0 0.0
    %1543 = vmatprep.subr.mxu0 0.0
    %1544 = vmatpush2.msra.mxu0 0.0
    %1545 = vmatprep.subr.mxu0 0.0
    %1546 = vmatpush2.msra.mxu0 0.0
    %1547 = vmatprep.subr.mxu0 0.0
    %1548 = vmatpush2.msra.mxu0 0.0
    %1549 = vmatprep.subr.mxu0 0.0
    %1550 = vmatpush2.msra.mxu0 0.0
    %1551 = vmatprep.subr.mxu0 0.0
    %1552 = vmatpush2.msra.mxu0 0.0
    %1553 = vmatprep.subr.mxu0 0.0
    %1554 = vmatpush2.msra.mxu0 0.0
    %1555 = vmatprep.subr.mxu0 0.0
    %1556 = vmatpush2.msra.mxu0 0.0
    %1557 = vmatprep.subr.mxu0 0.0
    %1558 = vmatpush2.msra.mxu0 0.0
    %1559 = vmatprep.subr.mxu0 0.0
    %1560 = vmatpush2.msra.mxu0 0.0
    %1561 = vmatprep.subr.mxu0 0.0
    %1562 = vmatpush2.msra.mxu0 0.0
    %1563 = vmatprep.subr.mxu0 0.0
    %1564 = vmatpush2.msra.mxu0 0.0
    %1565 = vmatprep.mubr.f32.mxu0 0.0
    %1566 = vmatmul.mubr.f32.gmra.mxu0 %v1493
    %v1567 = vpop.f32.mrf.mxu0
    %v1568 = vadd.f32 0.0, %v1567
    %v1569 = vpop.f32.mrf.mxu0
    %1570 = vmatprep.mubr.f32.mxu0 0.0
    %1571 = vmatmul.mubr.f32.gmra.mxu0 %v1496
    %v1572 = vpop.f32.mrf.mxu0
    %v1573 = vadd.f32 0.0, %v1572
    %v1574 = vpop.f32.mrf.mxu0
    %1575 = vmatprep.mubr.f32.mxu0 0.0
    %1576 = vmatmul.mubr.f32.gmra.mxu0 %v1499
    %v1577 = vpop.f32.mrf.mxu0
    %v1578 = vadd.f32 0.0, %v1577
    %v1579 = vpop.f32.mrf.mxu0
    %1580 = vdwg.mxu0
    %v1581 = vadd.f32 %v1391, %v1568
    %v1582 = vadd.f32 %v1392, %v1573
    %v1583 = vadd.f32 %v1393, %v1578
    %s1584 = scalar_lea.vmem %s3, 168
    %v1585 = vld [vmem:[%s1584] sm:$0xff]
    %v1586 = vld [vmem:[%s1584 + $0x8] sm:$0xff]
    %v1587 = vld [vmem:[%s1584 + $0x10] sm:$0x3]
    %v1589 = vsel %vm259, %v1585, 0
    %v1592 = vsel %vm259, %v1586, 0
    %v1595 = vsel %vm259, %v1587, 0
    %1597 = vmatprep.subr.mxu0 0.0
    %1598 = vmatpush1.msra.mxu0 0.0
    %1599 = vmatprep.subr.mxu0 0.0
    %1600 = vmatpush1.msra.mxu0 0.0
    %1601 = vmatprep.subr.mxu0 0.0
    %1602 = vmatpush1.msra.mxu0 0.0
    %1603 = vmatprep.subr.mxu0 0.0
    %1604 = vmatpush1.msra.mxu0 %v271
    %1605 = vmatprep.subr.mxu0 0.0
    %1606 = vmatpush1.msra.mxu0 %v254
    %1607 = vmatprep.subr.mxu0 0.0
    %1608 = vmatpush1.msra.mxu0 %v253
    %1609 = vmatprep.subr.mxu0 0.0
    %1610 = vmatpush1.msra.mxu0 %v252
    %1611 = vmatprep.subr.mxu0 0.0
    %1612 = vmatpush1.msra.mxu0 %v251
    %1613 = vmatprep.subr.mxu0 0.0
    %1614 = vmatpush1.msra.mxu0 %v250
    %1615 = vmatprep.subr.mxu0 0.0
    %1616 = vmatpush1.msra.mxu0 %v249
    %1617 = vmatprep.subr.mxu0 0.0
    %1618 = vmatpush1.msra.mxu0 %v248
    %1619 = vmatprep.subr.mxu0 0.0
    %1620 = vmatpush1.msra.mxu0 %v247
    %1621 = vmatprep.subr.mxu0 0.0
    %1622 = vmatpush1.msra.mxu0 %v246
    %1623 = vmatprep.subr.mxu0 0.0
    %1624 = vmatpush1.msra.mxu0 %v245
    %1625 = vmatprep.subr.mxu0 0.0
    %1626 = vmatpush1.msra.mxu0 %v244
    %1627 = vmatprep.subr.mxu0 0.0
    %1628 = vmatpush1.msra.mxu0 %v243
    %1629 = vmatprep.subr.mxu0 0.0
    %1630 = vmatpush2.msra.mxu0 0.0
    %1631 = vmatprep.subr.mxu0 0.0
    %1632 = vmatpush2.msra.mxu0 0.0
    %1633 = vmatprep.subr.mxu0 0.0
    %1634 = vmatpush2.msra.mxu0 0.0
    %1635 = vmatprep.subr.mxu0 0.0
    %1636 = vmatpush2.msra.mxu0 0.0
    %1637 = vmatprep.subr.mxu0 0.0
    %1638 = vmatpush2.msra.mxu0 0.0
    %1639 = vmatprep.subr.mxu0 0.0
    %1640 = vmatpush2.msra.mxu0 0.0
    %1641 = vmatprep.subr.mxu0 0.0
    %1642 = vmatpush2.msra.mxu0 0.0
    %1643 = vmatprep.subr.mxu0 0.0
    %1644 = vmatpush2.msra.mxu0 0.0
    %1645 = vmatprep.subr.mxu0 0.0
    %1646 = vmatpush2.msra.mxu0 0.0
    %1647 = vmatprep.subr.mxu0 0.0
    %1648 = vmatpush2.msra.mxu0 0.0
    %1649 = vmatprep.subr.mxu0 0.0
    %1650 = vmatpush2.msra.mxu0 0.0
    %1651 = vmatprep.subr.mxu0 0.0
    %1652 = vmatpush2.msra.mxu0 0.0
    %1653 = vmatprep.subr.mxu0 0.0
    %1654 = vmatpush2.msra.mxu0 0.0
    %1655 = vmatprep.subr.mxu0 0.0
    %1656 = vmatpush2.msra.mxu0 0.0
    %1657 = vmatprep.subr.mxu0 0.0
    %1658 = vmatpush2.msra.mxu0 0.0
    %1659 = vmatprep.subr.mxu0 0.0
    %1660 = vmatpush2.msra.mxu0 0.0
    %1661 = vmatprep.mubr.f32.mxu0 0.0
    %1662 = vmatmul.mubr.f32.gmra.mxu0 %v1589
    %v1663 = vpop.f32.mrf.mxu0
    %v1664 = vadd.f32 0.0, %v1663
    %v1665 = vpop.f32.mrf.mxu0
    %1666 = vmatprep.mubr.f32.mxu0 0.0
    %1667 = vmatmul.mubr.f32.gmra.mxu0 %v1592
    %v1668 = vpop.f32.mrf.mxu0
    %v1669 = vadd.f32 0.0, %v1668
    %v1670 = vpop.f32.mrf.mxu0
    %1671 = vmatprep.mubr.f32.mxu0 0.0
    %1672 = vmatmul.mubr.f32.gmra.mxu0 %v1595
    %v1673 = vpop.f32.mrf.mxu0
    %v1674 = vadd.f32 0.0, %v1673
    %v1675 = vpop.f32.mrf.mxu0
    %1676 = vdwg.mxu0
    %s1677 = scalar_lea.vmem %s4, 224
    %v1678 = vld [vmem:[%s1677] sm:$0xff]
    %v1679 = vld [vmem:[%s1677 + $0x8] sm:$0xff]
    %v1680 = vld [vmem:[%s1677 + $0x10] sm:$0xff]
    %v1681 = vld [vmem:[%s1677 + $0x18] sm:$0xff]
    %v1683 = vsel %vm455, %v1664, 0
    %v1686 = vsel %vm455, %v1669, 0
    %v1689 = vsel %vm455, %v1674, 0
    %1691 = vmatprep.subr.mxu0 0.0
    %1692 = vmatpush1.msra.mxu0 0.0
    %1693 = vmatprep.subr.mxu0 0.0
    %1694 = vmatpush1.msra.mxu0 0.0
    %1695 = vmatprep.subr.mxu0 0.0
    %1696 = vmatpush1.msra.mxu0 0.0
    %1697 = vmatprep.subr.mxu0 0.0
    %1698 = vmatpush1.msra.mxu0 0.0
    %1699 = vmatprep.subr.mxu0 0.0
    %1700 = vmatpush1.msra.mxu0 0.0
    %1701 = vmatprep.subr.mxu0 0.0
    %1702 = vmatpush1.msra.mxu0 0.0
    %1703 = vmatprep.subr.mxu0 0.0
    %1704 = vmatpush1.msra.mxu0 0.0
    %1705 = vmatprep.subr.mxu0 0.0
    %1706 = vmatpush1.msra.mxu0 0.0
    %1707 = vmatprep.subr.mxu0 0.0
    %1708 = vmatpush1.msra.mxu0 0.0
    %1709 = vmatprep.subr.mxu0 0.0
    %1710 = vmatpush1.msra.mxu0 0.0
    %1711 = vmatprep.subr.mxu0 0.0
    %1712 = vmatpush1.msra.mxu0 0.0
    %1713 = vmatprep.subr.mxu0 0.0
    %1714 = vmatpush1.msra.mxu0 0.0
    %1715 = vmatprep.subr.mxu0 0.0
    %1716 = vmatpush1.msra.mxu0 %v1681
    %1717 = vmatprep.subr.mxu0 0.0
    %1718 = vmatpush1.msra.mxu0 %v1680
    %1719 = vmatprep.subr.mxu0 0.0
    %1720 = vmatpush1.msra.mxu0 %v1679
    %1721 = vmatprep.subr.mxu0 0.0
    %1722 = vmatpush1.msra.mxu0 %v1678
    %1723 = vmatprep.subr.mxu0 0.0
    %1724 = vmatpush2.msra.mxu0 0.0
    %1725 = vmatprep.subr.mxu0 0.0
    %1726 = vmatpush2.msra.mxu0 0.0
    %1727 = vmatprep.subr.mxu0 0.0
    %1728 = vmatpush2.msra.mxu0 0.0
    %1729 = vmatprep.subr.mxu0 0.0
    %1730 = vmatpush2.msra.mxu0 0.0
    %1731 = vmatprep.subr.mxu0 0.0
    %1732 = vmatpush2.msra.mxu0 0.0
    %1733 = vmatprep.subr.mxu0 0.0
    %1734 = vmatpush2.msra.mxu0 0.0
    %1735 = vmatprep.subr.mxu0 0.0
    %1736 = vmatpush2.msra.mxu0 0.0
    %1737 = vmatprep.subr.mxu0 0.0
    %1738 = vmatpush2.msra.mxu0 0.0
    %1739 = vmatprep.subr.mxu0 0.0
    %1740 = vmatpush2.msra.mxu0 0.0
    %1741 = vmatprep.subr.mxu0 0.0
    %1742 = vmatpush2.msra.mxu0 0.0
    %1743 = vmatprep.subr.mxu0 0.0
    %1744 = vmatpush2.msra.mxu0 0.0
    %1745 = vmatprep.subr.mxu0 0.0
    %1746 = vmatpush2.msra.mxu0 0.0
    %1747 = vmatprep.subr.mxu0 0.0
    %1748 = vmatpush2.msra.mxu0 0.0
    %1749 = vmatprep.subr.mxu0 0.0
    %1750 = vmatpush2.msra.mxu0 0.0
    %1751 = vmatprep.subr.mxu0 0.0
    %1752 = vmatpush2.msra.mxu0 0.0
    %1753 = vmatprep.subr.mxu0 0.0
    %1754 = vmatpush2.msra.mxu0 0.0
    %1755 = vmatprep.mubr.f32.mxu0 0.0
    %1756 = vmatmul.mubr.f32.gmra.mxu0 %v1683
    %v1757 = vpop.f32.mrf.mxu0
    %v1758 = vadd.f32 0.0, %v1757
    %v1759 = vpop.f32.mrf.mxu0
    %1760 = vmatprep.mubr.f32.mxu0 0.0
    %1761 = vmatmul.mubr.f32.gmra.mxu0 %v1686
    %v1762 = vpop.f32.mrf.mxu0
    %v1763 = vadd.f32 0.0, %v1762
    %v1764 = vpop.f32.mrf.mxu0
    %1765 = vmatprep.mubr.f32.mxu0 0.0
    %1766 = vmatmul.mubr.f32.gmra.mxu0 %v1689
    %v1767 = vpop.f32.mrf.mxu0
    %v1768 = vadd.f32 0.0, %v1767
    %v1769 = vpop.f32.mrf.mxu0
    %1770 = vdwg.mxu0
    %v1771 = vadd.f32 %v1581, %v1758
    %v1772 = vadd.f32 %v1582, %v1763
    %v1773 = vadd.f32 %v1583, %v1768
    %s1774 = scalar_lea.vmem %s3, 192
    %v1775 = vld [vmem:[%s1774] sm:$0xff]
    %v1776 = vld [vmem:[%s1774 + $0x8] sm:$0xff]
    %v1777 = vld [vmem:[%s1774 + $0x10] sm:$0x3]
    %v1779 = vsel %vm259, %v1775, 0
    %v1782 = vsel %vm259, %v1776, 0
    %v1785 = vsel %vm259, %v1777, 0
    %1787 = vmatprep.subr.mxu0 0.0
    %1788 = vmatpush1.msra.mxu0 0.0
    %1789 = vmatprep.subr.mxu0 0.0
    %1790 = vmatpush1.msra.mxu0 0.0
    %1791 = vmatprep.subr.mxu0 0.0
    %1792 = vmatpush1.msra.mxu0 0.0
    %1793 = vmatprep.subr.mxu0 0.0
    %1794 = vmatpush1.msra.mxu0 %v271
    %1795 = vmatprep.subr.mxu0 0.0
    %1796 = vmatpush1.msra.mxu0 %v254
    %1797 = vmatprep.subr.mxu0 0.0
    %1798 = vmatpush1.msra.mxu0 %v253
    %1799 = vmatprep.subr.mxu0 0.0
    %1800 = vmatpush1.msra.mxu0 %v252
    %1801 = vmatprep.subr.mxu0 0.0
    %1802 = vmatpush1.msra.mxu0 %v251
    %1803 = vmatprep.subr.mxu0 0.0
    %1804 = vmatpush1.msra.mxu0 %v250
    %1805 = vmatprep.subr.mxu0 0.0
    %1806 = vmatpush1.msra.mxu0 %v249
    %1807 = vmatprep.subr.mxu0 0.0
    %1808 = vmatpush1.msra.mxu0 %v248
    %1809 = vmatprep.subr.mxu0 0.0
    %1810 = vmatpush1.msra.mxu0 %v247
    %1811 = vmatprep.subr.mxu0 0.0
    %1812 = vmatpush1.msra.mxu0 %v246
    %1813 = vmatprep.subr.mxu0 0.0
    %1814 = vmatpush1.msra.mxu0 %v245
    %1815 = vmatprep.subr.mxu0 0.0
    %1816 = vmatpush1.msra.mxu0 %v244
    %1817 = vmatprep.subr.mxu0 0.0
    %1818 = vmatpush1.msra.mxu0 %v243
    %1819 = vmatprep.subr.mxu0 0.0
    %1820 = vmatpush2.msra.mxu0 0.0
    %1821 = vmatprep.subr.mxu0 0.0
    %1822 = vmatpush2.msra.mxu0 0.0
    %1823 = vmatprep.subr.mxu0 0.0
    %1824 = vmatpush2.msra.mxu0 0.0
    %1825 = vmatprep.subr.mxu0 0.0
    %1826 = vmatpush2.msra.mxu0 0.0
    %1827 = vmatprep.subr.mxu0 0.0
    %1828 = vmatpush2.msra.mxu0 0.0
    %1829 = vmatprep.subr.mxu0 0.0
    %1830 = vmatpush2.msra.mxu0 0.0
    %1831 = vmatprep.subr.mxu0 0.0
    %1832 = vmatpush2.msra.mxu0 0.0
    %1833 = vmatprep.subr.mxu0 0.0
    %1834 = vmatpush2.msra.mxu0 0.0
    %1835 = vmatprep.subr.mxu0 0.0
    %1836 = vmatpush2.msra.mxu0 0.0
    %1837 = vmatprep.subr.mxu0 0.0
    %1838 = vmatpush2.msra.mxu0 0.0
    %1839 = vmatprep.subr.mxu0 0.0
    %1840 = vmatpush2.msra.mxu0 0.0
    %1841 = vmatprep.subr.mxu0 0.0
    %1842 = vmatpush2.msra.mxu0 0.0
    %1843 = vmatprep.subr.mxu0 0.0
    %1844 = vmatpush2.msra.mxu0 0.0
    %1845 = vmatprep.subr.mxu0 0.0
    %1846 = vmatpush2.msra.mxu0 0.0
    %1847 = vmatprep.subr.mxu0 0.0
    %1848 = vmatpush2.msra.mxu0 0.0
    %1849 = vmatprep.subr.mxu0 0.0
    %1850 = vmatpush2.msra.mxu0 0.0
    %1851 = vmatprep.mubr.f32.mxu0 0.0
    %1852 = vmatmul.mubr.f32.gmra.mxu0 %v1779
    %v1853 = vpop.f32.mrf.mxu0
    %v1854 = vadd.f32 0.0, %v1853
    %v1855 = vpop.f32.mrf.mxu0
    %1856 = vmatprep.mubr.f32.mxu0 0.0
    %1857 = vmatmul.mubr.f32.gmra.mxu0 %v1782
    %v1858 = vpop.f32.mrf.mxu0
    %v1859 = vadd.f32 0.0, %v1858
    %v1860 = vpop.f32.mrf.mxu0
    %1861 = vmatprep.mubr.f32.mxu0 0.0
    %1862 = vmatmul.mubr.f32.gmra.mxu0 %v1785
    %v1863 = vpop.f32.mrf.mxu0
    %v1864 = vadd.f32 0.0, %v1863
    %v1865 = vpop.f32.mrf.mxu0
    %1866 = vdwg.mxu0
    %s1867 = scalar_lea.vmem %s4, 256
    %v1868 = vld [vmem:[%s1867] sm:$0xff]
    %v1869 = vld [vmem:[%s1867 + $0x8] sm:$0xff]
    %v1870 = vld [vmem:[%s1867 + $0x10] sm:$0xff]
    %v1871 = vld [vmem:[%s1867 + $0x18] sm:$0xff]
    %v1873 = vsel %vm455, %v1854, 0
    %v1876 = vsel %vm455, %v1859, 0
    %v1879 = vsel %vm455, %v1864, 0
    %1881 = vmatprep.subr.mxu0 0.0
    %1882 = vmatpush1.msra.mxu0 0.0
    %1883 = vmatprep.subr.mxu0 0.0
    %1884 = vmatpush1.msra.mxu0 0.0
    %1885 = vmatprep.subr.mxu0 0.0
    %1886 = vmatpush1.msra.mxu0 0.0
    %1887 = vmatprep.subr.mxu0 0.0
    %1888 = vmatpush1.msra.mxu0 0.0
    %1889 = vmatprep.subr.mxu0 0.0
    %1890 = vmatpush1.msra.mxu0 0.0
    %1891 = vmatprep.subr.mxu0 0.0
    %1892 = vmatpush1.msra.mxu0 0.0
    %1893 = vmatprep.subr.mxu0 0.0
    %1894 = vmatpush1.msra.mxu0 0.0
    %1895 = vmatprep.subr.mxu0 0.0
    %1896 = vmatpush1.msra.mxu0 0.0
    %1897 = vmatprep.subr.mxu0 0.0
    %1898 = vmatpush1.msra.mxu0 0.0
    %1899 = vmatprep.subr.mxu0 0.0
    %1900 = vmatpush1.msra.mxu0 0.0
    %1901 = vmatprep.subr.mxu0 0.0
    %1902 = vmatpush1.msra.mxu0 0.0
    %1903 = vmatprep.subr.mxu0 0.0
    %1904 = vmatpush1.msra.mxu0 0.0
    %1905 = vmatprep.subr.mxu0 0.0
    %1906 = vmatpush1.msra.mxu0 %v1871
    %1907 = vmatprep.subr.mxu0 0.0
    %1908 = vmatpush1.msra.mxu0 %v1870
    %1909 = vmatprep.subr.mxu0 0.0
    %1910 = vmatpush1.msra.mxu0 %v1869
    %1911 = vmatprep.subr.mxu0 0.0
    %1912 = vmatpush1.msra.mxu0 %v1868
    %1913 = vmatprep.subr.mxu0 0.0
    %1914 = vmatpush2.msra.mxu0 0.0
    %1915 = vmatprep.subr.mxu0 0.0
    %1916 = vmatpush2.msra.mxu0 0.0
    %1917 = vmatprep.subr.mxu0 0.0
    %1918 = vmatpush2.msra.mxu0 0.0
    %1919 = vmatprep.subr.mxu0 0.0
    %1920 = vmatpush2.msra.mxu0 0.0
    %1921 = vmatprep.subr.mxu0 0.0
    %1922 = vmatpush2.msra.mxu0 0.0
    %1923 = vmatprep.subr.mxu0 0.0
    %1924 = vmatpush2.msra.mxu0 0.0
    %1925 = vmatprep.subr.mxu0 0.0
    %1926 = vmatpush2.msra.mxu0 0.0
    %1927 = vmatprep.subr.mxu0 0.0
    %1928 = vmatpush2.msra.mxu0 0.0
    %1929 = vmatprep.subr.mxu0 0.0
    %1930 = vmatpush2.msra.mxu0 0.0
    %1931 = vmatprep.subr.mxu0 0.0
    %1932 = vmatpush2.msra.mxu0 0.0
    %1933 = vmatprep.subr.mxu0 0.0
    %1934 = vmatpush2.msra.mxu0 0.0
    %1935 = vmatprep.subr.mxu0 0.0
    %1936 = vmatpush2.msra.mxu0 0.0
    %1937 = vmatprep.subr.mxu0 0.0
    %1938 = vmatpush2.msra.mxu0 0.0
    %1939 = vmatprep.subr.mxu0 0.0
    %1940 = vmatpush2.msra.mxu0 0.0
    %1941 = vmatprep.subr.mxu0 0.0
    %1942 = vmatpush2.msra.mxu0 0.0
    %1943 = vmatprep.subr.mxu0 0.0
    %1944 = vmatpush2.msra.mxu0 0.0
    %1945 = vmatprep.mubr.f32.mxu0 0.0
    %1946 = vmatmul.mubr.f32.gmra.mxu0 %v1873
    %v1947 = vpop.f32.mrf.mxu0
    %v1948 = vadd.f32 0.0, %v1947
    %v1949 = vpop.f32.mrf.mxu0
    %1950 = vmatprep.mubr.f32.mxu0 0.0
    %1951 = vmatmul.mubr.f32.gmra.mxu0 %v1876
    %v1952 = vpop.f32.mrf.mxu0
    %v1953 = vadd.f32 0.0, %v1952
    %v1954 = vpop.f32.mrf.mxu0
    %1955 = vmatprep.mubr.f32.mxu0 0.0
    %1956 = vmatmul.mubr.f32.gmra.mxu0 %v1879
    %v1957 = vpop.f32.mrf.mxu0
    %v1958 = vadd.f32 0.0, %v1957
    %v1959 = vpop.f32.mrf.mxu0
    %1960 = vdwg.mxu0
    %v1961 = vadd.f32 %v1771, %v1948
    %v1962 = vadd.f32 %v1772, %v1953
    %v1963 = vadd.f32 %v1773, %v1958
    %v1964 = vld [vmem:[%s5] sm:$0x1]
    %v1966 = vlaneseq
    %v1967 = vshrl.u32 %v1966, 7
    %v1968 = vsub.s32 0, %v1967
    %v1969 = vrot.slane %v1964, %v1968
    %v1971 = vadd.f32 %v1961, %v1969
    %v1972 = vadd.f32 %v1962, %v1969
    %v1973 = vadd.f32 %v1963, %v1969
    %v1974 = vmax.f32 %v1971, 0.0
    %v1975 = vmax.f32 %v1972, 0.0
    %v1976 = vmax.f32 %v1973, 0.0
    %v1977 = vld [vmem:[%s6] sm:$0xff]
    %vm1978 = vcmask 146432
    %v1980 = vsel %vm1978, %v1977, 0
    %v1983 = vsel %vm269, %v1976, 0
    %1985 = vmatprep.subr.mxu0 0.0
    %1986 = vmatpush1.msra.mxu0 0.0
    %1987 = vmatprep.subr.mxu0 0.0
    %1988 = vmatpush1.msra.mxu0 0.0
    %1989 = vmatprep.subr.mxu0 0.0
    %1990 = vmatpush1.msra.mxu0 0.0
    %1991 = vmatprep.subr.mxu0 0.0
    %1992 = vmatpush1.msra.mxu0 0.0
    %1993 = vmatprep.subr.mxu0 0.0
    %1994 = vmatpush1.msra.mxu0 0.0
    %1995 = vmatprep.subr.mxu0 0.0
    %1996 = vmatpush1.msra.mxu0 0.0
    %1997 = vmatprep.subr.mxu0 0.0
    %1998 = vmatpush1.msra.mxu0 0.0
    %1999 = vmatprep.subr.mxu0 0.0
    %2000 = vmatpush1.msra.mxu0 0.0
    %2001 = vmatprep.subr.mxu0 0.0
    %2002 = vmatpush1.msra.mxu0 0.0
    %2003 = vmatprep.subr.mxu0 0.0
    %2004 = vmatpush1.msra.mxu0 0.0
    %2005 = vmatprep.subr.mxu0 0.0
    %2006 = vmatpush1.msra.mxu0 0.0
    %2007 = vmatprep.subr.mxu0 0.0
    %2008 = vmatpush1.msra.mxu0 0.0
    %2009 = vmatprep.subr.mxu0 0.0
    %2010 = vmatpush1.msra.mxu0 0.0
    %2011 = vmatprep.subr.mxu0 0.0
    %2012 = vmatpush1.msra.mxu0 %v1983
    %2013 = vmatprep.subr.mxu0 0.0
    %2014 = vmatpush1.msra.mxu0 %v1975
    %2015 = vmatprep.subr.mxu0 0.0
    %2016 = vmatpush1.msra.mxu0 %v1974
    %2017 = vmatprep.subr.mxu0 0.0
    %2018 = vmatpush2.msra.mxu0 0.0
    %2019 = vmatprep.subr.mxu0 0.0
    %2020 = vmatpush2.msra.mxu0 0.0
    %2021 = vmatprep.subr.mxu0 0.0
    %2022 = vmatpush2.msra.mxu0 0.0
    %2023 = vmatprep.subr.mxu0 0.0
    %2024 = vmatpush2.msra.mxu0 0.0
    %2025 = vmatprep.subr.mxu0 0.0
    %2026 = vmatpush2.msra.mxu0 0.0
    %2027 = vmatprep.subr.mxu0 0.0
    %2028 = vmatpush2.msra.mxu0 0.0
    %2029 = vmatprep.subr.mxu0 0.0
    %2030 = vmatpush2.msra.mxu0 0.0
    %2031 = vmatprep.subr.mxu0 0.0
    %2032 = vmatpush2.msra.mxu0 0.0
    %2033 = vmatprep.subr.mxu0 0.0
    %2034 = vmatpush2.msra.mxu0 0.0
    %2035 = vmatprep.subr.mxu0 0.0
    %2036 = vmatpush2.msra.mxu0 0.0
    %2037 = vmatprep.subr.mxu0 0.0
    %2038 = vmatpush2.msra.mxu0 0.0
    %2039 = vmatprep.subr.mxu0 0.0
    %2040 = vmatpush2.msra.mxu0 0.0
    %2041 = vmatprep.subr.mxu0 0.0
    %2042 = vmatpush2.msra.mxu0 0.0
    %2043 = vmatprep.subr.mxu0 0.0
    %2044 = vmatpush2.msra.mxu0 0.0
    %2045 = vmatprep.subr.mxu0 0.0
    %2046 = vmatpush2.msra.mxu0 0.0
    %2047 = vmatprep.subr.mxu0 0.0
    %2048 = vmatpush2.msra.mxu0 0.0
    %2049 = vmatprep.mubr.f32.mxu0 0.0
    %2050 = vmatmul.mubr.f32.gmra.mxu0 %v1980
    %v2051 = vpop.f32.mrf.mxu0
    %v2052 = vadd.f32 0.0, %v2051
    %v2053 = vpop.f32.mrf.mxu0
    %2054 = vdwg.mxu0
    %v2055 = vld [vmem:[%s7] sm:$0xff]
    %v2056 = vld [vmem:[%s7 + $0x8] sm:$0xff]
    %v2057 = vld [vmem:[%s7 + $0x10] sm:$0xff]
    %v2058 = vld [vmem:[%s7 + $0x18] sm:$0xff]
    %v2059 = vld [vmem:[%s7 + $0x20] sm:$0xff]
    %v2060 = vld [vmem:[%s7 + $0x28] sm:$0xff]
    %v2061 = vld [vmem:[%s7 + $0x30] sm:$0xff]
    %v2062 = vld [vmem:[%s7 + $0x38] sm:$0xff]
    %s2063 = scalar_lea.vmem %s6, 8
    %v2064 = vld [vmem:[%s2063] sm:$0xff]
    %v2066 = vsel %vm1978, %v2064, 0
    %2068 = vmatprep.subr.mxu0 0.0
    %2069 = vmatpush1.msra.mxu0 0.0
    %2070 = vmatprep.subr.mxu0 0.0
    %2071 = vmatpush1.msra.mxu0 0.0
    %2072 = vmatprep.subr.mxu0 0.0
    %2073 = vmatpush1.msra.mxu0 0.0
    %2074 = vmatprep.subr.mxu0 0.0
    %2075 = vmatpush1.msra.mxu0 0.0
    %2076 = vmatprep.subr.mxu0 0.0
    %2077 = vmatpush1.msra.mxu0 0.0
    %2078 = vmatprep.subr.mxu0 0.0
    %2079 = vmatpush1.msra.mxu0 0.0
    %2080 = vmatprep.subr.mxu0 0.0
    %2081 = vmatpush1.msra.mxu0 0.0
    %2082 = vmatprep.subr.mxu0 0.0
    %2083 = vmatpush1.msra.mxu0 0.0
    %2084 = vmatprep.subr.mxu0 0.0
    %2085 = vmatpush1.msra.mxu0 0.0
    %2086 = vmatprep.subr.mxu0 0.0
    %2087 = vmatpush1.msra.mxu0 0.0
    %2088 = vmatprep.subr.mxu0 0.0
    %2089 = vmatpush1.msra.mxu0 0.0
    %2090 = vmatprep.subr.mxu0 0.0
    %2091 = vmatpush1.msra.mxu0 0.0
    %2092 = vmatprep.subr.mxu0 0.0
    %2093 = vmatpush1.msra.mxu0 0.0
    %2094 = vmatprep.subr.mxu0 0.0
    %2095 = vmatpush1.msra.mxu0 %v1983
    %2096 = vmatprep.subr.mxu0 0.0
    %2097 = vmatpush1.msra.mxu0 %v1975
    %2098 = vmatprep.subr.mxu0 0.0
    %2099 = vmatpush1.msra.mxu0 %v1974
    %2100 = vmatprep.subr.mxu0 0.0
    %2101 = vmatpush2.msra.mxu0 0.0
    %2102 = vmatprep.subr.mxu0 0.0
    %2103 = vmatpush2.msra.mxu0 0.0
    %2104 = vmatprep.subr.mxu0 0.0
    %2105 = vmatpush2.msra.mxu0 0.0
    %2106 = vmatprep.subr.mxu0 0.0
    %2107 = vmatpush2.msra.mxu0 0.0
    %2108 = vmatprep.subr.mxu0 0.0
    %2109 = vmatpush2.msra.mxu0 0.0
    %2110 = vmatprep.subr.mxu0 0.0
    %2111 = vmatpush2.msra.mxu0 0.0
    %2112 = vmatprep.subr.mxu0 0.0
    %2113 = vmatpush2.msra.mxu0 0.0
    %2114 = vmatprep.subr.mxu0 0.0
    %2115 = vmatpush2.msra.mxu0 0.0
    %2116 = vmatprep.subr.mxu0 0.0
    %2117 = vmatpush2.msra.mxu0 0.0
    %2118 = vmatprep.subr.mxu0 0.0
    %2119 = vmatpush2.msra.mxu0 0.0
    %2120 = vmatprep.subr.mxu0 0.0
    %2121 = vmatpush2.msra.mxu0 0.0
    %2122 = vmatprep.subr.mxu0 0.0
    %2123 = vmatpush2.msra.mxu0 0.0
    %2124 = vmatprep.subr.mxu0 0.0
    %2125 = vmatpush2.msra.mxu0 0.0
    %2126 = vmatprep.subr.mxu0 0.0
    %2127 = vmatpush2.msra.mxu0 0.0
    %2128 = vmatprep.subr.mxu0 0.0
    %2129 = vmatpush2.msra.mxu0 0.0
    %2130 = vmatprep.subr.mxu0 0.0
    %2131 = vmatpush2.msra.mxu0 0.0
    %2132 = vmatprep.mubr.f32.mxu0 0.0
    %2133 = vmatmul.mubr.f32.gmra.mxu0 %v2066
    %v2134 = vpop.f32.mrf.mxu0
    %v2135 = vadd.f32 0.0, %v2134
    %v2136 = vpop.f32.mrf.mxu0
    %2137 = vdwg.mxu0
    %s2138 = scalar_lea.vmem %s7, 64
    %v2139 = vld [vmem:[%s2138] sm:$0xff]
    %v2140 = vld [vmem:[%s2138 + $0x8] sm:$0xff]
    %v2141 = vld [vmem:[%s2138 + $0x10] sm:$0xff]
    %v2142 = vld [vmem:[%s2138 + $0x18] sm:$0xff]
    %v2143 = vld [vmem:[%s2138 + $0x20] sm:$0xff]
    %v2144 = vld [vmem:[%s2138 + $0x28] sm:$0xff]
    %v2145 = vld [vmem:[%s2138 + $0x30] sm:$0xff]
    %v2146 = vld [vmem:[%s2138 + $0x38] sm:$0xff]
    %v2148 = vsel %vm73, %v2135, 0
    %2150 = vmatprep.subr.mxu0 0.0
    %2151 = vmatpush1.msra.mxu0 0.0
    %2152 = vmatprep.subr.mxu0 0.0
    %2153 = vmatpush1.msra.mxu0 0.0
    %2154 = vmatprep.subr.mxu0 0.0
    %2155 = vmatpush1.msra.mxu0 0.0
    %2156 = vmatprep.subr.mxu0 0.0
    %2157 = vmatpush1.msra.mxu0 0.0
    %2158 = vmatprep.subr.mxu0 0.0
    %2159 = vmatpush1.msra.mxu0 0.0
    %2160 = vmatprep.subr.mxu0 0.0
    %2161 = vmatpush1.msra.mxu0 0.0
    %2162 = vmatprep.subr.mxu0 0.0
    %2163 = vmatpush1.msra.mxu0 0.0
    %2164 = vmatprep.subr.mxu0 0.0
    %2165 = vmatpush1.msra.mxu0 0.0
    %2166 = vmatprep.subr.mxu0 0.0
    %2167 = vmatpush1.msra.mxu0 %v2146
    %2168 = vmatprep.subr.mxu0 0.0
    %2169 = vmatpush1.msra.mxu0 %v2145
    %2170 = vmatprep.subr.mxu0 0.0
    %2171 = vmatpush1.msra.mxu0 %v2144
    %2172 = vmatprep.subr.mxu0 0.0
    %2173 = vmatpush1.msra.mxu0 %v2143
    %2174 = vmatprep.subr.mxu0 0.0
    %2175 = vmatpush1.msra.mxu0 %v2142
    %2176 = vmatprep.subr.mxu0 0.0
    %2177 = vmatpush1.msra.mxu0 %v2141
    %2178 = vmatprep.subr.mxu0 0.0
    %2179 = vmatpush1.msra.mxu0 %v2140
    %2180 = vmatprep.subr.mxu0 0.0
    %2181 = vmatpush1.msra.mxu0 %v2139
    %2182 = vmatprep.subr.mxu0 0.0
    %2183 = vmatpush2.msra.mxu0 0.0
    %2184 = vmatprep.subr.mxu0 0.0
    %2185 = vmatpush2.msra.mxu0 0.0
    %2186 = vmatprep.subr.mxu0 0.0
    %2187 = vmatpush2.msra.mxu0 0.0
    %2188 = vmatprep.subr.mxu0 0.0
    %2189 = vmatpush2.msra.mxu0 0.0
    %2190 = vmatprep.subr.mxu0 0.0
    %2191 = vmatpush2.msra.mxu0 0.0
    %2192 = vmatprep.subr.mxu0 0.0
    %2193 = vmatpush2.msra.mxu0 0.0
    %2194 = vmatprep.subr.mxu0 0.0
    %2195 = vmatpush2.msra.mxu0 0.0
    %2196 = vmatprep.subr.mxu0 0.0
    %2197 = vmatpush2.msra.mxu0 0.0
    %2198 = vmatprep.subr.mxu0 0.0
    %2199 = vmatpush2.msra.mxu0 0.0
    %2200 = vmatprep.subr.mxu0 0.0
    %2201 = vmatpush2.msra.mxu0 0.0
    %2202 = vmatprep.subr.mxu0 0.0
    %2203 = vmatpush2.msra.mxu0 0.0
    %2204 = vmatprep.subr.mxu0 0.0
    %2205 = vmatpush2.msra.mxu0 0.0
    %2206 = vmatprep.subr.mxu0 0.0
    %2207 = vmatpush2.msra.mxu0 0.0
    %2208 = vmatprep.subr.mxu0 0.0
    %2209 = vmatpush2.msra.mxu0 0.0
    %2210 = vmatprep.subr.mxu0 0.0
    %2211 = vmatpush2.msra.mxu0 0.0
    %2212 = vmatprep.subr.mxu0 0.0
    %2213 = vmatpush2.msra.mxu0 0.0
    %2214 = vmatprep.mubr.f32.mxu0 0.0
    %2215 = vmatmul.mubr.f32.gmra.mxu0 %v2148
    %v2216 = vpop.f32.mrf.mxu0
    %v2217 = vadd.f32 0.0, %v2216
    %v2218 = vpop.f32.mrf.mxu0
    %2219 = vdwg.mxu0
    %v2221 = vsel %vm73, %v2052, 0
    %2223 = vmatprep.subr.mxu0 0.0
    %2224 = vmatpush1.msra.mxu0 0.0
    %2225 = vmatprep.subr.mxu0 0.0
    %2226 = vmatpush1.msra.mxu0 0.0
    %2227 = vmatprep.subr.mxu0 0.0
    %2228 = vmatpush1.msra.mxu0 0.0
    %2229 = vmatprep.subr.mxu0 0.0
    %2230 = vmatpush1.msra.mxu0 0.0
    %2231 = vmatprep.subr.mxu0 0.0
    %2232 = vmatpush1.msra.mxu0 0.0
    %2233 = vmatprep.subr.mxu0 0.0
    %2234 = vmatpush1.msra.mxu0 0.0
    %2235 = vmatprep.subr.mxu0 0.0
    %2236 = vmatpush1.msra.mxu0 0.0
    %2237 = vmatprep.subr.mxu0 0.0
    %2238 = vmatpush1.msra.mxu0 0.0
    %2239 = vmatprep.subr.mxu0 0.0
    %2240 = vmatpush1.msra.mxu0 %v2062
    %2241 = vmatprep.subr.mxu0 0.0
    %2242 = vmatpush1.msra.mxu0 %v2061
    %2243 = vmatprep.subr.mxu0 0.0
    %2244 = vmatpush1.msra.mxu0 %v2060
    %2245 = vmatprep.subr.mxu0 0.0
    %2246 = vmatpush1.msra.mxu0 %v2059
    %2247 = vmatprep.subr.mxu0 0.0
    %2248 = vmatpush1.msra.mxu0 %v2058
    %2249 = vmatprep.subr.mxu0 0.0
    %2250 = vmatpush1.msra.mxu0 %v2057
    %2251 = vmatprep.subr.mxu0 0.0
    %2252 = vmatpush1.msra.mxu0 %v2056
    %2253 = vmatprep.subr.mxu0 0.0
    %2254 = vmatpush1.msra.mxu0 %v2055
    %2255 = vmatprep.subr.mxu0 0.0
    %2256 = vmatpush2.msra.mxu0 0.0
    %2257 = vmatprep.subr.mxu0 0.0
    %2258 = vmatpush2.msra.mxu0 0.0
    %2259 = vmatprep.subr.mxu0 0.0
    %2260 = vmatpush2.msra.mxu0 0.0
    %2261 = vmatprep.subr.mxu0 0.0
    %2262 = vmatpush2.msra.mxu0 0.0
    %2263 = vmatprep.subr.mxu0 0.0
    %2264 = vmatpush2.msra.mxu0 0.0
    %2265 = vmatprep.subr.mxu0 0.0
    %2266 = vmatpush2.msra.mxu0 0.0
    %2267 = vmatprep.subr.mxu0 0.0
    %2268 = vmatpush2.msra.mxu0 0.0
    %2269 = vmatprep.subr.mxu0 0.0
    %2270 = vmatpush2.msra.mxu0 0.0
    %2271 = vmatprep.subr.mxu0 0.0
    %2272 = vmatpush2.msra.mxu0 0.0
    %2273 = vmatprep.subr.mxu0 0.0
    %2274 = vmatpush2.msra.mxu0 0.0
    %2275 = vmatprep.subr.mxu0 0.0
    %2276 = vmatpush2.msra.mxu0 0.0
    %2277 = vmatprep.subr.mxu0 0.0
    %2278 = vmatpush2.msra.mxu0 0.0
    %2279 = vmatprep.subr.mxu0 0.0
    %2280 = vmatpush2.msra.mxu0 0.0
    %2281 = vmatprep.subr.mxu0 0.0
    %2282 = vmatpush2.msra.mxu0 0.0
    %2283 = vmatprep.subr.mxu0 0.0
    %2284 = vmatpush2.msra.mxu0 0.0
    %2285 = vmatprep.subr.mxu0 0.0
    %2286 = vmatpush2.msra.mxu0 0.0
    %2287 = vmatprep.mubr.f32.mxu0 0.0
    %2288 = vmatmul.mubr.f32.gmra.mxu0 %v2221
    %v2289 = vpop.f32.mrf.mxu0
    %v2290 = vadd.f32 %v2217, %v2289
    %v2291 = vpop.f32.mrf.mxu0
    %2292 = vdwg.mxu0
    %s2293 = scalar_lea.vmem %s6, 16
    %v2294 = vld [vmem:[%s2293] sm:$0xff]
    %v2296 = vsel %vm1978, %v2294, 0
    %2298 = vmatprep.subr.mxu0 0.0
    %2299 = vmatpush1.msra.mxu0 0.0
    %2300 = vmatprep.subr.mxu0 0.0
    %2301 = vmatpush1.msra.mxu0 0.0
    %2302 = vmatprep.subr.mxu0 0.0
    %2303 = vmatpush1.msra.mxu0 0.0
    %2304 = vmatprep.subr.mxu0 0.0
    %2305 = vmatpush1.msra.mxu0 0.0
    %2306 = vmatprep.subr.mxu0 0.0
    %2307 = vmatpush1.msra.mxu0 0.0
    %2308 = vmatprep.subr.mxu0 0.0
    %2309 = vmatpush1.msra.mxu0 0.0
    %2310 = vmatprep.subr.mxu0 0.0
    %2311 = vmatpush1.msra.mxu0 0.0
    %2312 = vmatprep.subr.mxu0 0.0
    %2313 = vmatpush1.msra.mxu0 0.0
    %2314 = vmatprep.subr.mxu0 0.0
    %2315 = vmatpush1.msra.mxu0 0.0
    %2316 = vmatprep.subr.mxu0 0.0
    %2317 = vmatpush1.msra.mxu0 0.0
    %2318 = vmatprep.subr.mxu0 0.0
    %2319 = vmatpush1.msra.mxu0 0.0
    %2320 = vmatprep.subr.mxu0 0.0
    %2321 = vmatpush1.msra.mxu0 0.0
    %2322 = vmatprep.subr.mxu0 0.0
    %2323 = vmatpush1.msra.mxu0 0.0
    %2324 = vmatprep.subr.mxu0 0.0
    %2325 = vmatpush1.msra.mxu0 %v1983
    %2326 = vmatprep.subr.mxu0 0.0
    %2327 = vmatpush1.msra.mxu0 %v1975
    %2328 = vmatprep.subr.mxu0 0.0
    %2329 = vmatpush1.msra.mxu0 %v1974
    %2330 = vmatprep.subr.mxu0 0.0
    %2331 = vmatpush2.msra.mxu0 0.0
    %2332 = vmatprep.subr.mxu0 0.0
    %2333 = vmatpush2.msra.mxu0 0.0
    %2334 = vmatprep.subr.mxu0 0.0
    %2335 = vmatpush2.msra.mxu0 0.0
    %2336 = vmatprep.subr.mxu0 0.0
    %2337 = vmatpush2.msra.mxu0 0.0
    %2338 = vmatprep.subr.mxu0 0.0
    %2339 = vmatpush2.msra.mxu0 0.0
    %2340 = vmatprep.subr.mxu0 0.0
    %2341 = vmatpush2.msra.mxu0 0.0
    %2342 = vmatprep.subr.mxu0 0.0
    %2343 = vmatpush2.msra.mxu0 0.0
    %2344 = vmatprep.subr.mxu0 0.0
    %2345 = vmatpush2.msra.mxu0 0.0
    %2346 = vmatprep.subr.mxu0 0.0
    %2347 = vmatpush2.msra.mxu0 0.0
    %2348 = vmatprep.subr.mxu0 0.0
    %2349 = vmatpush2.msra.mxu0 0.0
    %2350 = vmatprep.subr.mxu0 0.0
    %2351 = vmatpush2.msra.mxu0 0.0
    %2352 = vmatprep.subr.mxu0 0.0
    %2353 = vmatpush2.msra.mxu0 0.0
    %2354 = vmatprep.subr.mxu0 0.0
    %2355 = vmatpush2.msra.mxu0 0.0
    %2356 = vmatprep.subr.mxu0 0.0
    %2357 = vmatpush2.msra.mxu0 0.0
    %2358 = vmatprep.subr.mxu0 0.0
    %2359 = vmatpush2.msra.mxu0 0.0
    %2360 = vmatprep.subr.mxu0 0.0
    %2361 = vmatpush2.msra.mxu0 0.0
    %2362 = vmatprep.mubr.f32.mxu0 0.0
    %2363 = vmatmul.mubr.f32.gmra.mxu0 %v2296
    %v2364 = vpop.f32.mrf.mxu0
    %v2365 = vadd.f32 0.0, %v2364
    %v2366 = vpop.f32.mrf.mxu0
    %2367 = vdwg.mxu0
    %s2368 = scalar_lea.vmem %s7, 128
    %v2369 = vld [vmem:[%s2368] sm:$0xff]
    %v2370 = vld [vmem:[%s2368 + $0x8] sm:$0xff]
    %v2371 = vld [vmem:[%s2368 + $0x10] sm:$0xff]
    %v2372 = vld [vmem:[%s2368 + $0x18] sm:$0xff]
    %v2373 = vld [vmem:[%s2368 + $0x20] sm:$0xff]
    %v2374 = vld [vmem:[%s2368 + $0x28] sm:$0xff]
    %v2375 = vld [vmem:[%s2368 + $0x30] sm:$0xff]
    %v2376 = vld [vmem:[%s2368 + $0x38] sm:$0xff]
    %v2378 = vsel %vm73, %v2365, 0
    %2380 = vmatprep.subr.mxu0 0.0
    %2381 = vmatpush1.msra.mxu0 0.0
    %2382 = vmatprep.subr.mxu0 0.0
    %2383 = vmatpush1.msra.mxu0 0.0
    %2384 = vmatprep.subr.mxu0 0.0
    %2385 = vmatpush1.msra.mxu0 0.0
    %2386 = vmatprep.subr.mxu0 0.0
    %2387 = vmatpush1.msra.mxu0 0.0
    %2388 = vmatprep.subr.mxu0 0.0
    %2389 = vmatpush1.msra.mxu0 0.0
    %2390 = vmatprep.subr.mxu0 0.0
    %2391 = vmatpush1.msra.mxu0 0.0
    %2392 = vmatprep.subr.mxu0 0.0
    %2393 = vmatpush1.msra.mxu0 0.0
    %2394 = vmatprep.subr.mxu0 0.0
    %2395 = vmatpush1.msra.mxu0 0.0
    %2396 = vmatprep.subr.mxu0 0.0
    %2397 = vmatpush1.msra.mxu0 %v2376
    %2398 = vmatprep.subr.mxu0 0.0
    %2399 = vmatpush1.msra.mxu0 %v2375
    %2400 = vmatprep.subr.mxu0 0.0
    %2401 = vmatpush1.msra.mxu0 %v2374
    %2402 = vmatprep.subr.mxu0 0.0
    %2403 = vmatpush1.msra.mxu0 %v2373
    %2404 = vmatprep.subr.mxu0 0.0
    %2405 = vmatpush1.msra.mxu0 %v2372
    %2406 = vmatprep.subr.mxu0 0.0
    %2407 = vmatpush1.msra.mxu0 %v2371
    %2408 = vmatprep.subr.mxu0 0.0
    %2409 = vmatpush1.msra.mxu0 %v2370
    %2410 = vmatprep.subr.mxu0 0.0
    %2411 = vmatpush1.msra.mxu0 %v2369
    %2412 = vmatprep.subr.mxu0 0.0
    %2413 = vmatpush2.msra.mxu0 0.0
    %2414 = vmatprep.subr.mxu0 0.0
    %2415 = vmatpush2.msra.mxu0 0.0
    %2416 = vmatprep.subr.mxu0 0.0
    %2417 = vmatpush2.msra.mxu0 0.0
    %2418 = vmatprep.subr.mxu0 0.0
    %2419 = vmatpush2.msra.mxu0 0.0
    %2420 = vmatprep.subr.mxu0 0.0
    %2421 = vmatpush2.msra.mxu0 0.0
    %2422 = vmatprep.subr.mxu0 0.0
    %2423 = vmatpush2.msra.mxu0 0.0
    %2424 = vmatprep.subr.mxu0 0.0
    %2425 = vmatpush2.msra.mxu0 0.0
    %2426 = vmatprep.subr.mxu0 0.0
    %2427 = vmatpush2.msra.mxu0 0.0
    %2428 = vmatprep.subr.mxu0 0.0
    %2429 = vmatpush2.msra.mxu0 0.0
    %2430 = vmatprep.subr.mxu0 0.0
    %2431 = vmatpush2.msra.mxu0 0.0
    %2432 = vmatprep.subr.mxu0 0.0
    %2433 = vmatpush2.msra.mxu0 0.0
    %2434 = vmatprep.subr.mxu0 0.0
    %2435 = vmatpush2.msra.mxu0 0.0
    %2436 = vmatprep.subr.mxu0 0.0
    %2437 = vmatpush2.msra.mxu0 0.0
    %2438 = vmatprep.subr.mxu0 0.0
    %2439 = vmatpush2.msra.mxu0 0.0
    %2440 = vmatprep.subr.mxu0 0.0
    %2441 = vmatpush2.msra.mxu0 0.0
    %2442 = vmatprep.subr.mxu0 0.0
    %2443 = vmatpush2.msra.mxu0 0.0
    %2444 = vmatprep.mubr.f32.mxu0 0.0
    %2445 = vmatmul.mubr.f32.gmra.mxu0 %v2378
    %v2446 = vpop.f32.mrf.mxu0
    %v2447 = vadd.f32 0.0, %v2446
    %v2448 = vpop.f32.mrf.mxu0
    %2449 = vdwg.mxu0
    %v2450 = vadd.f32 %v2290, %v2447
    %s2451 = scalar_lea.vmem %s6, 24
    %v2452 = vld [vmem:[%s2451] sm:$0xff]
    %v2454 = vsel %vm1978, %v2452, 0
    %2456 = vmatprep.subr.mxu0 0.0
    %2457 = vmatpush1.msra.mxu0 0.0
    %2458 = vmatprep.subr.mxu0 0.0
    %2459 = vmatpush1.msra.mxu0 0.0
    %2460 = vmatprep.subr.mxu0 0.0
    %2461 = vmatpush1.msra.mxu0 0.0
    %2462 = vmatprep.subr.mxu0 0.0
    %2463 = vmatpush1.msra.mxu0 0.0
    %2464 = vmatprep.subr.mxu0 0.0
    %2465 = vmatpush1.msra.mxu0 0.0
    %2466 = vmatprep.subr.mxu0 0.0
    %2467 = vmatpush1.msra.mxu0 0.0
    %2468 = vmatprep.subr.mxu0 0.0
    %2469 = vmatpush1.msra.mxu0 0.0
    %2470 = vmatprep.subr.mxu0 0.0
    %2471 = vmatpush1.msra.mxu0 0.0
    %2472 = vmatprep.subr.mxu0 0.0
    %2473 = vmatpush1.msra.mxu0 0.0
    %2474 = vmatprep.subr.mxu0 0.0
    %2475 = vmatpush1.msra.mxu0 0.0
    %2476 = vmatprep.subr.mxu0 0.0
    %2477 = vmatpush1.msra.mxu0 0.0
    %2478 = vmatprep.subr.mxu0 0.0
    %2479 = vmatpush1.msra.mxu0 0.0
    %2480 = vmatprep.subr.mxu0 0.0
    %2481 = vmatpush1.msra.mxu0 0.0
    %2482 = vmatprep.subr.mxu0 0.0
    %2483 = vmatpush1.msra.mxu0 %v1983
    %2484 = vmatprep.subr.mxu0 0.0
    %2485 = vmatpush1.msra.mxu0 %v1975
    %2486 = vmatprep.subr.mxu0 0.0
    %2487 = vmatpush1.msra.mxu0 %v1974
    %2488 = vmatprep.subr.mxu0 0.0
    %2489 = vmatpush2.msra.mxu0 0.0
    %2490 = vmatprep.subr.mxu0 0.0
    %2491 = vmatpush2.msra.mxu0 0.0
    %2492 = vmatprep.subr.mxu0 0.0
    %2493 = vmatpush2.msra.mxu0 0.0
    %2494 = vmatprep.subr.mxu0 0.0
    %2495 = vmatpush2.msra.mxu0 0.0
    %2496 = vmatprep.subr.mxu0 0.0
    %2497 = vmatpush2.msra.mxu0 0.0
    %2498 = vmatprep.subr.mxu0 0.0
    %2499 = vmatpush2.msra.mxu0 0.0
    %2500 = vmatprep.subr.mxu0 0.0
    %2501 = vmatpush2.msra.mxu0 0.0
    %2502 = vmatprep.subr.mxu0 0.0
    %2503 = vmatpush2.msra.mxu0 0.0
    %2504 = vmatprep.subr.mxu0 0.0
    %2505 = vmatpush2.msra.mxu0 0.0
    %2506 = vmatprep.subr.mxu0 0.0
    %2507 = vmatpush2.msra.mxu0 0.0
    %2508 = vmatprep.subr.mxu0 0.0
    %2509 = vmatpush2.msra.mxu0 0.0
    %2510 = vmatprep.subr.mxu0 0.0
    %2511 = vmatpush2.msra.mxu0 0.0
    %2512 = vmatprep.subr.mxu0 0.0
    %2513 = vmatpush2.msra.mxu0 0.0
    %2514 = vmatprep.subr.mxu0 0.0
    %2515 = vmatpush2.msra.mxu0 0.0
    %2516 = vmatprep.subr.mxu0 0.0
    %2517 = vmatpush2.msra.mxu0 0.0
    %2518 = vmatprep.subr.mxu0 0.0
    %2519 = vmatpush2.msra.mxu0 0.0
    %2520 = vmatprep.mubr.f32.mxu0 0.0
    %2521 = vmatmul.mubr.f32.gmra.mxu0 %v2454
    %v2522 = vpop.f32.mrf.mxu0
    %v2523 = vadd.f32 0.0, %v2522
    %v2524 = vpop.f32.mrf.mxu0
    %2525 = vdwg.mxu0
    %s2526 = scalar_lea.vmem %s7, 192
    %v2527 = vld [vmem:[%s2526] sm:$0xff]
    %v2528 = vld [vmem:[%s2526 + $0x8] sm:$0xff]
    %v2529 = vld [vmem:[%s2526 + $0x10] sm:$0xff]
    %v2530 = vld [vmem:[%s2526 + $0x18] sm:$0xff]
    %v2531 = vld [vmem:[%s2526 + $0x20] sm:$0xff]
    %v2532 = vld [vmem:[%s2526 + $0x28] sm:$0xff]
    %v2533 = vld [vmem:[%s2526 + $0x30] sm:$0xff]
    %v2534 = vld [vmem:[%s2526 + $0x38] sm:$0xff]
    %v2536 = vsel %vm73, %v2523, 0
    %2538 = vmatprep.subr.mxu0 0.0
    %2539 = vmatpush1.msra.mxu0 0.0
    %2540 = vmatprep.subr.mxu0 0.0
    %2541 = vmatpush1.msra.mxu0 0.0
    %2542 = vmatprep.subr.mxu0 0.0
    %2543 = vmatpush1.msra.mxu0 0.0
    %2544 = vmatprep.subr.mxu0 0.0
    %2545 = vmatpush1.msra.mxu0 0.0
    %2546 = vmatprep.subr.mxu0 0.0
    %2547 = vmatpush1.msra.mxu0 0.0
    %2548 = vmatprep.subr.mxu0 0.0
    %2549 = vmatpush1.msra.mxu0 0.0
    %2550 = vmatprep.subr.mxu0 0.0
    %2551 = vmatpush1.msra.mxu0 0.0
    %2552 = vmatprep.subr.mxu0 0.0
    %2553 = vmatpush1.msra.mxu0 0.0
    %2554 = vmatprep.subr.mxu0 0.0
    %2555 = vmatpush1.msra.mxu0 %v2534
    %2556 = vmatprep.subr.mxu0 0.0
    %2557 = vmatpush1.msra.mxu0 %v2533
    %2558 = vmatprep.subr.mxu0 0.0
    %2559 = vmatpush1.msra.mxu0 %v2532
    %2560 = vmatprep.subr.mxu0 0.0
    %2561 = vmatpush1.msra.mxu0 %v2531
    %2562 = vmatprep.subr.mxu0 0.0
    %2563 = vmatpush1.msra.mxu0 %v2530
    %2564 = vmatprep.subr.mxu0 0.0
    %2565 = vmatpush1.msra.mxu0 %v2529
    %2566 = vmatprep.subr.mxu0 0.0
    %2567 = vmatpush1.msra.mxu0 %v2528
    %2568 = vmatprep.subr.mxu0 0.0
    %2569 = vmatpush1.msra.mxu0 %v2527
    %2570 = vmatprep.subr.mxu0 0.0
    %2571 = vmatpush2.msra.mxu0 0.0
    %2572 = vmatprep.subr.mxu0 0.0
    %2573 = vmatpush2.msra.mxu0 0.0
    %2574 = vmatprep.subr.mxu0 0.0
    %2575 = vmatpush2.msra.mxu0 0.0
    %2576 = vmatprep.subr.mxu0 0.0
    %2577 = vmatpush2.msra.mxu0 0.0
    %2578 = vmatprep.subr.mxu0 0.0
    %2579 = vmatpush2.msra.mxu0 0.0
    %2580 = vmatprep.subr.mxu0 0.0
    %2581 = vmatpush2.msra.mxu0 0.0
    %2582 = vmatprep.subr.mxu0 0.0
    %2583 = vmatpush2.msra.mxu0 0.0
    %2584 = vmatprep.subr.mxu0 0.0
    %2585 = vmatpush2.msra.mxu0 0.0
    %2586 = vmatprep.subr.mxu0 0.0
    %2587 = vmatpush2.msra.mxu0 0.0
    %2588 = vmatprep.subr.mxu0 0.0
    %2589 = vmatpush2.msra.mxu0 0.0
    %2590 = vmatprep.subr.mxu0 0.0
    %2591 = vmatpush2.msra.mxu0 0.0
    %2592 = vmatprep.subr.mxu0 0.0
    %2593 = vmatpush2.msra.mxu0 0.0
    %2594 = vmatprep.subr.mxu0 0.0
    %2595 = vmatpush2.msra.mxu0 0.0
    %2596 = vmatprep.subr.mxu0 0.0
    %2597 = vmatpush2.msra.mxu0 0.0
    %2598 = vmatprep.subr.mxu0 0.0
    %2599 = vmatpush2.msra.mxu0 0.0
    %2600 = vmatprep.subr.mxu0 0.0
    %2601 = vmatpush2.msra.mxu0 0.0
    %2602 = vmatprep.mubr.f32.mxu0 0.0
    %2603 = vmatmul.mubr.f32.gmra.mxu0 %v2536
    %v2604 = vpop.f32.mrf.mxu0
    %v2605 = vadd.f32 0.0, %v2604
    %v2606 = vpop.f32.mrf.mxu0
    %2607 = vdwg.mxu0
    %v2608 = vadd.f32 %v2450, %v2605
    %v2609 = vld [vmem:[%s8] sm:$0x1]
    %v2611 = vlaneseq
    %v2612 = vshrl.u32 %v2611, 7
    %v2613 = vsub.s32 0, %v2612
    %v2614 = vrot.slane %v2609, %v2613
    %v2616 = vadd.f32 %v2608, %v2614
    %v2617 = vmax.f32 %v2616, 0.0
    %v2618 = vld [vmem:[%s9] sm:$0xff]
    %v2619 = vld [vmem:[%s9 + $0x8] sm:$0xff]
    %v2620 = vld [vmem:[%s9 + $0x10] sm:$0xff]
    %v2621 = vld [vmem:[%s9 + $0x18] sm:$0xff]
    %v2622 = vld [vmem:[%s9 + $0x20] sm:$0xff]
    %v2623 = vld [vmem:[%s9 + $0x28] sm:$0xff]
    %v2624 = vld [vmem:[%s9 + $0x30] sm:$0xff]
    %v2625 = vld [vmem:[%s9 + $0x38] sm:$0xff]
    %v2626 = vld [vmem:[%s9 + $0x40] sm:$0xff]
    %v2627 = vld [vmem:[%s9 + $0x48] sm:$0xff]
    %v2628 = vld [vmem:[%s9 + $0x50] sm:$0xff]
    %v2629 = vld [vmem:[%s9 + $0x58] sm:$0xff]
    %v2630 = vld [vmem:[%s9 + $0x60] sm:$0xff]
    %v2631 = vld [vmem:[%s9 + $0x68] sm:$0xff]
    %v2632 = vld [vmem:[%s9 + $0x70] sm:$0xff]
    %v2633 = vld [vmem:[%s9 + $0x78] sm:$0xff]
    %v2634 = vld [vmem:[%s9 + $0x80] sm:$0xff]
    %v2635 = vld [vmem:[%s9 + $0x88] sm:$0xff]
    %v2636 = vld [vmem:[%s9 + $0x90] sm:$0xff]
    %v2637 = vld [vmem:[%s9 + $0x98] sm:$0xff]
    %v2638 = vld [vmem:[%s9 + $0xa0] sm:$0xff]
    %v2639 = vld [vmem:[%s9 + $0xa8] sm:$0xff]
    %v2640 = vld [vmem:[%s9 + $0xb0] sm:$0xff]
    %v2641 = vld [vmem:[%s9 + $0xb8] sm:$0xff]
    %v2642 = vld [vmem:[%s9 + $0xc0] sm:$0xff]
    %v2643 = vld [vmem:[%s9 + $0xc8] sm:$0xff]
    %v2644 = vld [vmem:[%s9 + $0xd0] sm:$0xff]
    %v2645 = vld [vmem:[%s9 + $0xd8] sm:$0xff]
    %v2646 = vld [vmem:[%s9 + $0xe0] sm:$0xff]
    %v2647 = vld [vmem:[%s9 + $0xe8] sm:$0xff]
    %v2648 = vld [vmem:[%s9 + $0xf0] sm:$0xff]
    %v2649 = vld [vmem:[%s9 + $0xf8] sm:$0xff]
    %v2650 = vld [vmem:[%s9 + $0x100] sm:$0xff]
    %v2651 = vld [vmem:[%s9 + $0x108] sm:$0xff]
    %v2652 = vld [vmem:[%s9 + $0x110] sm:$0xff]
    %v2653 = vld [vmem:[%s9 + $0x118] sm:$0xff]
    %v2654 = vld [vmem:[%s9 + $0x120] sm:$0xff]
    %v2655 = vld [vmem:[%s9 + $0x128] sm:$0xff]
    %v2656 = vld [vmem:[%s9 + $0x130] sm:$0xff]
    %v2657 = vld [vmem:[%s9 + $0x138] sm:$0xff]
    %v2658 = vld [vmem:[%s9 + $0x140] sm:$0xff]
    %v2659 = vld [vmem:[%s9 + $0x148] sm:$0xff]
    %v2660 = vld [vmem:[%s9 + $0x150] sm:$0xff]
    %v2661 = vld [vmem:[%s9 + $0x158] sm:$0xff]
    %v2662 = vld [vmem:[%s9 + $0x160] sm:$0xff]
    %v2663 = vld [vmem:[%s9 + $0x168] sm:$0xff]
    %v2664 = vld [vmem:[%s9 + $0x170] sm:$0xff]
    %v2665 = vld [vmem:[%s9 + $0x178] sm:$0xff]
    %v2666 = vld [vmem:[%s9 + $0x180] sm:$0xff]
    %v2667 = vld [vmem:[%s9 + $0x188] sm:$0xff]
    %v2668 = vld [vmem:[%s9 + $0x190] sm:$0xff]
    %v2669 = vld [vmem:[%s9 + $0x198] sm:$0xff]
    %v2670 = vld [vmem:[%s9 + $0x1a0] sm:$0xff]
    %v2671 = vld [vmem:[%s9 + $0x1a8] sm:$0xff]
    %v2672 = vld [vmem:[%s9 + $0x1b0] sm:$0xff]
    %v2673 = vld [vmem:[%s9 + $0x1b8] sm:$0xff]
    %v2674 = vld [vmem:[%s9 + $0x1c0] sm:$0xff]
    %v2675 = vld [vmem:[%s9 + $0x1c8] sm:$0xff]
    %v2676 = vld [vmem:[%s9 + $0x1d0] sm:$0xff]
    %v2677 = vld [vmem:[%s9 + $0x1d8] sm:$0xff]
    %v2678 = vld [vmem:[%s9 + $0x1e0] sm:$0xff]
    %v2679 = vld [vmem:[%s9 + $0x1e8] sm:$0xff]
    %v2680 = vld [vmem:[%s9 + $0x1f0] sm:$0xff]
    %v2681 = vld [vmem:[%s9 + $0x1f8] sm:$0xff]
    %s2682 = scalar_lea.vmem %s9, 512
    %v2683 = vld [vmem:[%s2682] sm:$0xff]
    %v2684 = vld [vmem:[%s2682 + $0x8] sm:$0xff]
    %v2685 = vld [vmem:[%s2682 + $0x10] sm:$0xff]
    %v2686 = vld [vmem:[%s2682 + $0x18] sm:$0xff]
    %v2687 = vld [vmem:[%s2682 + $0x20] sm:$0xff]
    %v2688 = vld [vmem:[%s2682 + $0x28] sm:$0xff]
    %v2689 = vld [vmem:[%s2682 + $0x30] sm:$0xff]
    %v2690 = vld [vmem:[%s2682 + $0x38] sm:$0xff]
    %v2691 = vld [vmem:[%s2682 + $0x40] sm:$0xff]
    %v2692 = vld [vmem:[%s2682 + $0x48] sm:$0xff]
    %v2693 = vld [vmem:[%s2682 + $0x50] sm:$0xff]
    %v2694 = vld [vmem:[%s2682 + $0x58] sm:$0xff]
    %v2695 = vld [vmem:[%s2682 + $0x60] sm:$0xff]
    %v2696 = vld [vmem:[%s2682 + $0x68] sm:$0xff]
    %v2697 = vld [vmem:[%s2682 + $0x70] sm:$0xff]
    %v2698 = vld [vmem:[%s2682 + $0x78] sm:$0xff]
    %v2699 = vld [vmem:[%s2682 + $0x80] sm:$0xff]
    %v2700 = vld [vmem:[%s2682 + $0x88] sm:$0xff]
    %v2701 = vld [vmem:[%s2682 + $0x90] sm:$0xff]
    %v2702 = vld [vmem:[%s2682 + $0x98] sm:$0xff]
    %v2703 = vld [vmem:[%s2682 + $0xa0] sm:$0xff]
    %v2704 = vld [vmem:[%s2682 + $0xa8] sm:$0xff]
    %v2705 = vld [vmem:[%s2682 + $0xb0] sm:$0xff]
    %v2706 = vld [vmem:[%s2682 + $0xb8] sm:$0xff]
    %v2707 = vld [vmem:[%s2682 + $0xc0] sm:$0xff]
    %v2708 = vld [vmem:[%s2682 + $0xc8] sm:$0xff]
    %v2709 = vld [vmem:[%s2682 + $0xd0] sm:$0xff]
    %v2710 = vld [vmem:[%s2682 + $0xd8] sm:$0xff]
    %v2711 = vld [vmem:[%s2682 + $0xe0] sm:$0xff]
    %v2712 = vld [vmem:[%s2682 + $0xe8] sm:$0xff]
    %v2713 = vld [vmem:[%s2682 + $0xf0] sm:$0xff]
    %v2714 = vld [vmem:[%s2682 + $0xf8] sm:$0xff]
    %v2715 = vld [vmem:[%s2682 + $0x100] sm:$0xff]
    %v2716 = vld [vmem:[%s2682 + $0x108] sm:$0xff]
    %v2717 = vld [vmem:[%s2682 + $0x110] sm:$0xff]
    %v2718 = vld [vmem:[%s2682 + $0x118] sm:$0xff]
    %v2719 = vld [vmem:[%s2682 + $0x120] sm:$0xff]
    %v2720 = vld [vmem:[%s2682 + $0x128] sm:$0xff]
    %v2721 = vld [vmem:[%s2682 + $0x130] sm:$0xff]
    %v2722 = vld [vmem:[%s2682 + $0x138] sm:$0xff]
    %v2723 = vld [vmem:[%s2682 + $0x140] sm:$0xff]
    %v2724 = vld [vmem:[%s2682 + $0x148] sm:$0xff]
    %v2725 = vld [vmem:[%s2682 + $0x150] sm:$0xff]
    %v2726 = vld [vmem:[%s2682 + $0x158] sm:$0xff]
    %v2727 = vld [vmem:[%s2682 + $0x160] sm:$0xff]
    %v2728 = vld [vmem:[%s2682 + $0x168] sm:$0xff]
    %v2729 = vld [vmem:[%s2682 + $0x170] sm:$0xff]
    %v2730 = vld [vmem:[%s2682 + $0x178] sm:$0xff]
    %v2731 = vld [vmem:[%s2682 + $0x180] sm:$0xff]
    %v2732 = vld [vmem:[%s2682 + $0x188] sm:$0xff]
    %v2733 = vld [vmem:[%s2682 + $0x190] sm:$0xff]
    %v2734 = vld [vmem:[%s2682 + $0x198] sm:$0xff]
    %v2735 = vld [vmem:[%s2682 + $0x1a0] sm:$0xff]
    %v2736 = vld [vmem:[%s2682 + $0x1a8] sm:$0xff]
    %v2737 = vld [vmem:[%s2682 + $0x1b0] sm:$0xff]
    %v2738 = vld [vmem:[%s2682 + $0x1b8] sm:$0xff]
    %v2739 = vld [vmem:[%s2682 + $0x1c0] sm:$0xff]
    %v2740 = vld [vmem:[%s2682 + $0x1c8] sm:$0xff]
    %v2741 = vld [vmem:[%s2682 + $0x1d0] sm:$0xff]
    %v2742 = vld [vmem:[%s2682 + $0x1d8] sm:$0xff]
    %v2743 = vld [vmem:[%s2682 + $0x1e0] sm:$0xff]
    %v2744 = vld [vmem:[%s2682 + $0x1e8] sm:$0xff]
    %v2745 = vld [vmem:[%s2682 + $0x1f0] sm:$0xff]
    %v2746 = vld [vmem:[%s2682 + $0x1f8] sm:$0xff]
    %v2748 = vrot.slane %v2617, 2
    %v2749 = vsel %vm73, %v2748, 0
    %2751 = vmatprep.subr.mxu0 0.0
    %2752 = vmatpush1.msra.mxu0 0.0
    %2753 = vmatprep.subr.mxu0 0.0
    %2754 = vmatpush1.msra.mxu0 0.0
    %2755 = vmatprep.subr.mxu0 0.0
    %2756 = vmatpush1.msra.mxu0 0.0
    %2757 = vmatprep.subr.mxu0 0.0
    %2758 = vmatpush1.msra.mxu0 0.0
    %2759 = vmatprep.subr.mxu0 0.0
    %2760 = vmatpush1.msra.mxu0 0.0
    %2761 = vmatprep.subr.mxu0 0.0
    %2762 = vmatpush1.msra.mxu0 0.0
    %2763 = vmatprep.subr.mxu0 0.0
    %2764 = vmatpush1.msra.mxu0 0.0
    %2765 = vmatprep.subr.mxu0 0.0
    %2766 = vmatpush1.msra.mxu0 0.0
    %2767 = vmatprep.subr.mxu0 %v2740
    %2768 = vmatpush1.msra.mxu0 %v2739
    %2769 = vmatprep.subr.mxu0 %v2732
    %2770 = vmatpush1.msra.mxu0 %v2731
    %2771 = vmatprep.subr.mxu0 %v2724
    %2772 = vmatpush1.msra.mxu0 %v2723
    %2773 = vmatprep.subr.mxu0 %v2716
    %2774 = vmatpush1.msra.mxu0 %v2715
    %2775 = vmatprep.subr.mxu0 %v2708
    %2776 = vmatpush1.msra.mxu0 %v2707
    %2777 = vmatprep.subr.mxu0 %v2700
    %2778 = vmatpush1.msra.mxu0 %v2699
    %2779 = vmatprep.subr.mxu0 %v2692
    %2780 = vmatpush1.msra.mxu0 %v2691
    %2781 = vmatprep.subr.mxu0 %v2684
    %2782 = vmatpush1.msra.mxu0 %v2683
    %2783 = vmatprep.subr.mxu0 0.0
    %2784 = vmatpush2.msra.mxu0 0.0
    %2785 = vmatprep.subr.mxu0 0.0
    %2786 = vmatpush2.msra.mxu0 0.0
    %2787 = vmatprep.subr.mxu0 0.0
    %2788 = vmatpush2.msra.mxu0 0.0
    %2789 = vmatprep.subr.mxu0 0.0
    %2790 = vmatpush2.msra.mxu0 0.0
    %2791 = vmatprep.subr.mxu0 0.0
    %2792 = vmatpush2.msra.mxu0 0.0
    %2793 = vmatprep.subr.mxu0 0.0
    %2794 = vmatpush2.msra.mxu0 0.0
    %2795 = vmatprep.subr.mxu0 0.0
    %2796 = vmatpush2.msra.mxu0 0.0
    %2797 = vmatprep.subr.mxu0 0.0
    %2798 = vmatpush2.msra.mxu0 0.0
    %2799 = vmatprep.subr.mxu0 0.0
    %2800 = vmatpush2.msra.mxu0 0.0
    %2801 = vmatprep.subr.mxu0 0.0
    %2802 = vmatpush2.msra.mxu0 0.0
    %2803 = vmatprep.subr.mxu0 0.0
    %2804 = vmatpush2.msra.mxu0 0.0
    %2805 = vmatprep.subr.mxu0 0.0
    %2806 = vmatpush2.msra.mxu0 0.0
    %2807 = vmatprep.subr.mxu0 0.0
    %2808 = vmatpush2.msra.mxu0 0.0
    %2809 = vmatprep.subr.mxu0 0.0
    %2810 = vmatpush2.msra.mxu0 0.0
    %2811 = vmatprep.subr.mxu0 0.0
    %2812 = vmatpush2.msra.mxu0 0.0
    %2813 = vmatprep.subr.mxu0 0.0
    %2814 = vmatpush2.msra.mxu0 0.0
    %2815 = vmatprep.mubr.f32.mxu0 0.0
    %2816 = vmatmul.mubr.f32.gmra.mxu0 %v2749
    %v2817 = vpop.f32.mrf.mxu0
    %v2818 = vadd.f32 0.0, %v2817
    %v2819 = vpop.f32.mrf.mxu0
    %v2820 = vadd.f32 0.0, %v2819
    %2821 = vdwg.mxu0
    %2822 = vmatprep.subr.mxu0 0.0
    %2823 = vmatpush1.msra.mxu0 0.0
    %2824 = vmatprep.subr.mxu0 0.0
    %2825 = vmatpush1.msra.mxu0 0.0
    %2826 = vmatprep.subr.mxu0 0.0
    %2827 = vmatpush1.msra.mxu0 0.0
    %2828 = vmatprep.subr.mxu0 0.0
    %2829 = vmatpush1.msra.mxu0 0.0
    %2830 = vmatprep.subr.mxu0 0.0
    %2831 = vmatpush1.msra.mxu0 0.0
    %2832 = vmatprep.subr.mxu0 0.0
    %2833 = vmatpush1.msra.mxu0 0.0
    %2834 = vmatprep.subr.mxu0 0.0
    %2835 = vmatpush1.msra.mxu0 0.0
    %2836 = vmatprep.subr.mxu0 0.0
    %2837 = vmatpush1.msra.mxu0 0.0
    %2838 = vmatprep.subr.mxu0 %v2742
    %2839 = vmatpush1.msra.mxu0 %v2741
    %2840 = vmatprep.subr.mxu0 %v2734
    %2841 = vmatpush1.msra.mxu0 %v2733
    %2842 = vmatprep.subr.mxu0 %v2726
    %2843 = vmatpush1.msra.mxu0 %v2725
    %2844 = vmatprep.subr.mxu0 %v2718
    %2845 = vmatpush1.msra.mxu0 %v2717
    %2846 = vmatprep.subr.mxu0 %v2710
    %2847 = vmatpush1.msra.mxu0 %v2709
    %2848 = vmatprep.subr.mxu0 %v2702
    %2849 = vmatpush1.msra.mxu0 %v2701
    %2850 = vmatprep.subr.mxu0 %v2694
    %2851 = vmatpush1.msra.mxu0 %v2693
    %2852 = vmatprep.subr.mxu0 %v2686
    %2853 = vmatpush1.msra.mxu0 %v2685
    %2854 = vmatprep.subr.mxu0 0.0
    %2855 = vmatpush2.msra.mxu0 0.0
    %2856 = vmatprep.subr.mxu0 0.0
    %2857 = vmatpush2.msra.mxu0 0.0
    %2858 = vmatprep.subr.mxu0 0.0
    %2859 = vmatpush2.msra.mxu0 0.0
    %2860 = vmatprep.subr.mxu0 0.0
    %2861 = vmatpush2.msra.mxu0 0.0
    %2862 = vmatprep.subr.mxu0 0.0
    %2863 = vmatpush2.msra.mxu0 0.0
    %2864 = vmatprep.subr.mxu0 0.0
    %2865 = vmatpush2.msra.mxu0 0.0
    %2866 = vmatprep.subr.mxu0 0.0
    %2867 = vmatpush2.msra.mxu0 0.0
    %2868 = vmatprep.subr.mxu0 0.0
    %2869 = vmatpush2.msra.mxu0 0.0
    %2870 = vmatprep.subr.mxu0 0.0
    %2871 = vmatpush2.msra.mxu0 0.0
    %2872 = vmatprep.subr.mxu0 0.0
    %2873 = vmatpush2.msra.mxu0 0.0
    %2874 = vmatprep.subr.mxu0 0.0
    %2875 = vmatpush2.msra.mxu0 0.0
    %2876 = vmatprep.subr.mxu0 0.0
    %2877 = vmatpush2.msra.mxu0 0.0
    %2878 = vmatprep.subr.mxu0 0.0
    %2879 = vmatpush2.msra.mxu0 0.0
    %2880 = vmatprep.subr.mxu0 0.0
    %2881 = vmatpush2.msra.mxu0 0.0
    %2882 = vmatprep.subr.mxu0 0.0
    %2883 = vmatpush2.msra.mxu0 0.0
    %2884 = vmatprep.subr.mxu0 0.0
    %2885 = vmatpush2.msra.mxu0 0.0
    %2886 = vmatprep.mubr.f32.mxu0 0.0
    %2887 = vmatmul.mubr.f32.gmra.mxu0 %v2749
    %v2888 = vpop.f32.mrf.mxu0
    %v2889 = vadd.f32 0.0, %v2888
    %v2890 = vpop.f32.mrf.mxu0
    %v2891 = vadd.f32 0.0, %v2890
    %2892 = vdwg.mxu0
    %2893 = vmatprep.subr.mxu0 0.0
    %2894 = vmatpush1.msra.mxu0 0.0
    %2895 = vmatprep.subr.mxu0 0.0
    %2896 = vmatpush1.msra.mxu0 0.0
    %2897 = vmatprep.subr.mxu0 0.0
    %2898 = vmatpush1.msra.mxu0 0.0
    %2899 = vmatprep.subr.mxu0 0.0
    %2900 = vmatpush1.msra.mxu0 0.0
    %2901 = vmatprep.subr.mxu0 0.0
    %2902 = vmatpush1.msra.mxu0 0.0
    %2903 = vmatprep.subr.mxu0 0.0
    %2904 = vmatpush1.msra.mxu0 0.0
    %2905 = vmatprep.subr.mxu0 0.0
    %2906 = vmatpush1.msra.mxu0 0.0
    %2907 = vmatprep.subr.mxu0 0.0
    %2908 = vmatpush1.msra.mxu0 0.0
    %2909 = vmatprep.subr.mxu0 %v2744
    %2910 = vmatpush1.msra.mxu0 %v2743
    %2911 = vmatprep.subr.mxu0 %v2736
    %2912 = vmatpush1.msra.mxu0 %v2735
    %2913 = vmatprep.subr.mxu0 %v2728
    %2914 = vmatpush1.msra.mxu0 %v2727
    %2915 = vmatprep.subr.mxu0 %v2720
    %2916 = vmatpush1.msra.mxu0 %v2719
    %2917 = vmatprep.subr.mxu0 %v2712
    %2918 = vmatpush1.msra.mxu0 %v2711
    %2919 = vmatprep.subr.mxu0 %v2704
    %2920 = vmatpush1.msra.mxu0 %v2703
    %2921 = vmatprep.subr.mxu0 %v2696
    %2922 = vmatpush1.msra.mxu0 %v2695
    %2923 = vmatprep.subr.mxu0 %v2688
    %2924 = vmatpush1.msra.mxu0 %v2687
    %2925 = vmatprep.subr.mxu0 0.0
    %2926 = vmatpush2.msra.mxu0 0.0
    %2927 = vmatprep.subr.mxu0 0.0
    %2928 = vmatpush2.msra.mxu0 0.0
    %2929 = vmatprep.subr.mxu0 0.0
    %2930 = vmatpush2.msra.mxu0 0.0
    %2931 = vmatprep.subr.mxu0 0.0
    %2932 = vmatpush2.msra.mxu0 0.0
    %2933 = vmatprep.subr.mxu0 0.0
    %2934 = vmatpush2.msra.mxu0 0.0
    %2935 = vmatprep.subr.mxu0 0.0
    %2936 = vmatpush2.msra.mxu0 0.0
    %2937 = vmatprep.subr.mxu0 0.0
    %2938 = vmatpush2.msra.mxu0 0.0
    %2939 = vmatprep.subr.mxu0 0.0
    %2940 = vmatpush2.msra.mxu0 0.0
    %2941 = vmatprep.subr.mxu0 0.0
    %2942 = vmatpush2.msra.mxu0 0.0
    %2943 = vmatprep.subr.mxu0 0.0
    %2944 = vmatpush2.msra.mxu0 0.0
    %2945 = vmatprep.subr.mxu0 0.0
    %2946 = vmatpush2.msra.mxu0 0.0
    %2947 = vmatprep.subr.mxu0 0.0
    %2948 = vmatpush2.msra.mxu0 0.0
    %2949 = vmatprep.subr.mxu0 0.0
    %2950 = vmatpush2.msra.mxu0 0.0
    %2951 = vmatprep.subr.mxu0 0.0
    %2952 = vmatpush2.msra.mxu0 0.0
    %2953 = vmatprep.subr.mxu0 0.0
    %2954 = vmatpush2.msra.mxu0 0.0
    %2955 = vmatprep.subr.mxu0 0.0
    %2956 = vmatpush2.msra.mxu0 0.0
    %2957 = vmatprep.mubr.f32.mxu0 0.0
    %2958 = vmatmul.mubr.f32.gmra.mxu0 %v2749
    %v2959 = vpop.f32.mrf.mxu0
    %v2960 = vadd.f32 0.0, %v2959
    %v2961 = vpop.f32.mrf.mxu0
    %v2962 = vadd.f32 0.0, %v2961
    %2963 = vdwg.mxu0
    %2964 = vmatprep.subr.mxu0 0.0
    %2965 = vmatpush1.msra.mxu0 0.0
    %2966 = vmatprep.subr.mxu0 0.0
    %2967 = vmatpush1.msra.mxu0 0.0
    %2968 = vmatprep.subr.mxu0 0.0
    %2969 = vmatpush1.msra.mxu0 0.0
    %2970 = vmatprep.subr.mxu0 0.0
    %2971 = vmatpush1.msra.mxu0 0.0
    %2972 = vmatprep.subr.mxu0 0.0
    %2973 = vmatpush1.msra.mxu0 0.0
    %2974 = vmatprep.subr.mxu0 0.0
    %2975 = vmatpush1.msra.mxu0 0.0
    %2976 = vmatprep.subr.mxu0 0.0
    %2977 = vmatpush1.msra.mxu0 0.0
    %2978 = vmatprep.subr.mxu0 0.0
    %2979 = vmatpush1.msra.mxu0 0.0
    %2980 = vmatprep.subr.mxu0 %v2746
    %2981 = vmatpush1.msra.mxu0 %v2745
    %2982 = vmatprep.subr.mxu0 %v2738
    %2983 = vmatpush1.msra.mxu0 %v2737
    %2984 = vmatprep.subr.mxu0 %v2730
    %2985 = vmatpush1.msra.mxu0 %v2729
    %2986 = vmatprep.subr.mxu0 %v2722
    %2987 = vmatpush1.msra.mxu0 %v2721
    %2988 = vmatprep.subr.mxu0 %v2714
    %2989 = vmatpush1.msra.mxu0 %v2713
    %2990 = vmatprep.subr.mxu0 %v2706
    %2991 = vmatpush1.msra.mxu0 %v2705
    %2992 = vmatprep.subr.mxu0 %v2698
    %2993 = vmatpush1.msra.mxu0 %v2697
    %2994 = vmatprep.subr.mxu0 %v2690
    %2995 = vmatpush1.msra.mxu0 %v2689
    %2996 = vmatprep.subr.mxu0 0.0
    %2997 = vmatpush2.msra.mxu0 0.0
    %2998 = vmatprep.subr.mxu0 0.0
    %2999 = vmatpush2.msra.mxu0 0.0
    %3000 = vmatprep.subr.mxu0 0.0
    %3001 = vmatpush2.msra.mxu0 0.0
    %3002 = vmatprep.subr.mxu0 0.0
    %3003 = vmatpush2.msra.mxu0 0.0
    %3004 = vmatprep.subr.mxu0 0.0
    %3005 = vmatpush2.msra.mxu0 0.0
    %3006 = vmatprep.subr.mxu0 0.0
    %3007 = vmatpush2.msra.mxu0 0.0
    %3008 = vmatprep.subr.mxu0 0.0
    %3009 = vmatpush2.msra.mxu0 0.0
    %3010 = vmatprep.subr.mxu0 0.0
    %3011 = vmatpush2.msra.mxu0 0.0
    %3012 = vmatprep.subr.mxu0 0.0
    %3013 = vmatpush2.msra.mxu0 0.0
    %3014 = vmatprep.subr.mxu0 0.0
    %3015 = vmatpush2.msra.mxu0 0.0
    %3016 = vmatprep.subr.mxu0 0.0
    %3017 = vmatpush2.msra.mxu0 0.0
    %3018 = vmatprep.subr.mxu0 0.0
    %3019 = vmatpush2.msra.mxu0 0.0
    %3020 = vmatprep.subr.mxu0 0.0
    %3021 = vmatpush2.msra.mxu0 0.0
    %3022 = vmatprep.subr.mxu0 0.0
    %3023 = vmatpush2.msra.mxu0 0.0
    %3024 = vmatprep.subr.mxu0 0.0
    %3025 = vmatpush2.msra.mxu0 0.0
    %3026 = vmatprep.subr.mxu0 0.0
    %3027 = vmatpush2.msra.mxu0 0.0
    %3028 = vmatprep.mubr.f32.mxu0 0.0
    %3029 = vmatmul.mubr.f32.gmra.mxu0 %v2749
    %v3030 = vpop.f32.mrf.mxu0
    %v3031 = vadd.f32 0.0, %v3030
    %v3032 = vpop.f32.mrf.mxu0
    %v3033 = vadd.f32 0.0, %v3032
    %3034 = vdwg.mxu0
    %v3035 = vsel %vm73, %v2617, 0
    %3037 = vmatprep.subr.mxu0 0.0
    %3038 = vmatpush1.msra.mxu0 0.0
    %3039 = vmatprep.subr.mxu0 0.0
    %3040 = vmatpush1.msra.mxu0 0.0
    %3041 = vmatprep.subr.mxu0 0.0
    %3042 = vmatpush1.msra.mxu0 0.0
    %3043 = vmatprep.subr.mxu0 0.0
    %3044 = vmatpush1.msra.mxu0 0.0
    %3045 = vmatprep.subr.mxu0 0.0
    %3046 = vmatpush1.msra.mxu0 0.0
    %3047 = vmatprep.subr.mxu0 0.0
    %3048 = vmatpush1.msra.mxu0 0.0
    %3049 = vmatprep.subr.mxu0 0.0
    %3050 = vmatpush1.msra.mxu0 0.0
    %3051 = vmatprep.subr.mxu0 0.0
    %3052 = vmatpush1.msra.mxu0 0.0
    %3053 = vmatprep.subr.mxu0 %v2675
    %3054 = vmatpush1.msra.mxu0 %v2674
    %3055 = vmatprep.subr.mxu0 %v2667
    %3056 = vmatpush1.msra.mxu0 %v2666
    %3057 = vmatprep.subr.mxu0 %v2659
    %3058 = vmatpush1.msra.mxu0 %v2658
    %3059 = vmatprep.subr.mxu0 %v2651
    %3060 = vmatpush1.msra.mxu0 %v2650
    %3061 = vmatprep.subr.mxu0 %v2643
    %3062 = vmatpush1.msra.mxu0 %v2642
    %3063 = vmatprep.subr.mxu0 %v2635
    %3064 = vmatpush1.msra.mxu0 %v2634
    %3065 = vmatprep.subr.mxu0 %v2627
    %3066 = vmatpush1.msra.mxu0 %v2626
    %3067 = vmatprep.subr.mxu0 %v2619
    %3068 = vmatpush1.msra.mxu0 %v2618
    %3069 = vmatprep.subr.mxu0 0.0
    %3070 = vmatpush2.msra.mxu0 0.0
    %3071 = vmatprep.subr.mxu0 0.0
    %3072 = vmatpush2.msra.mxu0 0.0
    %3073 = vmatprep.subr.mxu0 0.0
    %3074 = vmatpush2.msra.mxu0 0.0
    %3075 = vmatprep.subr.mxu0 0.0
    %3076 = vmatpush2.msra.mxu0 0.0
    %3077 = vmatprep.subr.mxu0 0.0
    %3078 = vmatpush2.msra.mxu0 0.0
    %3079 = vmatprep.subr.mxu0 0.0
    %3080 = vmatpush2.msra.mxu0 0.0
    %3081 = vmatprep.subr.mxu0 0.0
    %3082 = vmatpush2.msra.mxu0 0.0
    %3083 = vmatprep.subr.mxu0 0.0
    %3084 = vmatpush2.msra.mxu0 0.0
    %3085 = vmatprep.subr.mxu0 0.0
    %3086 = vmatpush2.msra.mxu0 0.0
    %3087 = vmatprep.subr.mxu0 0.0
    %3088 = vmatpush2.msra.mxu0 0.0
    %3089 = vmatprep.subr.mxu0 0.0
    %3090 = vmatpush2.msra.mxu0 0.0
    %3091 = vmatprep.subr.mxu0 0.0
    %3092 = vmatpush2.msra.mxu0 0.0
    %3093 = vmatprep.subr.mxu0 0.0
    %3094 = vmatpush2.msra.mxu0 0.0
    %3095 = vmatprep.subr.mxu0 0.0
    %3096 = vmatpush2.msra.mxu0 0.0
    %3097 = vmatprep.subr.mxu0 0.0
    %3098 = vmatpush2.msra.mxu0 0.0
    %3099 = vmatprep.subr.mxu0 0.0
    %3100 = vmatpush2.msra.mxu0 0.0
    %3101 = vmatprep.mubr.f32.mxu0 0.0
    %3102 = vmatmul.mubr.f32.gmra.mxu0 %v3035
    %v3103 = vpop.f32.mrf.mxu0
    %v3104 = vadd.f32 %v2818, %v3103
    %v3105 = vpop.f32.mrf.mxu0
    %v3106 = vadd.f32 %v2820, %v3105
    %3107 = vdwg.mxu0
    %3108 = vmatprep.subr.mxu0 0.0
    %3109 = vmatpush1.msra.mxu0 0.0
    %3110 = vmatprep.subr.mxu0 0.0
    %3111 = vmatpush1.msra.mxu0 0.0
    %3112 = vmatprep.subr.mxu0 0.0
    %3113 = vmatpush1.msra.mxu0 0.0
    %3114 = vmatprep.subr.mxu0 0.0
    %3115 = vmatpush1.msra.mxu0 0.0
    %3116 = vmatprep.subr.mxu0 0.0
    %3117 = vmatpush1.msra.mxu0 0.0
    %3118 = vmatprep.subr.mxu0 0.0
    %3119 = vmatpush1.msra.mxu0 0.0
    %3120 = vmatprep.subr.mxu0 0.0
    %3121 = vmatpush1.msra.mxu0 0.0
    %3122 = vmatprep.subr.mxu0 0.0
    %3123 = vmatpush1.msra.mxu0 0.0
    %3124 = vmatprep.subr.mxu0 %v2677
    %3125 = vmatpush1.msra.mxu0 %v2676
    %3126 = vmatprep.subr.mxu0 %v2669
    %3127 = vmatpush1.msra.mxu0 %v2668
    %3128 = vmatprep.subr.mxu0 %v2661
    %3129 = vmatpush1.msra.mxu0 %v2660
    %3130 = vmatprep.subr.mxu0 %v2653
    %3131 = vmatpush1.msra.mxu0 %v2652
    %3132 = vmatprep.subr.mxu0 %v2645
    %3133 = vmatpush1.msra.mxu0 %v2644
    %3134 = vmatprep.subr.mxu0 %v2637
    %3135 = vmatpush1.msra.mxu0 %v2636
    %3136 = vmatprep.subr.mxu0 %v2629
    %3137 = vmatpush1.msra.mxu0 %v2628
    %3138 = vmatprep.subr.mxu0 %v2621
    %3139 = vmatpush1.msra.mxu0 %v2620
    %3140 = vmatprep.subr.mxu0 0.0
    %3141 = vmatpush2.msra.mxu0 0.0
    %3142 = vmatprep.subr.mxu0 0.0
    %3143 = vmatpush2.msra.mxu0 0.0
    %3144 = vmatprep.subr.mxu0 0.0
    %3145 = vmatpush2.msra.mxu0 0.0
    %3146 = vmatprep.subr.mxu0 0.0
    %3147 = vmatpush2.msra.mxu0 0.0
    %3148 = vmatprep.subr.mxu0 0.0
    %3149 = vmatpush2.msra.mxu0 0.0
    %3150 = vmatprep.subr.mxu0 0.0
    %3151 = vmatpush2.msra.mxu0 0.0
    %3152 = vmatprep.subr.mxu0 0.0
    %3153 = vmatpush2.msra.mxu0 0.0
    %3154 = vmatprep.subr.mxu0 0.0
    %3155 = vmatpush2.msra.mxu0 0.0
    %3156 = vmatprep.subr.mxu0 0.0
    %3157 = vmatpush2.msra.mxu0 0.0
    %3158 = vmatprep.subr.mxu0 0.0
    %3159 = vmatpush2.msra.mxu0 0.0
    %3160 = vmatprep.subr.mxu0 0.0
    %3161 = vmatpush2.msra.mxu0 0.0
    %3162 = vmatprep.subr.mxu0 0.0
    %3163 = vmatpush2.msra.mxu0 0.0
    %3164 = vmatprep.subr.mxu0 0.0
    %3165 = vmatpush2.msra.mxu0 0.0
    %3166 = vmatprep.subr.mxu0 0.0
    %3167 = vmatpush2.msra.mxu0 0.0
    %3168 = vmatprep.subr.mxu0 0.0
    %3169 = vmatpush2.msra.mxu0 0.0
    %3170 = vmatprep.subr.mxu0 0.0
    %3171 = vmatpush2.msra.mxu0 0.0
    %3172 = vmatprep.mubr.f32.mxu0 0.0
    %3173 = vmatmul.mubr.f32.gmra.mxu0 %v3035
    %v3174 = vpop.f32.mrf.mxu0
    %v3175 = vadd.f32 %v2889, %v3174
    %v3176 = vpop.f32.mrf.mxu0
    %v3177 = vadd.f32 %v2891, %v3176
    %3178 = vdwg.mxu0
    %3179 = vmatprep.subr.mxu0 0.0
    %3180 = vmatpush1.msra.mxu0 0.0
    %3181 = vmatprep.subr.mxu0 0.0
    %3182 = vmatpush1.msra.mxu0 0.0
    %3183 = vmatprep.subr.mxu0 0.0
    %3184 = vmatpush1.msra.mxu0 0.0
    %3185 = vmatprep.subr.mxu0 0.0
    %3186 = vmatpush1.msra.mxu0 0.0
    %3187 = vmatprep.subr.mxu0 0.0
    %3188 = vmatpush1.msra.mxu0 0.0
    %3189 = vmatprep.subr.mxu0 0.0
    %3190 = vmatpush1.msra.mxu0 0.0
    %3191 = vmatprep.subr.mxu0 0.0
    %3192 = vmatpush1.msra.mxu0 0.0
    %3193 = vmatprep.subr.mxu0 0.0
    %3194 = vmatpush1.msra.mxu0 0.0
    %3195 = vmatprep.subr.mxu0 %v2679
    %3196 = vmatpush1.msra.mxu0 %v2678
    %3197 = vmatprep.subr.mxu0 %v2671
    %3198 = vmatpush1.msra.mxu0 %v2670
    %3199 = vmatprep.subr.mxu0 %v2663
    %3200 = vmatpush1.msra.mxu0 %v2662
    %3201 = vmatprep.subr.mxu0 %v2655
    %3202 = vmatpush1.msra.mxu0 %v2654
    %3203 = vmatprep.subr.mxu0 %v2647
    %3204 = vmatpush1.msra.mxu0 %v2646
    %3205 = vmatprep.subr.mxu0 %v2639
    %3206 = vmatpush1.msra.mxu0 %v2638
    %3207 = vmatprep.subr.mxu0 %v2631
    %3208 = vmatpush1.msra.mxu0 %v2630
    %3209 = vmatprep.subr.mxu0 %v2623
    %3210 = vmatpush1.msra.mxu0 %v2622
    %3211 = vmatprep.subr.mxu0 0.0
    %3212 = vmatpush2.msra.mxu0 0.0
    %3213 = vmatprep.subr.mxu0 0.0
    %3214 = vmatpush2.msra.mxu0 0.0
    %3215 = vmatprep.subr.mxu0 0.0
    %3216 = vmatpush2.msra.mxu0 0.0
    %3217 = vmatprep.subr.mxu0 0.0
    %3218 = vmatpush2.msra.mxu0 0.0
    %3219 = vmatprep.subr.mxu0 0.0
    %3220 = vmatpush2.msra.mxu0 0.0
    %3221 = vmatprep.subr.mxu0 0.0
    %3222 = vmatpush2.msra.mxu0 0.0
    %3223 = vmatprep.subr.mxu0 0.0
    %3224 = vmatpush2.msra.mxu0 0.0
    %3225 = vmatprep.subr.mxu0 0.0
    %3226 = vmatpush2.msra.mxu0 0.0
    %3227 = vmatprep.subr.mxu0 0.0
    %3228 = vmatpush2.msra.mxu0 0.0
    %3229 = vmatprep.subr.mxu0 0.0
    %3230 = vmatpush2.msra.mxu0 0.0
    %3231 = vmatprep.subr.mxu0 0.0
    %3232 = vmatpush2.msra.mxu0 0.0
    %3233 = vmatprep.subr.mxu0 0.0
    %3234 = vmatpush2.msra.mxu0 0.0
    %3235 = vmatprep.subr.mxu0 0.0
    %3236 = vmatpush2.msra.mxu0 0.0
    %3237 = vmatprep.subr.mxu0 0.0
    %3238 = vmatpush2.msra.mxu0 0.0
    %3239 = vmatprep.subr.mxu0 0.0
    %3240 = vmatpush2.msra.mxu0 0.0
    %3241 = vmatprep.subr.mxu0 0.0
    %3242 = vmatpush2.msra.mxu0 0.0
    %3243 = vmatprep.mubr.f32.mxu0 0.0
    %3244 = vmatmul.mubr.f32.gmra.mxu0 %v3035
    %v3245 = vpop.f32.mrf.mxu0
    %v3246 = vadd.f32 %v2960, %v3245
    %v3247 = vpop.f32.mrf.mxu0
    %v3248 = vadd.f32 %v2962, %v3247
    %3249 = vdwg.mxu0
    %3250 = vmatprep.subr.mxu0 0.0
    %3251 = vmatpush1.msra.mxu0 0.0
    %3252 = vmatprep.subr.mxu0 0.0
    %3253 = vmatpush1.msra.mxu0 0.0
    %3254 = vmatprep.subr.mxu0 0.0
    %3255 = vmatpush1.msra.mxu0 0.0
    %3256 = vmatprep.subr.mxu0 0.0
    %3257 = vmatpush1.msra.mxu0 0.0
    %3258 = vmatprep.subr.mxu0 0.0
    %3259 = vmatpush1.msra.mxu0 0.0
    %3260 = vmatprep.subr.mxu0 0.0
    %3261 = vmatpush1.msra.mxu0 0.0
    %3262 = vmatprep.subr.mxu0 0.0
    %3263 = vmatpush1.msra.mxu0 0.0
    %3264 = vmatprep.subr.mxu0 0.0
    %3265 = vmatpush1.msra.mxu0 0.0
    %3266 = vmatprep.subr.mxu0 %v2681
    %3267 = vmatpush1.msra.mxu0 %v2680
    %3268 = vmatprep.subr.mxu0 %v2673
    %3269 = vmatpush1.msra.mxu0 %v2672
    %3270 = vmatprep.subr.mxu0 %v2665
    %3271 = vmatpush1.msra.mxu0 %v2664
    %3272 = vmatprep.subr.mxu0 %v2657
    %3273 = vmatpush1.msra.mxu0 %v2656
    %3274 = vmatprep.subr.mxu0 %v2649
    %3275 = vmatpush1.msra.mxu0 %v2648
    %3276 = vmatprep.subr.mxu0 %v2641
    %3277 = vmatpush1.msra.mxu0 %v2640
    %3278 = vmatprep.subr.mxu0 %v2633
    %3279 = vmatpush1.msra.mxu0 %v2632
    %3280 = vmatprep.subr.mxu0 %v2625
    %3281 = vmatpush1.msra.mxu0 %v2624
    %3282 = vmatprep.subr.mxu0 0.0
    %3283 = vmatpush2.msra.mxu0 0.0
    %3284 = vmatprep.subr.mxu0 0.0
    %3285 = vmatpush2.msra.mxu0 0.0
    %3286 = vmatprep.subr.mxu0 0.0
    %3287 = vmatpush2.msra.mxu0 0.0
    %3288 = vmatprep.subr.mxu0 0.0
    %3289 = vmatpush2.msra.mxu0 0.0
    %3290 = vmatprep.subr.mxu0 0.0
    %3291 = vmatpush2.msra.mxu0 0.0
    %3292 = vmatprep.subr.mxu0 0.0
    %3293 = vmatpush2.msra.mxu0 0.0
    %3294 = vmatprep.subr.mxu0 0.0
    %3295 = vmatpush2.msra.mxu0 0.0
    %3296 = vmatprep.subr.mxu0 0.0
    %3297 = vmatpush2.msra.mxu0 0.0
    %3298 = vmatprep.subr.mxu0 0.0
    %3299 = vmatpush2.msra.mxu0 0.0
    %3300 = vmatprep.subr.mxu0 0.0
    %3301 = vmatpush2.msra.mxu0 0.0
    %3302 = vmatprep.subr.mxu0 0.0
    %3303 = vmatpush2.msra.mxu0 0.0
    %3304 = vmatprep.subr.mxu0 0.0
    %3305 = vmatpush2.msra.mxu0 0.0
    %3306 = vmatprep.subr.mxu0 0.0
    %3307 = vmatpush2.msra.mxu0 0.0
    %3308 = vmatprep.subr.mxu0 0.0
    %3309 = vmatpush2.msra.mxu0 0.0
    %3310 = vmatprep.subr.mxu0 0.0
    %3311 = vmatpush2.msra.mxu0 0.0
    %3312 = vmatprep.subr.mxu0 0.0
    %3313 = vmatpush2.msra.mxu0 0.0
    %3314 = vmatprep.mubr.f32.mxu0 0.0
    %3315 = vmatmul.mubr.f32.gmra.mxu0 %v3035
    %v3316 = vpop.f32.mrf.mxu0
    %v3317 = vadd.f32 %v3031, %v3316
    %v3318 = vpop.f32.mrf.mxu0
    %v3319 = vadd.f32 %v3033, %v3318
    %3320 = vdwg.mxu0
    %s3321 = scalar_lea.vmem %s9, 1024
    %v3322 = vld [vmem:[%s3321] sm:$0xff]
    %v3323 = vld [vmem:[%s3321 + $0x8] sm:$0xff]
    %v3324 = vld [vmem:[%s3321 + $0x10] sm:$0xff]
    %v3325 = vld [vmem:[%s3321 + $0x18] sm:$0xff]
    %v3326 = vld [vmem:[%s3321 + $0x20] sm:$0xff]
    %v3327 = vld [vmem:[%s3321 + $0x28] sm:$0xff]
    %v3328 = vld [vmem:[%s3321 + $0x30] sm:$0xff]
    %v3329 = vld [vmem:[%s3321 + $0x38] sm:$0xff]
    %v3330 = vld [vmem:[%s3321 + $0x40] sm:$0xff]
    %v3331 = vld [vmem:[%s3321 + $0x48] sm:$0xff]
    %v3332 = vld [vmem:[%s3321 + $0x50] sm:$0xff]
    %v3333 = vld [vmem:[%s3321 + $0x58] sm:$0xff]
    %v3334 = vld [vmem:[%s3321 + $0x60] sm:$0xff]
    %v3335 = vld [vmem:[%s3321 + $0x68] sm:$0xff]
    %v3336 = vld [vmem:[%s3321 + $0x70] sm:$0xff]
    %v3337 = vld [vmem:[%s3321 + $0x78] sm:$0xff]
    %v3338 = vld [vmem:[%s3321 + $0x80] sm:$0xff]
    %v3339 = vld [vmem:[%s3321 + $0x88] sm:$0xff]
    %v3340 = vld [vmem:[%s3321 + $0x90] sm:$0xff]
    %v3341 = vld [vmem:[%s3321 + $0x98] sm:$0xff]
    %v3342 = vld [vmem:[%s3321 + $0xa0] sm:$0xff]
    %v3343 = vld [vmem:[%s3321 + $0xa8] sm:$0xff]
    %v3344 = vld [vmem:[%s3321 + $0xb0] sm:$0xff]
    %v3345 = vld [vmem:[%s3321 + $0xb8] sm:$0xff]
    %v3346 = vld [vmem:[%s3321 + $0xc0] sm:$0xff]
    %v3347 = vld [vmem:[%s3321 + $0xc8] sm:$0xff]
    %v3348 = vld [vmem:[%s3321 + $0xd0] sm:$0xff]
    %v3349 = vld [vmem:[%s3321 + $0xd8] sm:$0xff]
    %v3350 = vld [vmem:[%s3321 + $0xe0] sm:$0xff]
    %v3351 = vld [vmem:[%s3321 + $0xe8] sm:$0xff]
    %v3352 = vld [vmem:[%s3321 + $0xf0] sm:$0xff]
    %v3353 = vld [vmem:[%s3321 + $0xf8] sm:$0xff]
    %v3354 = vld [vmem:[%s3321 + $0x100] sm:$0xff]
    %v3355 = vld [vmem:[%s3321 + $0x108] sm:$0xff]
    %v3356 = vld [vmem:[%s3321 + $0x110] sm:$0xff]
    %v3357 = vld [vmem:[%s3321 + $0x118] sm:$0xff]
    %v3358 = vld [vmem:[%s3321 + $0x120] sm:$0xff]
    %v3359 = vld [vmem:[%s3321 + $0x128] sm:$0xff]
    %v3360 = vld [vmem:[%s3321 + $0x130] sm:$0xff]
    %v3361 = vld [vmem:[%s3321 + $0x138] sm:$0xff]
    %v3362 = vld [vmem:[%s3321 + $0x140] sm:$0xff]
    %v3363 = vld [vmem:[%s3321 + $0x148] sm:$0xff]
    %v3364 = vld [vmem:[%s3321 + $0x150] sm:$0xff]
    %v3365 = vld [vmem:[%s3321 + $0x158] sm:$0xff]
    %v3366 = vld [vmem:[%s3321 + $0x160] sm:$0xff]
    %v3367 = vld [vmem:[%s3321 + $0x168] sm:$0xff]
    %v3368 = vld [vmem:[%s3321 + $0x170] sm:$0xff]
    %v3369 = vld [vmem:[%s3321 + $0x178] sm:$0xff]
    %v3370 = vld [vmem:[%s3321 + $0x180] sm:$0xff]
    %v3371 = vld [vmem:[%s3321 + $0x188] sm:$0xff]
    %v3372 = vld [vmem:[%s3321 + $0x190] sm:$0xff]
    %v3373 = vld [vmem:[%s3321 + $0x198] sm:$0xff]
    %v3374 = vld [vmem:[%s3321 + $0x1a0] sm:$0xff]
    %v3375 = vld [vmem:[%s3321 + $0x1a8] sm:$0xff]
    %v3376 = vld [vmem:[%s3321 + $0x1b0] sm:$0xff]
    %v3377 = vld [vmem:[%s3321 + $0x1b8] sm:$0xff]
    %v3378 = vld [vmem:[%s3321 + $0x1c0] sm:$0xff]
    %v3379 = vld [vmem:[%s3321 + $0x1c8] sm:$0xff]
    %v3380 = vld [vmem:[%s3321 + $0x1d0] sm:$0xff]
    %v3381 = vld [vmem:[%s3321 + $0x1d8] sm:$0xff]
    %v3382 = vld [vmem:[%s3321 + $0x1e0] sm:$0xff]
    %v3383 = vld [vmem:[%s3321 + $0x1e8] sm:$0xff]
    %v3384 = vld [vmem:[%s3321 + $0x1f0] sm:$0xff]
    %v3385 = vld [vmem:[%s3321 + $0x1f8] sm:$0xff]
    %v3386 = vrot.slane %v2617, 4
    %v3387 = vsel %vm73, %v3386, 0
    %3389 = vmatprep.subr.mxu0 0.0
    %3390 = vmatpush1.msra.mxu0 0.0
    %3391 = vmatprep.subr.mxu0 0.0
    %3392 = vmatpush1.msra.mxu0 0.0
    %3393 = vmatprep.subr.mxu0 0.0
    %3394 = vmatpush1.msra.mxu0 0.0
    %3395 = vmatprep.subr.mxu0 0.0
    %3396 = vmatpush1.msra.mxu0 0.0
    %3397 = vmatprep.subr.mxu0 0.0
    %3398 = vmatpush1.msra.mxu0 0.0
    %3399 = vmatprep.subr.mxu0 0.0
    %3400 = vmatpush1.msra.mxu0 0.0
    %3401 = vmatprep.subr.mxu0 0.0
    %3402 = vmatpush1.msra.mxu0 0.0
    %3403 = vmatprep.subr.mxu0 0.0
    %3404 = vmatpush1.msra.mxu0 0.0
    %3405 = vmatprep.subr.mxu0 %v3379
    %3406 = vmatpush1.msra.mxu0 %v3378
    %3407 = vmatprep.subr.mxu0 %v3371
    %3408 = vmatpush1.msra.mxu0 %v3370
    %3409 = vmatprep.subr.mxu0 %v3363
    %3410 = vmatpush1.msra.mxu0 %v3362
    %3411 = vmatprep.subr.mxu0 %v3355
    %3412 = vmatpush1.msra.mxu0 %v3354
    %3413 = vmatprep.subr.mxu0 %v3347
    %3414 = vmatpush1.msra.mxu0 %v3346
    %3415 = vmatprep.subr.mxu0 %v3339
    %3416 = vmatpush1.msra.mxu0 %v3338
    %3417 = vmatprep.subr.mxu0 %v3331
    %3418 = vmatpush1.msra.mxu0 %v3330
    %3419 = vmatprep.subr.mxu0 %v3323
    %3420 = vmatpush1.msra.mxu0 %v3322
    %3421 = vmatprep.subr.mxu0 0.0
    %3422 = vmatpush2.msra.mxu0 0.0
    %3423 = vmatprep.subr.mxu0 0.0
    %3424 = vmatpush2.msra.mxu0 0.0
    %3425 = vmatprep.subr.mxu0 0.0
    %3426 = vmatpush2.msra.mxu0 0.0
    %3427 = vmatprep.subr.mxu0 0.0
    %3428 = vmatpush2.msra.mxu0 0.0
    %3429 = vmatprep.subr.mxu0 0.0
    %3430 = vmatpush2.msra.mxu0 0.0
    %3431 = vmatprep.subr.mxu0 0.0
    %3432 = vmatpush2.msra.mxu0 0.0
    %3433 = vmatprep.subr.mxu0 0.0
    %3434 = vmatpush2.msra.mxu0 0.0
    %3435 = vmatprep.subr.mxu0 0.0
    %3436 = vmatpush2.msra.mxu0 0.0
    %3437 = vmatprep.subr.mxu0 0.0
    %3438 = vmatpush2.msra.mxu0 0.0
    %3439 = vmatprep.subr.mxu0 0.0
    %3440 = vmatpush2.msra.mxu0 0.0
    %3441 = vmatprep.subr.mxu0 0.0
    %3442 = vmatpush2.msra.mxu0 0.0
    %3443 = vmatprep.subr.mxu0 0.0
    %3444 = vmatpush2.msra.mxu0 0.0
    %3445 = vmatprep.subr.mxu0 0.0
    %3446 = vmatpush2.msra.mxu0 0.0
    %3447 = vmatprep.subr.mxu0 0.0
    %3448 = vmatpush2.msra.mxu0 0.0
    %3449 = vmatprep.subr.mxu0 0.0
    %3450 = vmatpush2.msra.mxu0 0.0
    %3451 = vmatprep.subr.mxu0 0.0
    %3452 = vmatpush2.msra.mxu0 0.0
    %3453 = vmatprep.mubr.f32.mxu0 0.0
    %3454 = vmatmul.mubr.f32.gmra.mxu0 %v3387
    %v3455 = vpop.f32.mrf.mxu0
    %v3456 = vadd.f32 0.0, %v3455
    %v3457 = vpop.f32.mrf.mxu0
    %v3458 = vadd.f32 0.0, %v3457
    %3459 = vdwg.mxu0
    %3460 = vmatprep.subr.mxu0 0.0
    %3461 = vmatpush1.msra.mxu0 0.0
    %3462 = vmatprep.subr.mxu0 0.0
    %3463 = vmatpush1.msra.mxu0 0.0
    %3464 = vmatprep.subr.mxu0 0.0
    %3465 = vmatpush1.msra.mxu0 0.0
    %3466 = vmatprep.subr.mxu0 0.0
    %3467 = vmatpush1.msra.mxu0 0.0
    %3468 = vmatprep.subr.mxu0 0.0
    %3469 = vmatpush1.msra.mxu0 0.0
    %3470 = vmatprep.subr.mxu0 0.0
    %3471 = vmatpush1.msra.mxu0 0.0
    %3472 = vmatprep.subr.mxu0 0.0
    %3473 = vmatpush1.msra.mxu0 0.0
    %3474 = vmatprep.subr.mxu0 0.0
    %3475 = vmatpush1.msra.mxu0 0.0
    %3476 = vmatprep.subr.mxu0 %v3381
    %3477 = vmatpush1.msra.mxu0 %v3380
    %3478 = vmatprep.subr.mxu0 %v3373
    %3479 = vmatpush1.msra.mxu0 %v3372
    %3480 = vmatprep.subr.mxu0 %v3365
    %3481 = vmatpush1.msra.mxu0 %v3364
    %3482 = vmatprep.subr.mxu0 %v3357
    %3483 = vmatpush1.msra.mxu0 %v3356
    %3484 = vmatprep.subr.mxu0 %v3349
    %3485 = vmatpush1.msra.mxu0 %v3348
    %3486 = vmatprep.subr.mxu0 %v3341
    %3487 = vmatpush1.msra.mxu0 %v3340
    %3488 = vmatprep.subr.mxu0 %v3333
    %3489 = vmatpush1.msra.mxu0 %v3332
    %3490 = vmatprep.subr.mxu0 %v3325
    %3491 = vmatpush1.msra.mxu0 %v3324
    %3492 = vmatprep.subr.mxu0 0.0
    %3493 = vmatpush2.msra.mxu0 0.0
    %3494 = vmatprep.subr.mxu0 0.0
    %3495 = vmatpush2.msra.mxu0 0.0
    %3496 = vmatprep.subr.mxu0 0.0
    %3497 = vmatpush2.msra.mxu0 0.0
    %3498 = vmatprep.subr.mxu0 0.0
    %3499 = vmatpush2.msra.mxu0 0.0
    %3500 = vmatprep.subr.mxu0 0.0
    %3501 = vmatpush2.msra.mxu0 0.0
    %3502 = vmatprep.subr.mxu0 0.0
    %3503 = vmatpush2.msra.mxu0 0.0
    %3504 = vmatprep.subr.mxu0 0.0
    %3505 = vmatpush2.msra.mxu0 0.0
    %3506 = vmatprep.subr.mxu0 0.0
    %3507 = vmatpush2.msra.mxu0 0.0
    %3508 = vmatprep.subr.mxu0 0.0
    %3509 = vmatpush2.msra.mxu0 0.0
    %3510 = vmatprep.subr.mxu0 0.0
    %3511 = vmatpush2.msra.mxu0 0.0
    %3512 = vmatprep.subr.mxu0 0.0
    %3513 = vmatpush2.msra.mxu0 0.0
    %3514 = vmatprep.subr.mxu0 0.0
    %3515 = vmatpush2.msra.mxu0 0.0
    %3516 = vmatprep.subr.mxu0 0.0
    %3517 = vmatpush2.msra.mxu0 0.0
    %3518 = vmatprep.subr.mxu0 0.0
    %3519 = vmatpush2.msra.mxu0 0.0
    %3520 = vmatprep.subr.mxu0 0.0
    %3521 = vmatpush2.msra.mxu0 0.0
    %3522 = vmatprep.subr.mxu0 0.0
    %3523 = vmatpush2.msra.mxu0 0.0
    %3524 = vmatprep.mubr.f32.mxu0 0.0
    %3525 = vmatmul.mubr.f32.gmra.mxu0 %v3387
    %v3526 = vpop.f32.mrf.mxu0
    %v3527 = vadd.f32 0.0, %v3526
    %v3528 = vpop.f32.mrf.mxu0
    %v3529 = vadd.f32 0.0, %v3528
    %3530 = vdwg.mxu0
    %3531 = vmatprep.subr.mxu0 0.0
    %3532 = vmatpush1.msra.mxu0 0.0
    %3533 = vmatprep.subr.mxu0 0.0
    %3534 = vmatpush1.msra.mxu0 0.0
    %3535 = vmatprep.subr.mxu0 0.0
    %3536 = vmatpush1.msra.mxu0 0.0
    %3537 = vmatprep.subr.mxu0 0.0
    %3538 = vmatpush1.msra.mxu0 0.0
    %3539 = vmatprep.subr.mxu0 0.0
    %3540 = vmatpush1.msra.mxu0 0.0
    %3541 = vmatprep.subr.mxu0 0.0
    %3542 = vmatpush1.msra.mxu0 0.0
    %3543 = vmatprep.subr.mxu0 0.0
    %3544 = vmatpush1.msra.mxu0 0.0
    %3545 = vmatprep.subr.mxu0 0.0
    %3546 = vmatpush1.msra.mxu0 0.0
    %3547 = vmatprep.subr.mxu0 %v3383
    %3548 = vmatpush1.msra.mxu0 %v3382
    %3549 = vmatprep.subr.mxu0 %v3375
    %3550 = vmatpush1.msra.mxu0 %v3374
    %3551 = vmatprep.subr.mxu0 %v3367
    %3552 = vmatpush1.msra.mxu0 %v3366
    %3553 = vmatprep.subr.mxu0 %v3359
    %3554 = vmatpush1.msra.mxu0 %v3358
    %3555 = vmatprep.subr.mxu0 %v3351
    %3556 = vmatpush1.msra.mxu0 %v3350
    %3557 = vmatprep.subr.mxu0 %v3343
    %3558 = vmatpush1.msra.mxu0 %v3342
    %3559 = vmatprep.subr.mxu0 %v3335
    %3560 = vmatpush1.msra.mxu0 %v3334
    %3561 = vmatprep.subr.mxu0 %v3327
    %3562 = vmatpush1.msra.mxu0 %v3326
    %3563 = vmatprep.subr.mxu0 0.0
    %3564 = vmatpush2.msra.mxu0 0.0
    %3565 = vmatprep.subr.mxu0 0.0
    %3566 = vmatpush2.msra.mxu0 0.0
    %3567 = vmatprep.subr.mxu0 0.0
    %3568 = vmatpush2.msra.mxu0 0.0
    %3569 = vmatprep.subr.mxu0 0.0
    %3570 = vmatpush2.msra.mxu0 0.0
    %3571 = vmatprep.subr.mxu0 0.0
    %3572 = vmatpush2.msra.mxu0 0.0
    %3573 = vmatprep.subr.mxu0 0.0
    %3574 = vmatpush2.msra.mxu0 0.0
    %3575 = vmatprep.subr.mxu0 0.0
    %3576 = vmatpush2.msra.mxu0 0.0
    %3577 = vmatprep.subr.mxu0 0.0
    %3578 = vmatpush2.msra.mxu0 0.0
    %3579 = vmatprep.subr.mxu0 0.0
    %3580 = vmatpush2.msra.mxu0 0.0
    %3581 = vmatprep.subr.mxu0 0.0
    %3582 = vmatpush2.msra.mxu0 0.0
    %3583 = vmatprep.subr.mxu0 0.0
    %3584 = vmatpush2.msra.mxu0 0.0
    %3585 = vmatprep.subr.mxu0 0.0
    %3586 = vmatpush2.msra.mxu0 0.0
    %3587 = vmatprep.subr.mxu0 0.0
    %3588 = vmatpush2.msra.mxu0 0.0
    %3589 = vmatprep.subr.mxu0 0.0
    %3590 = vmatpush2.msra.mxu0 0.0
    %3591 = vmatprep.subr.mxu0 0.0
    %3592 = vmatpush2.msra.mxu0 0.0
    %3593 = vmatprep.subr.mxu0 0.0
    %3594 = vmatpush2.msra.mxu0 0.0
    %3595 = vmatprep.mubr.f32.mxu0 0.0
    %3596 = vmatmul.mubr.f32.gmra.mxu0 %v3387
    %v3597 = vpop.f32.mrf.mxu0
    %v3598 = vadd.f32 0.0, %v3597
    %v3599 = vpop.f32.mrf.mxu0
    %v3600 = vadd.f32 0.0, %v3599
    %3601 = vdwg.mxu0
    %3602 = vmatprep.subr.mxu0 0.0
    %3603 = vmatpush1.msra.mxu0 0.0
    %3604 = vmatprep.subr.mxu0 0.0
    %3605 = vmatpush1.msra.mxu0 0.0
    %3606 = vmatprep.subr.mxu0 0.0
    %3607 = vmatpush1.msra.mxu0 0.0
    %3608 = vmatprep.subr.mxu0 0.0
    %3609 = vmatpush1.msra.mxu0 0.0
    %3610 = vmatprep.subr.mxu0 0.0
    %3611 = vmatpush1.msra.mxu0 0.0
    %3612 = vmatprep.subr.mxu0 0.0
    %3613 = vmatpush1.msra.mxu0 0.0
    %3614 = vmatprep.subr.mxu0 0.0
    %3615 = vmatpush1.msra.mxu0 0.0
    %3616 = vmatprep.subr.mxu0 0.0
    %3617 = vmatpush1.msra.mxu0 0.0
    %3618 = vmatprep.subr.mxu0 %v3385
    %3619 = vmatpush1.msra.mxu0 %v3384
    %3620 = vmatprep.subr.mxu0 %v3377
    %3621 = vmatpush1.msra.mxu0 %v3376
    %3622 = vmatprep.subr.mxu0 %v3369
    %3623 = vmatpush1.msra.mxu0 %v3368
    %3624 = vmatprep.subr.mxu0 %v3361
    %3625 = vmatpush1.msra.mxu0 %v3360
    %3626 = vmatprep.subr.mxu0 %v3353
    %3627 = vmatpush1.msra.mxu0 %v3352
    %3628 = vmatprep.subr.mxu0 %v3345
    %3629 = vmatpush1.msra.mxu0 %v3344
    %3630 = vmatprep.subr.mxu0 %v3337
    %3631 = vmatpush1.msra.mxu0 %v3336
    %3632 = vmatprep.subr.mxu0 %v3329
    %3633 = vmatpush1.msra.mxu0 %v3328
    %3634 = vmatprep.subr.mxu0 0.0
    %3635 = vmatpush2.msra.mxu0 0.0
    %3636 = vmatprep.subr.mxu0 0.0
    %3637 = vmatpush2.msra.mxu0 0.0
    %3638 = vmatprep.subr.mxu0 0.0
    %3639 = vmatpush2.msra.mxu0 0.0
    %3640 = vmatprep.subr.mxu0 0.0
    %3641 = vmatpush2.msra.mxu0 0.0
    %3642 = vmatprep.subr.mxu0 0.0
    %3643 = vmatpush2.msra.mxu0 0.0
    %3644 = vmatprep.subr.mxu0 0.0
    %3645 = vmatpush2.msra.mxu0 0.0
    %3646 = vmatprep.subr.mxu0 0.0
    %3647 = vmatpush2.msra.mxu0 0.0
    %3648 = vmatprep.subr.mxu0 0.0
    %3649 = vmatpush2.msra.mxu0 0.0
    %3650 = vmatprep.subr.mxu0 0.0
    %3651 = vmatpush2.msra.mxu0 0.0
    %3652 = vmatprep.subr.mxu0 0.0
    %3653 = vmatpush2.msra.mxu0 0.0
    %3654 = vmatprep.subr.mxu0 0.0
    %3655 = vmatpush2.msra.mxu0 0.0
    %3656 = vmatprep.subr.mxu0 0.0
    %3657 = vmatpush2.msra.mxu0 0.0
    %3658 = vmatprep.subr.mxu0 0.0
    %3659 = vmatpush2.msra.mxu0 0.0
    %3660 = vmatprep.subr.mxu0 0.0
    %3661 = vmatpush2.msra.mxu0 0.0
    %3662 = vmatprep.subr.mxu0 0.0
    %3663 = vmatpush2.msra.mxu0 0.0
    %3664 = vmatprep.subr.mxu0 0.0
    %3665 = vmatpush2.msra.mxu0 0.0
    %3666 = vmatprep.mubr.f32.mxu0 0.0
    %3667 = vmatmul.mubr.f32.gmra.mxu0 %v3387
    %v3668 = vpop.f32.mrf.mxu0
    %v3669 = vadd.f32 0.0, %v3668
    %v3670 = vpop.f32.mrf.mxu0
    %v3671 = vadd.f32 0.0, %v3670
    %3672 = vdwg.mxu0
    %v3673 = vadd.f32 %v3104, %v3456
    %v3674 = vadd.f32 %v3106, %v3458
    %v3675 = vadd.f32 %v3175, %v3527
    %v3676 = vadd.f32 %v3177, %v3529
    %v3677 = vadd.f32 %v3246, %v3598
    %v3678 = vadd.f32 %v3248, %v3600
    %v3679 = vadd.f32 %v3317, %v3669
    %v3680 = vadd.f32 %v3319, %v3671
    %s3681 = scalar_lea.vmem %s9, 1536
    %v3682 = vld [vmem:[%s3681] sm:$0xff]
    %v3683 = vld [vmem:[%s3681 + $0x8] sm:$0xff]
    %v3684 = vld [vmem:[%s3681 + $0x10] sm:$0xff]
    %v3685 = vld [vmem:[%s3681 + $0x18] sm:$0xff]
    %v3686 = vld [vmem:[%s3681 + $0x20] sm:$0xff]
    %v3687 = vld [vmem:[%s3681 + $0x28] sm:$0xff]
    %v3688 = vld [vmem:[%s3681 + $0x30] sm:$0xff]
    %v3689 = vld [vmem:[%s3681 + $0x38] sm:$0xff]
    %v3690 = vld [vmem:[%s3681 + $0x40] sm:$0xff]
    %v3691 = vld [vmem:[%s3681 + $0x48] sm:$0xff]
    %v3692 = vld [vmem:[%s3681 + $0x50] sm:$0xff]
    %v3693 = vld [vmem:[%s3681 + $0x58] sm:$0xff]
    %v3694 = vld [vmem:[%s3681 + $0x60] sm:$0xff]
    %v3695 = vld [vmem:[%s3681 + $0x68] sm:$0xff]
    %v3696 = vld [vmem:[%s3681 + $0x70] sm:$0xff]
    %v3697 = vld [vmem:[%s3681 + $0x78] sm:$0xff]
    %v3698 = vld [vmem:[%s3681 + $0x80] sm:$0xff]
    %v3699 = vld [vmem:[%s3681 + $0x88] sm:$0xff]
    %v3700 = vld [vmem:[%s3681 + $0x90] sm:$0xff]
    %v3701 = vld [vmem:[%s3681 + $0x98] sm:$0xff]
    %v3702 = vld [vmem:[%s3681 + $0xa0] sm:$0xff]
    %v3703 = vld [vmem:[%s3681 + $0xa8] sm:$0xff]
    %v3704 = vld [vmem:[%s3681 + $0xb0] sm:$0xff]
    %v3705 = vld [vmem:[%s3681 + $0xb8] sm:$0xff]
    %v3706 = vld [vmem:[%s3681 + $0xc0] sm:$0xff]
    %v3707 = vld [vmem:[%s3681 + $0xc8] sm:$0xff]
    %v3708 = vld [vmem:[%s3681 + $0xd0] sm:$0xff]
    %v3709 = vld [vmem:[%s3681 + $0xd8] sm:$0xff]
    %v3710 = vld [vmem:[%s3681 + $0xe0] sm:$0xff]
    %v3711 = vld [vmem:[%s3681 + $0xe8] sm:$0xff]
    %v3712 = vld [vmem:[%s3681 + $0xf0] sm:$0xff]
    %v3713 = vld [vmem:[%s3681 + $0xf8] sm:$0xff]
    %v3714 = vld [vmem:[%s3681 + $0x100] sm:$0xff]
    %v3715 = vld [vmem:[%s3681 + $0x108] sm:$0xff]
    %v3716 = vld [vmem:[%s3681 + $0x110] sm:$0xff]
    %v3717 = vld [vmem:[%s3681 + $0x118] sm:$0xff]
    %v3718 = vld [vmem:[%s3681 + $0x120] sm:$0xff]
    %v3719 = vld [vmem:[%s3681 + $0x128] sm:$0xff]
    %v3720 = vld [vmem:[%s3681 + $0x130] sm:$0xff]
    %v3721 = vld [vmem:[%s3681 + $0x138] sm:$0xff]
    %v3722 = vld [vmem:[%s3681 + $0x140] sm:$0xff]
    %v3723 = vld [vmem:[%s3681 + $0x148] sm:$0xff]
    %v3724 = vld [vmem:[%s3681 + $0x150] sm:$0xff]
    %v3725 = vld [vmem:[%s3681 + $0x158] sm:$0xff]
    %v3726 = vld [vmem:[%s3681 + $0x160] sm:$0xff]
    %v3727 = vld [vmem:[%s3681 + $0x168] sm:$0xff]
    %v3728 = vld [vmem:[%s3681 + $0x170] sm:$0xff]
    %v3729 = vld [vmem:[%s3681 + $0x178] sm:$0xff]
    %v3730 = vld [vmem:[%s3681 + $0x180] sm:$0xff]
    %v3731 = vld [vmem:[%s3681 + $0x188] sm:$0xff]
    %v3732 = vld [vmem:[%s3681 + $0x190] sm:$0xff]
    %v3733 = vld [vmem:[%s3681 + $0x198] sm:$0xff]
    %v3734 = vld [vmem:[%s3681 + $0x1a0] sm:$0xff]
    %v3735 = vld [vmem:[%s3681 + $0x1a8] sm:$0xff]
    %v3736 = vld [vmem:[%s3681 + $0x1b0] sm:$0xff]
    %v3737 = vld [vmem:[%s3681 + $0x1b8] sm:$0xff]
    %v3738 = vld [vmem:[%s3681 + $0x1c0] sm:$0xff]
    %v3739 = vld [vmem:[%s3681 + $0x1c8] sm:$0xff]
    %v3740 = vld [vmem:[%s3681 + $0x1d0] sm:$0xff]
    %v3741 = vld [vmem:[%s3681 + $0x1d8] sm:$0xff]
    %v3742 = vld [vmem:[%s3681 + $0x1e0] sm:$0xff]
    %v3743 = vld [vmem:[%s3681 + $0x1e8] sm:$0xff]
    %v3744 = vld [vmem:[%s3681 + $0x1f0] sm:$0xff]
    %v3745 = vld [vmem:[%s3681 + $0x1f8] sm:$0xff]
    %v3746 = vrot.slane %v2617, 6
    %v3747 = vsel %vm73, %v3746, 0
    %3749 = vmatprep.subr.mxu0 0.0
    %3750 = vmatpush1.msra.mxu0 0.0
    %3751 = vmatprep.subr.mxu0 0.0
    %3752 = vmatpush1.msra.mxu0 0.0
    %3753 = vmatprep.subr.mxu0 0.0
    %3754 = vmatpush1.msra.mxu0 0.0
    %3755 = vmatprep.subr.mxu0 0.0
    %3756 = vmatpush1.msra.mxu0 0.0
    %3757 = vmatprep.subr.mxu0 0.0
    %3758 = vmatpush1.msra.mxu0 0.0
    %3759 = vmatprep.subr.mxu0 0.0
    %3760 = vmatpush1.msra.mxu0 0.0
    %3761 = vmatprep.subr.mxu0 0.0
    %3762 = vmatpush1.msra.mxu0 0.0
    %3763 = vmatprep.subr.mxu0 0.0
    %3764 = vmatpush1.msra.mxu0 0.0
    %3765 = vmatprep.subr.mxu0 %v3739
    %3766 = vmatpush1.msra.mxu0 %v3738
    %3767 = vmatprep.subr.mxu0 %v3731
    %3768 = vmatpush1.msra.mxu0 %v3730
    %3769 = vmatprep.subr.mxu0 %v3723
    %3770 = vmatpush1.msra.mxu0 %v3722
    %3771 = vmatprep.subr.mxu0 %v3715
    %3772 = vmatpush1.msra.mxu0 %v3714
    %3773 = vmatprep.subr.mxu0 %v3707
    %3774 = vmatpush1.msra.mxu0 %v3706
    %3775 = vmatprep.subr.mxu0 %v3699
    %3776 = vmatpush1.msra.mxu0 %v3698
    %3777 = vmatprep.subr.mxu0 %v3691
    %3778 = vmatpush1.msra.mxu0 %v3690
    %3779 = vmatprep.subr.mxu0 %v3683
    %3780 = vmatpush1.msra.mxu0 %v3682
    %3781 = vmatprep.subr.mxu0 0.0
    %3782 = vmatpush2.msra.mxu0 0.0
    %3783 = vmatprep.subr.mxu0 0.0
    %3784 = vmatpush2.msra.mxu0 0.0
    %3785 = vmatprep.subr.mxu0 0.0
    %3786 = vmatpush2.msra.mxu0 0.0
    %3787 = vmatprep.subr.mxu0 0.0
    %3788 = vmatpush2.msra.mxu0 0.0
    %3789 = vmatprep.subr.mxu0 0.0
    %3790 = vmatpush2.msra.mxu0 0.0
    %3791 = vmatprep.subr.mxu0 0.0
    %3792 = vmatpush2.msra.mxu0 0.0
    %3793 = vmatprep.subr.mxu0 0.0
    %3794 = vmatpush2.msra.mxu0 0.0
    %3795 = vmatprep.subr.mxu0 0.0
    %3796 = vmatpush2.msra.mxu0 0.0
    %3797 = vmatprep.subr.mxu0 0.0
    %3798 = vmatpush2.msra.mxu0 0.0
    %3799 = vmatprep.subr.mxu0 0.0
    %3800 = vmatpush2.msra.mxu0 0.0
    %3801 = vmatprep.subr.mxu0 0.0
    %3802 = vmatpush2.msra.mxu0 0.0
    %3803 = vmatprep.subr.mxu0 0.0
    %3804 = vmatpush2.msra.mxu0 0.0
    %3805 = vmatprep.subr.mxu0 0.0
    %3806 = vmatpush2.msra.mxu0 0.0
    %3807 = vmatprep.subr.mxu0 0.0
    %3808 = vmatpush2.msra.mxu0 0.0
    %3809 = vmatprep.subr.mxu0 0.0
    %3810 = vmatpush2.msra.mxu0 0.0
    %3811 = vmatprep.subr.mxu0 0.0
    %3812 = vmatpush2.msra.mxu0 0.0
    %3813 = vmatprep.mubr.f32.mxu0 0.0
    %3814 = vmatmul.mubr.f32.gmra.mxu0 %v3747
    %v3815 = vpop.f32.mrf.mxu0
    %v3816 = vadd.f32 0.0, %v3815
    %v3817 = vpop.f32.mrf.mxu0
    %v3818 = vadd.f32 0.0, %v3817
    %3819 = vdwg.mxu0
    %3820 = vmatprep.subr.mxu0 0.0
    %3821 = vmatpush1.msra.mxu0 0.0
    %3822 = vmatprep.subr.mxu0 0.0
    %3823 = vmatpush1.msra.mxu0 0.0
    %3824 = vmatprep.subr.mxu0 0.0
    %3825 = vmatpush1.msra.mxu0 0.0
    %3826 = vmatprep.subr.mxu0 0.0
    %3827 = vmatpush1.msra.mxu0 0.0
    %3828 = vmatprep.subr.mxu0 0.0
    %3829 = vmatpush1.msra.mxu0 0.0
    %3830 = vmatprep.subr.mxu0 0.0
    %3831 = vmatpush1.msra.mxu0 0.0
    %3832 = vmatprep.subr.mxu0 0.0
    %3833 = vmatpush1.msra.mxu0 0.0
    %3834 = vmatprep.subr.mxu0 0.0
    %3835 = vmatpush1.msra.mxu0 0.0
    %3836 = vmatprep.subr.mxu0 %v3741
    %3837 = vmatpush1.msra.mxu0 %v3740
    %3838 = vmatprep.subr.mxu0 %v3733
    %3839 = vmatpush1.msra.mxu0 %v3732
    %3840 = vmatprep.subr.mxu0 %v3725
    %3841 = vmatpush1.msra.mxu0 %v3724
    %3842 = vmatprep.subr.mxu0 %v3717
    %3843 = vmatpush1.msra.mxu0 %v3716
    %3844 = vmatprep.subr.mxu0 %v3709
    %3845 = vmatpush1.msra.mxu0 %v3708
    %3846 = vmatprep.subr.mxu0 %v3701
    %3847 = vmatpush1.msra.mxu0 %v3700
    %3848 = vmatprep.subr.mxu0 %v3693
    %3849 = vmatpush1.msra.mxu0 %v3692
    %3850 = vmatprep.subr.mxu0 %v3685
    %3851 = vmatpush1.msra.mxu0 %v3684
    %3852 = vmatprep.subr.mxu0 0.0
    %3853 = vmatpush2.msra.mxu0 0.0
    %3854 = vmatprep.subr.mxu0 0.0
    %3855 = vmatpush2.msra.mxu0 0.0
    %3856 = vmatprep.subr.mxu0 0.0
    %3857 = vmatpush2.msra.mxu0 0.0
    %3858 = vmatprep.subr.mxu0 0.0
    %3859 = vmatpush2.msra.mxu0 0.0
    %3860 = vmatprep.subr.mxu0 0.0
    %3861 = vmatpush2.msra.mxu0 0.0
    %3862 = vmatprep.subr.mxu0 0.0
    %3863 = vmatpush2.msra.mxu0 0.0
    %3864 = vmatprep.subr.mxu0 0.0
    %3865 = vmatpush2.msra.mxu0 0.0
    %3866 = vmatprep.subr.mxu0 0.0
    %3867 = vmatpush2.msra.mxu0 0.0
    %3868 = vmatprep.subr.mxu0 0.0
    %3869 = vmatpush2.msra.mxu0 0.0
    %3870 = vmatprep.subr.mxu0 0.0
    %3871 = vmatpush2.msra.mxu0 0.0
    %3872 = vmatprep.subr.mxu0 0.0
    %3873 = vmatpush2.msra.mxu0 0.0
    %3874 = vmatprep.subr.mxu0 0.0
    %3875 = vmatpush2.msra.mxu0 0.0
    %3876 = vmatprep.subr.mxu0 0.0
    %3877 = vmatpush2.msra.mxu0 0.0
    %3878 = vmatprep.subr.mxu0 0.0
    %3879 = vmatpush2.msra.mxu0 0.0
    %3880 = vmatprep.subr.mxu0 0.0
    %3881 = vmatpush2.msra.mxu0 0.0
    %3882 = vmatprep.subr.mxu0 0.0
    %3883 = vmatpush2.msra.mxu0 0.0
    %3884 = vmatprep.mubr.f32.mxu0 0.0
    %3885 = vmatmul.mubr.f32.gmra.mxu0 %v3747
    %v3886 = vpop.f32.mrf.mxu0
    %v3887 = vadd.f32 0.0, %v3886
    %v3888 = vpop.f32.mrf.mxu0
    %v3889 = vadd.f32 0.0, %v3888
    %3890 = vdwg.mxu0
    %3891 = vmatprep.subr.mxu0 0.0
    %3892 = vmatpush1.msra.mxu0 0.0
    %3893 = vmatprep.subr.mxu0 0.0
    %3894 = vmatpush1.msra.mxu0 0.0
    %3895 = vmatprep.subr.mxu0 0.0
    %3896 = vmatpush1.msra.mxu0 0.0
    %3897 = vmatprep.subr.mxu0 0.0
    %3898 = vmatpush1.msra.mxu0 0.0
    %3899 = vmatprep.subr.mxu0 0.0
    %3900 = vmatpush1.msra.mxu0 0.0
    %3901 = vmatprep.subr.mxu0 0.0
    %3902 = vmatpush1.msra.mxu0 0.0
    %3903 = vmatprep.subr.mxu0 0.0
    %3904 = vmatpush1.msra.mxu0 0.0
    %3905 = vmatprep.subr.mxu0 0.0
    %3906 = vmatpush1.msra.mxu0 0.0
    %3907 = vmatprep.subr.mxu0 %v3743
    %3908 = vmatpush1.msra.mxu0 %v3742
    %3909 = vmatprep.subr.mxu0 %v3735
    %3910 = vmatpush1.msra.mxu0 %v3734
    %3911 = vmatprep.subr.mxu0 %v3727
    %3912 = vmatpush1.msra.mxu0 %v3726
    %3913 = vmatprep.subr.mxu0 %v3719
    %3914 = vmatpush1.msra.mxu0 %v3718
    %3915 = vmatprep.subr.mxu0 %v3711
    %3916 = vmatpush1.msra.mxu0 %v3710
    %3917 = vmatprep.subr.mxu0 %v3703
    %3918 = vmatpush1.msra.mxu0 %v3702
    %3919 = vmatprep.subr.mxu0 %v3695
    %3920 = vmatpush1.msra.mxu0 %v3694
    %3921 = vmatprep.subr.mxu0 %v3687
    %3922 = vmatpush1.msra.mxu0 %v3686
    %3923 = vmatprep.subr.mxu0 0.0
    %3924 = vmatpush2.msra.mxu0 0.0
    %3925 = vmatprep.subr.mxu0 0.0
    %3926 = vmatpush2.msra.mxu0 0.0
    %3927 = vmatprep.subr.mxu0 0.0
    %3928 = vmatpush2.msra.mxu0 0.0
    %3929 = vmatprep.subr.mxu0 0.0
    %3930 = vmatpush2.msra.mxu0 0.0
    %3931 = vmatprep.subr.mxu0 0.0
    %3932 = vmatpush2.msra.mxu0 0.0
    %3933 = vmatprep.subr.mxu0 0.0
    %3934 = vmatpush2.msra.mxu0 0.0
    %3935 = vmatprep.subr.mxu0 0.0
    %3936 = vmatpush2.msra.mxu0 0.0
    %3937 = vmatprep.subr.mxu0 0.0
    %3938 = vmatpush2.msra.mxu0 0.0
    %3939 = vmatprep.subr.mxu0 0.0
    %3940 = vmatpush2.msra.mxu0 0.0
    %3941 = vmatprep.subr.mxu0 0.0
    %3942 = vmatpush2.msra.mxu0 0.0
    %3943 = vmatprep.subr.mxu0 0.0
    %3944 = vmatpush2.msra.mxu0 0.0
    %3945 = vmatprep.subr.mxu0 0.0
    %3946 = vmatpush2.msra.mxu0 0.0
    %3947 = vmatprep.subr.mxu0 0.0
    %3948 = vmatpush2.msra.mxu0 0.0
    %3949 = vmatprep.subr.mxu0 0.0
    %3950 = vmatpush2.msra.mxu0 0.0
    %3951 = vmatprep.subr.mxu0 0.0
    %3952 = vmatpush2.msra.mxu0 0.0
    %3953 = vmatprep.subr.mxu0 0.0
    %3954 = vmatpush2.msra.mxu0 0.0
    %3955 = vmatprep.mubr.f32.mxu0 0.0
    %3956 = vmatmul.mubr.f32.gmra.mxu0 %v3747
    %v3957 = vpop.f32.mrf.mxu0
    %v3958 = vadd.f32 0.0, %v3957
    %v3959 = vpop.f32.mrf.mxu0
    %v3960 = vadd.f32 0.0, %v3959
    %3961 = vdwg.mxu0
    %3962 = vmatprep.subr.mxu0 0.0
    %3963 = vmatpush1.msra.mxu0 0.0
    %3964 = vmatprep.subr.mxu0 0.0
    %3965 = vmatpush1.msra.mxu0 0.0
    %3966 = vmatprep.subr.mxu0 0.0
    %3967 = vmatpush1.msra.mxu0 0.0
    %3968 = vmatprep.subr.mxu0 0.0
    %3969 = vmatpush1.msra.mxu0 0.0
    %3970 = vmatprep.subr.mxu0 0.0
    %3971 = vmatpush1.msra.mxu0 0.0
    %3972 = vmatprep.subr.mxu0 0.0
    %3973 = vmatpush1.msra.mxu0 0.0
    %3974 = vmatprep.subr.mxu0 0.0
    %3975 = vmatpush1.msra.mxu0 0.0
    %3976 = vmatprep.subr.mxu0 0.0
    %3977 = vmatpush1.msra.mxu0 0.0
    %3978 = vmatprep.subr.mxu0 %v3745
    %3979 = vmatpush1.msra.mxu0 %v3744
    %3980 = vmatprep.subr.mxu0 %v3737
    %3981 = vmatpush1.msra.mxu0 %v3736
    %3982 = vmatprep.subr.mxu0 %v3729
    %3983 = vmatpush1.msra.mxu0 %v3728
    %3984 = vmatprep.subr.mxu0 %v3721
    %3985 = vmatpush1.msra.mxu0 %v3720
    %3986 = vmatprep.subr.mxu0 %v3713
    %3987 = vmatpush1.msra.mxu0 %v3712
    %3988 = vmatprep.subr.mxu0 %v3705
    %3989 = vmatpush1.msra.mxu0 %v3704
    %3990 = vmatprep.subr.mxu0 %v3697
    %3991 = vmatpush1.msra.mxu0 %v3696
    %3992 = vmatprep.subr.mxu0 %v3689
    %3993 = vmatpush1.msra.mxu0 %v3688
    %3994 = vmatprep.subr.mxu0 0.0
    %3995 = vmatpush2.msra.mxu0 0.0
    %3996 = vmatprep.subr.mxu0 0.0
    %3997 = vmatpush2.msra.mxu0 0.0
    %3998 = vmatprep.subr.mxu0 0.0
    %3999 = vmatpush2.msra.mxu0 0.0
    %4000 = vmatprep.subr.mxu0 0.0
    %4001 = vmatpush2.msra.mxu0 0.0
    %4002 = vmatprep.subr.mxu0 0.0
    %4003 = vmatpush2.msra.mxu0 0.0
    %4004 = vmatprep.subr.mxu0 0.0
    %4005 = vmatpush2.msra.mxu0 0.0
    %4006 = vmatprep.subr.mxu0 0.0
    %4007 = vmatpush2.msra.mxu0 0.0
    %4008 = vmatprep.subr.mxu0 0.0
    %4009 = vmatpush2.msra.mxu0 0.0
    %4010 = vmatprep.subr.mxu0 0.0
    %4011 = vmatpush2.msra.mxu0 0.0
    %4012 = vmatprep.subr.mxu0 0.0
    %4013 = vmatpush2.msra.mxu0 0.0
    %4014 = vmatprep.subr.mxu0 0.0
    %4015 = vmatpush2.msra.mxu0 0.0
    %4016 = vmatprep.subr.mxu0 0.0
    %4017 = vmatpush2.msra.mxu0 0.0
    %4018 = vmatprep.subr.mxu0 0.0
    %4019 = vmatpush2.msra.mxu0 0.0
    %4020 = vmatprep.subr.mxu0 0.0
    %4021 = vmatpush2.msra.mxu0 0.0
    %4022 = vmatprep.subr.mxu0 0.0
    %4023 = vmatpush2.msra.mxu0 0.0
    %4024 = vmatprep.subr.mxu0 0.0
    %4025 = vmatpush2.msra.mxu0 0.0
    %4026 = vmatprep.mubr.f32.mxu0 0.0
    %4027 = vmatmul.mubr.f32.gmra.mxu0 %v3747
    %v4028 = vpop.f32.mrf.mxu0
    %v4029 = vadd.f32 0.0, %v4028
    %v4030 = vpop.f32.mrf.mxu0
    %v4031 = vadd.f32 0.0, %v4030
    %4032 = vdwg.mxu0
    %v4033 = vadd.f32 %v3673, %v3816
    %v4034 = vadd.f32 %v3674, %v3818
    %v4035 = vadd.f32 %v3675, %v3887
    %v4036 = vadd.f32 %v3676, %v3889
    %v4037 = vadd.f32 %v3677, %v3958
    %v4038 = vadd.f32 %v3678, %v3960
    %v4039 = vadd.f32 %v3679, %v4029
    %v4040 = vadd.f32 %v3680, %v4031
    %v4041 = vld [vmem:[%s10] sm:$0xff]
    %v4043 = vlaneseq
    %v4044 = vshrl.u32 %v4043, 7
    %v4045 = vsub.s32 0, %v4044
    %v4046 = vrot.slane %v4041, %v4045
    %v4047 = vlaneseq
    %v4048 = vshrl.u32 %v4047, 7
    %v4049 = vsub.s32 1, %v4048
    %v4050 = vrot.slane %v4041, %v4049
    %v4051 = vlaneseq
    %v4052 = vshrl.u32 %v4051, 7
    %v4053 = vsub.s32 2, %v4052
    %v4054 = vrot.slane %v4041, %v4053
    %v4055 = vlaneseq
    %v4056 = vshrl.u32 %v4055, 7
    %v4057 = vsub.s32 3, %v4056
    %v4058 = vrot.slane %v4041, %v4057
    %v4059 = vlaneseq
    %v4060 = vshrl.u32 %v4059, 7
    %v4061 = vsub.s32 4, %v4060
    %v4062 = vrot.slane %v4041, %v4061
    %v4063 = vlaneseq
    %v4064 = vshrl.u32 %v4063, 7
    %v4065 = vsub.s32 5, %v4064
    %v4066 = vrot.slane %v4041, %v4065
    %v4067 = vlaneseq
    %v4068 = vshrl.u32 %v4067, 7
    %v4069 = vsub.s32 6, %v4068
    %v4070 = vrot.slane %v4041, %v4069
    %v4071 = vlaneseq
    %v4072 = vshrl.u32 %v4071, 7
    %v4073 = vsub.s32 7, %v4072
    %v4074 = vrot.slane %v4041, %v4073
    %v4083 = vadd.f32 %v4033, %v4046
    %v4084 = vadd.f32 %v4034, %v4050
    %v4085 = vadd.f32 %v4035, %v4054
    %v4086 = vadd.f32 %v4036, %v4058
    %v4087 = vadd.f32 %v4037, %v4062
    %v4088 = vadd.f32 %v4038, %v4066
    %v4089 = vadd.f32 %v4039, %v4070
    %v4090 = vadd.f32 %v4040, %v4074
    %v4091 = vmax.f32 %v4083, 0.0
    %v4092 = vmax.f32 %v4084, 0.0
    %v4093 = vmax.f32 %v4085, 0.0
    %v4094 = vmax.f32 %v4086, 0.0
    %v4095 = vmax.f32 %v4087, 0.0
    %v4096 = vmax.f32 %v4088, 0.0
    %v4097 = vmax.f32 %v4089, 0.0
    %v4098 = vmax.f32 %v4090, 0.0
    %v4099 = vld [vmem:[%s11] sm:$0xff]
    %v4100 = vld [vmem:[%s11 + $0x8] sm:$0xff]
    %v4101 = vld [vmem:[%s11 + $0x10] sm:$0xff]
    %v4102 = vld [vmem:[%s11 + $0x18] sm:$0xff]
    %v4103 = vld [vmem:[%s11 + $0x20] sm:$0xff]
    %v4104 = vld [vmem:[%s11 + $0x28] sm:$0xff]
    %v4105 = vld [vmem:[%s11 + $0x30] sm:$0xff]
    %v4106 = vld [vmem:[%s11 + $0x38] sm:$0xff]
    %v4107 = vld [vmem:[%s11 + $0x40] sm:$0xff]
    %v4108 = vld [vmem:[%s11 + $0x48] sm:$0xff]
    %v4109 = vld [vmem:[%s11 + $0x50] sm:$0xff]
    %v4110 = vld [vmem:[%s11 + $0x58] sm:$0xff]
    %v4111 = vld [vmem:[%s11 + $0x60] sm:$0xff]
    %v4112 = vld [vmem:[%s11 + $0x68] sm:$0xff]
    %v4113 = vld [vmem:[%s11 + $0x70] sm:$0xff]
    %v4114 = vld [vmem:[%s11 + $0x78] sm:$0xff]
    %v4115 = vld [vmem:[%s11 + $0x80] sm:$0xff]
    %v4116 = vld [vmem:[%s11 + $0x88] sm:$0xff]
    %v4117 = vld [vmem:[%s11 + $0x90] sm:$0xff]
    %v4118 = vld [vmem:[%s11 + $0x98] sm:$0xff]
    %v4119 = vld [vmem:[%s11 + $0xa0] sm:$0xff]
    %v4120 = vld [vmem:[%s11 + $0xa8] sm:$0xff]
    %v4121 = vld [vmem:[%s11 + $0xb0] sm:$0xff]
    %v4122 = vld [vmem:[%s11 + $0xb8] sm:$0xff]
    %v4123 = vld [vmem:[%s11 + $0xc0] sm:$0xff]
    %v4124 = vld [vmem:[%s11 + $0xc8] sm:$0xff]
    %v4125 = vld [vmem:[%s11 + $0xd0] sm:$0xff]
    %v4126 = vld [vmem:[%s11 + $0xd8] sm:$0xff]
    %v4127 = vld [vmem:[%s11 + $0xe0] sm:$0xff]
    %v4128 = vld [vmem:[%s11 + $0xe8] sm:$0xff]
    %v4129 = vld [vmem:[%s11 + $0xf0] sm:$0xff]
    %v4130 = vld [vmem:[%s11 + $0xf8] sm:$0xff]
    %v4131 = vld [vmem:[%s11 + $0x100] sm:$0xff]
    %v4132 = vld [vmem:[%s11 + $0x108] sm:$0xff]
    %v4133 = vld [vmem:[%s11 + $0x110] sm:$0xff]
    %v4134 = vld [vmem:[%s11 + $0x118] sm:$0xff]
    %v4135 = vld [vmem:[%s11 + $0x120] sm:$0xff]
    %v4136 = vld [vmem:[%s11 + $0x128] sm:$0xff]
    %v4137 = vld [vmem:[%s11 + $0x130] sm:$0xff]
    %v4138 = vld [vmem:[%s11 + $0x138] sm:$0xff]
    %v4139 = vld [vmem:[%s11 + $0x140] sm:$0xff]
    %v4140 = vld [vmem:[%s11 + $0x148] sm:$0xff]
    %v4141 = vld [vmem:[%s11 + $0x150] sm:$0xff]
    %v4142 = vld [vmem:[%s11 + $0x158] sm:$0xff]
    %v4143 = vld [vmem:[%s11 + $0x160] sm:$0xff]
    %v4144 = vld [vmem:[%s11 + $0x168] sm:$0xff]
    %v4145 = vld [vmem:[%s11 + $0x170] sm:$0xff]
    %v4146 = vld [vmem:[%s11 + $0x178] sm:$0xff]
    %v4147 = vld [vmem:[%s11 + $0x180] sm:$0xff]
    %v4148 = vld [vmem:[%s11 + $0x188] sm:$0xff]
    %v4149 = vld [vmem:[%s11 + $0x190] sm:$0xff]
    %v4150 = vld [vmem:[%s11 + $0x198] sm:$0xff]
    %v4151 = vld [vmem:[%s11 + $0x1a0] sm:$0xff]
    %v4152 = vld [vmem:[%s11 + $0x1a8] sm:$0xff]
    %v4153 = vld [vmem:[%s11 + $0x1b0] sm:$0xff]
    %v4154 = vld [vmem:[%s11 + $0x1b8] sm:$0xff]
    %v4155 = vld [vmem:[%s11 + $0x1c0] sm:$0xff]
    %v4156 = vld [vmem:[%s11 + $0x1c8] sm:$0xff]
    %v4157 = vld [vmem:[%s11 + $0x1d0] sm:$0xff]
    %v4158 = vld [vmem:[%s11 + $0x1d8] sm:$0xff]
    %v4159 = vld [vmem:[%s11 + $0x1e0] sm:$0xff]
    %v4160 = vld [vmem:[%s11 + $0x1e8] sm:$0xff]
    %v4161 = vld [vmem:[%s11 + $0x1f0] sm:$0xff]
    %v4162 = vld [vmem:[%s11 + $0x1f8] sm:$0xff]
    %v4163 = vld [vmem:[%s11 + $0x200] sm:$0xff]
    %v4164 = vld [vmem:[%s11 + $0x208] sm:$0xff]
    %v4165 = vld [vmem:[%s11 + $0x210] sm:$0xff]
    %v4166 = vld [vmem:[%s11 + $0x218] sm:$0xff]
    %v4167 = vld [vmem:[%s11 + $0x220] sm:$0xff]
    %v4168 = vld [vmem:[%s11 + $0x228] sm:$0xff]
    %v4169 = vld [vmem:[%s11 + $0x230] sm:$0xff]
    %v4170 = vld [vmem:[%s11 + $0x238] sm:$0xff]
    %v4171 = vld [vmem:[%s11 + $0x240] sm:$0xff]
    %v4172 = vld [vmem:[%s11 + $0x248] sm:$0xff]
    %v4173 = vld [vmem:[%s11 + $0x250] sm:$0xff]
    %v4174 = vld [vmem:[%s11 + $0x258] sm:$0xff]
    %v4175 = vld [vmem:[%s11 + $0x260] sm:$0xff]
    %v4176 = vld [vmem:[%s11 + $0x268] sm:$0xff]
    %v4177 = vld [vmem:[%s11 + $0x270] sm:$0xff]
    %v4178 = vld [vmem:[%s11 + $0x278] sm:$0xff]
    %v4179 = vld [vmem:[%s11 + $0x280] sm:$0xff]
    %v4180 = vld [vmem:[%s11 + $0x288] sm:$0xff]
    %v4181 = vld [vmem:[%s11 + $0x290] sm:$0xff]
    %v4182 = vld [vmem:[%s11 + $0x298] sm:$0xff]
    %v4183 = vld [vmem:[%s11 + $0x2a0] sm:$0xff]
    %v4184 = vld [vmem:[%s11 + $0x2a8] sm:$0xff]
    %v4185 = vld [vmem:[%s11 + $0x2b0] sm:$0xff]
    %v4186 = vld [vmem:[%s11 + $0x2b8] sm:$0xff]
    %v4187 = vld [vmem:[%s11 + $0x2c0] sm:$0xff]
    %v4188 = vld [vmem:[%s11 + $0x2c8] sm:$0xff]
    %v4189 = vld [vmem:[%s11 + $0x2d0] sm:$0xff]
    %v4190 = vld [vmem:[%s11 + $0x2d8] sm:$0xff]
    %v4191 = vld [vmem:[%s11 + $0x2e0] sm:$0xff]
    %v4192 = vld [vmem:[%s11 + $0x2e8] sm:$0xff]
    %v4193 = vld [vmem:[%s11 + $0x2f0] sm:$0xff]
    %v4194 = vld [vmem:[%s11 + $0x2f8] sm:$0xff]
    %v4195 = vld [vmem:[%s11 + $0x300] sm:$0xff]
    %v4196 = vld [vmem:[%s11 + $0x308] sm:$0xff]
    %v4197 = vld [vmem:[%s11 + $0x310] sm:$0xff]
    %v4198 = vld [vmem:[%s11 + $0x318] sm:$0xff]
    %v4199 = vld [vmem:[%s11 + $0x320] sm:$0xff]
    %v4200 = vld [vmem:[%s11 + $0x328] sm:$0xff]
    %v4201 = vld [vmem:[%s11 + $0x330] sm:$0xff]
    %v4202 = vld [vmem:[%s11 + $0x338] sm:$0xff]
    %v4203 = vld [vmem:[%s11 + $0x340] sm:$0xff]
    %v4204 = vld [vmem:[%s11 + $0x348] sm:$0xff]
    %v4205 = vld [vmem:[%s11 + $0x350] sm:$0xff]
    %v4206 = vld [vmem:[%s11 + $0x358] sm:$0xff]
    %v4207 = vld [vmem:[%s11 + $0x360] sm:$0xff]
    %v4208 = vld [vmem:[%s11 + $0x368] sm:$0xff]
    %v4209 = vld [vmem:[%s11 + $0x370] sm:$0xff]
    %v4210 = vld [vmem:[%s11 + $0x378] sm:$0xff]
    %v4211 = vld [vmem:[%s11 + $0x380] sm:$0xff]
    %v4212 = vld [vmem:[%s11 + $0x388] sm:$0xff]
    %v4213 = vld [vmem:[%s11 + $0x390] sm:$0xff]
    %v4214 = vld [vmem:[%s11 + $0x398] sm:$0xff]
    %v4215 = vld [vmem:[%s11 + $0x3a0] sm:$0xff]
    %v4216 = vld [vmem:[%s11 + $0x3a8] sm:$0xff]
    %v4217 = vld [vmem:[%s11 + $0x3b0] sm:$0xff]
    %v4218 = vld [vmem:[%s11 + $0x3b8] sm:$0xff]
    %v4219 = vld [vmem:[%s11 + $0x3c0] sm:$0xff]
    %v4220 = vld [vmem:[%s11 + $0x3c8] sm:$0xff]
    %v4221 = vld [vmem:[%s11 + $0x3d0] sm:$0xff]
    %v4222 = vld [vmem:[%s11 + $0x3d8] sm:$0xff]
    %v4223 = vld [vmem:[%s11 + $0x3e0] sm:$0xff]
    %v4224 = vld [vmem:[%s11 + $0x3e8] sm:$0xff]
    %v4225 = vld [vmem:[%s11 + $0x3f0] sm:$0xff]
    %v4226 = vld [vmem:[%s11 + $0x3f8] sm:$0xff]
    %v4227 = vld [vmem:[%s12] sm:$0x1]
    %v4229 = vlaneseq
    %v4230 = vshrl.u32 %v4229, 7
    %v4231 = vsub.s32 0, %v4230
    %v4232 = vrot.slane %v4227, %v4231
    %4234 = vmatprep.subr.mxu0 0.0
    %4235 = vmatpush1.msra.mxu0 %v4114
    %4236 = vmatprep.subr.mxu0 0.0
    %4237 = vmatpush1.msra.mxu0 %v4113
    %4238 = vmatprep.subr.mxu0 0.0
    %4239 = vmatpush1.msra.mxu0 %v4112
    %4240 = vmatprep.subr.mxu0 0.0
    %4241 = vmatpush1.msra.mxu0 %v4111
    %4242 = vmatprep.subr.mxu0 0.0
    %4243 = vmatpush1.msra.mxu0 %v4110
    %4244 = vmatprep.subr.mxu0 0.0
    %4245 = vmatpush1.msra.mxu0 %v4109
    %4246 = vmatprep.subr.mxu0 0.0
    %4247 = vmatpush1.msra.mxu0 %v4108
    %4248 = vmatprep.subr.mxu0 0.0
    %4249 = vmatpush1.msra.mxu0 %v4107
    %4250 = vmatprep.subr.mxu0 0.0
    %4251 = vmatpush1.msra.mxu0 %v4106
    %4252 = vmatprep.subr.mxu0 0.0
    %4253 = vmatpush1.msra.mxu0 %v4105
    %4254 = vmatprep.subr.mxu0 0.0
    %4255 = vmatpush1.msra.mxu0 %v4104
    %4256 = vmatprep.subr.mxu0 0.0
    %4257 = vmatpush1.msra.mxu0 %v4103
    %4258 = vmatprep.subr.mxu0 0.0
    %4259 = vmatpush1.msra.mxu0 %v4102
    %4260 = vmatprep.subr.mxu0 0.0
    %4261 = vmatpush1.msra.mxu0 %v4101
    %4262 = vmatprep.subr.mxu0 0.0
    %4263 = vmatpush1.msra.mxu0 %v4100
    %4264 = vmatprep.subr.mxu0 0.0
    %4265 = vmatpush1.msra.mxu0 %v4099
    %4266 = vmatprep.subr.mxu0 0.0
    %4267 = vmatpush2.msra.mxu0 %v4130
    %4268 = vmatprep.subr.mxu0 0.0
    %4269 = vmatpush2.msra.mxu0 %v4129
    %4270 = vmatprep.subr.mxu0 0.0
    %4271 = vmatpush2.msra.mxu0 %v4128
    %4272 = vmatprep.subr.mxu0 0.0
    %4273 = vmatpush2.msra.mxu0 %v4127
    %4274 = vmatprep.subr.mxu0 0.0
    %4275 = vmatpush2.msra.mxu0 %v4126
    %4276 = vmatprep.subr.mxu0 0.0
    %4277 = vmatpush2.msra.mxu0 %v4125
    %4278 = vmatprep.subr.mxu0 0.0
    %4279 = vmatpush2.msra.mxu0 %v4124
    %4280 = vmatprep.subr.mxu0 0.0
    %4281 = vmatpush2.msra.mxu0 %v4123
    %4282 = vmatprep.subr.mxu0 0.0
    %4283 = vmatpush2.msra.mxu0 %v4122
    %4284 = vmatprep.subr.mxu0 0.0
    %4285 = vmatpush2.msra.mxu0 %v4121
    %4286 = vmatprep.subr.mxu0 0.0
    %4287 = vmatpush2.msra.mxu0 %v4120
    %4288 = vmatprep.subr.mxu0 0.0
    %4289 = vmatpush2.msra.mxu0 %v4119
    %4290 = vmatprep.subr.mxu0 0.0
    %4291 = vmatpush2.msra.mxu0 %v4118
    %4292 = vmatprep.subr.mxu0 0.0
    %4293 = vmatpush2.msra.mxu0 %v4117
    %4294 = vmatprep.subr.mxu0 0.0
    %4295 = vmatpush2.msra.mxu0 %v4116
    %4296 = vmatprep.subr.mxu0 0.0
    %4297 = vmatpush2.msra.mxu0 %v4115
    %4298 = vmatprep.mubr.f32.mxu0 %v4092
    %4299 = vmatmul.mubr.f32.gmra.mxu0 %v4091
    %v4300 = vpop.f32.mrf.mxu0
    %v4301 = vadd.f32 %v4232, %v4300
    %v4302 = vpop.f32.mrf.mxu0
    %4303 = vdwg.mxu0
    %4304 = vmatprep.subr.mxu0 0.0
    %4305 = vmatpush1.msra.mxu0 %v4146
    %4306 = vmatprep.subr.mxu0 0.0
    %4307 = vmatpush1.msra.mxu0 %v4145
    %4308 = vmatprep.subr.mxu0 0.0
    %4309 = vmatpush1.msra.mxu0 %v4144
    %4310 = vmatprep.subr.mxu0 0.0
    %4311 = vmatpush1.msra.mxu0 %v4143
    %4312 = vmatprep.subr.mxu0 0.0
    %4313 = vmatpush1.msra.mxu0 %v4142
    %4314 = vmatprep.subr.mxu0 0.0
    %4315 = vmatpush1.msra.mxu0 %v4141
    %4316 = vmatprep.subr.mxu0 0.0
    %4317 = vmatpush1.msra.mxu0 %v4140
    %4318 = vmatprep.subr.mxu0 0.0
    %4319 = vmatpush1.msra.mxu0 %v4139
    %4320 = vmatprep.subr.mxu0 0.0
    %4321 = vmatpush1.msra.mxu0 %v4138
    %4322 = vmatprep.subr.mxu0 0.0
    %4323 = vmatpush1.msra.mxu0 %v4137
    %4324 = vmatprep.subr.mxu0 0.0
    %4325 = vmatpush1.msra.mxu0 %v4136
    %4326 = vmatprep.subr.mxu0 0.0
    %4327 = vmatpush1.msra.mxu0 %v4135
    %4328 = vmatprep.subr.mxu0 0.0
    %4329 = vmatpush1.msra.mxu0 %v4134
    %4330 = vmatprep.subr.mxu0 0.0
    %4331 = vmatpush1.msra.mxu0 %v4133
    %4332 = vmatprep.subr.mxu0 0.0
    %4333 = vmatpush1.msra.mxu0 %v4132
    %4334 = vmatprep.subr.mxu0 0.0
    %4335 = vmatpush1.msra.mxu0 %v4131
    %4336 = vmatprep.subr.mxu0 0.0
    %4337 = vmatpush2.msra.mxu0 %v4162
    %4338 = vmatprep.subr.mxu0 0.0
    %4339 = vmatpush2.msra.mxu0 %v4161
    %4340 = vmatprep.subr.mxu0 0.0
    %4341 = vmatpush2.msra.mxu0 %v4160
    %4342 = vmatprep.subr.mxu0 0.0
    %4343 = vmatpush2.msra.mxu0 %v4159
    %4344 = vmatprep.subr.mxu0 0.0
    %4345 = vmatpush2.msra.mxu0 %v4158
    %4346 = vmatprep.subr.mxu0 0.0
    %4347 = vmatpush2.msra.mxu0 %v4157
    %4348 = vmatprep.subr.mxu0 0.0
    %4349 = vmatpush2.msra.mxu0 %v4156
    %4350 = vmatprep.subr.mxu0 0.0
    %4351 = vmatpush2.msra.mxu0 %v4155
    %4352 = vmatprep.subr.mxu0 0.0
    %4353 = vmatpush2.msra.mxu0 %v4154
    %4354 = vmatprep.subr.mxu0 0.0
    %4355 = vmatpush2.msra.mxu0 %v4153
    %4356 = vmatprep.subr.mxu0 0.0
    %4357 = vmatpush2.msra.mxu0 %v4152
    %4358 = vmatprep.subr.mxu0 0.0
    %4359 = vmatpush2.msra.mxu0 %v4151
    %4360 = vmatprep.subr.mxu0 0.0
    %4361 = vmatpush2.msra.mxu0 %v4150
    %4362 = vmatprep.subr.mxu0 0.0
    %4363 = vmatpush2.msra.mxu0 %v4149
    %4364 = vmatprep.subr.mxu0 0.0
    %4365 = vmatpush2.msra.mxu0 %v4148
    %4366 = vmatprep.subr.mxu0 0.0
    %4367 = vmatpush2.msra.mxu0 %v4147
    %4368 = vmatprep.mubr.f32.mxu0 %v4094
    %4369 = vmatmul.mubr.f32.gmra.mxu0 %v4093
    %v4370 = vpop.f32.mrf.mxu0
    %v4371 = vadd.f32 %v4301, %v4370
    %v4372 = vpop.f32.mrf.mxu0
    %4373 = vdwg.mxu0
    %4374 = vmatprep.subr.mxu0 0.0
    %4375 = vmatpush1.msra.mxu0 %v4178
    %4376 = vmatprep.subr.mxu0 0.0
    %4377 = vmatpush1.msra.mxu0 %v4177
    %4378 = vmatprep.subr.mxu0 0.0
    %4379 = vmatpush1.msra.mxu0 %v4176
    %4380 = vmatprep.subr.mxu0 0.0
    %4381 = vmatpush1.msra.mxu0 %v4175
    %4382 = vmatprep.subr.mxu0 0.0
    %4383 = vmatpush1.msra.mxu0 %v4174
    %4384 = vmatprep.subr.mxu0 0.0
    %4385 = vmatpush1.msra.mxu0 %v4173
    %4386 = vmatprep.subr.mxu0 0.0
    %4387 = vmatpush1.msra.mxu0 %v4172
    %4388 = vmatprep.subr.mxu0 0.0
    %4389 = vmatpush1.msra.mxu0 %v4171
    %4390 = vmatprep.subr.mxu0 0.0
    %4391 = vmatpush1.msra.mxu0 %v4170
    %4392 = vmatprep.subr.mxu0 0.0
    %4393 = vmatpush1.msra.mxu0 %v4169
    %4394 = vmatprep.subr.mxu0 0.0
    %4395 = vmatpush1.msra.mxu0 %v4168
    %4396 = vmatprep.subr.mxu0 0.0
    %4397 = vmatpush1.msra.mxu0 %v4167
    %4398 = vmatprep.subr.mxu0 0.0
    %4399 = vmatpush1.msra.mxu0 %v4166
    %4400 = vmatprep.subr.mxu0 0.0
    %4401 = vmatpush1.msra.mxu0 %v4165
    %4402 = vmatprep.subr.mxu0 0.0
    %4403 = vmatpush1.msra.mxu0 %v4164
    %4404 = vmatprep.subr.mxu0 0.0
    %4405 = vmatpush1.msra.mxu0 %v4163
    %4406 = vmatprep.subr.mxu0 0.0
    %4407 = vmatpush2.msra.mxu0 %v4194
    %4408 = vmatprep.subr.mxu0 0.0
    %4409 = vmatpush2.msra.mxu0 %v4193
    %4410 = vmatprep.subr.mxu0 0.0
    %4411 = vmatpush2.msra.mxu0 %v4192
    %4412 = vmatprep.subr.mxu0 0.0
    %4413 = vmatpush2.msra.mxu0 %v4191
    %4414 = vmatprep.subr.mxu0 0.0
    %4415 = vmatpush2.msra.mxu0 %v4190
    %4416 = vmatprep.subr.mxu0 0.0
    %4417 = vmatpush2.msra.mxu0 %v4189
    %4418 = vmatprep.subr.mxu0 0.0
    %4419 = vmatpush2.msra.mxu0 %v4188
    %4420 = vmatprep.subr.mxu0 0.0
    %4421 = vmatpush2.msra.mxu0 %v4187
    %4422 = vmatprep.subr.mxu0 0.0
    %4423 = vmatpush2.msra.mxu0 %v4186
    %4424 = vmatprep.subr.mxu0 0.0
    %4425 = vmatpush2.msra.mxu0 %v4185
    %4426 = vmatprep.subr.mxu0 0.0
    %4427 = vmatpush2.msra.mxu0 %v4184
    %4428 = vmatprep.subr.mxu0 0.0
    %4429 = vmatpush2.msra.mxu0 %v4183
    %4430 = vmatprep.subr.mxu0 0.0
    %4431 = vmatpush2.msra.mxu0 %v4182
    %4432 = vmatprep.subr.mxu0 0.0
    %4433 = vmatpush2.msra.mxu0 %v4181
    %4434 = vmatprep.subr.mxu0 0.0
    %4435 = vmatpush2.msra.mxu0 %v4180
    %4436 = vmatprep.subr.mxu0 0.0
    %4437 = vmatpush2.msra.mxu0 %v4179
    %4438 = vmatprep.mubr.f32.mxu0 %v4096
    %4439 = vmatmul.mubr.f32.gmra.mxu0 %v4095
    %v4440 = vpop.f32.mrf.mxu0
    %v4441 = vadd.f32 %v4371, %v4440
    %v4442 = vpop.f32.mrf.mxu0
    %4443 = vdwg.mxu0
    %4444 = vmatprep.subr.mxu0 0.0
    %4445 = vmatpush1.msra.mxu0 %v4210
    %4446 = vmatprep.subr.mxu0 0.0
    %4447 = vmatpush1.msra.mxu0 %v4209
    %4448 = vmatprep.subr.mxu0 0.0
    %4449 = vmatpush1.msra.mxu0 %v4208
    %4450 = vmatprep.subr.mxu0 0.0
    %4451 = vmatpush1.msra.mxu0 %v4207
    %4452 = vmatprep.subr.mxu0 0.0
    %4453 = vmatpush1.msra.mxu0 %v4206
    %4454 = vmatprep.subr.mxu0 0.0
    %4455 = vmatpush1.msra.mxu0 %v4205
    %4456 = vmatprep.subr.mxu0 0.0
    %4457 = vmatpush1.msra.mxu0 %v4204
    %4458 = vmatprep.subr.mxu0 0.0
    %4459 = vmatpush1.msra.mxu0 %v4203
    %4460 = vmatprep.subr.mxu0 0.0
    %4461 = vmatpush1.msra.mxu0 %v4202
    %4462 = vmatprep.subr.mxu0 0.0
    %4463 = vmatpush1.msra.mxu0 %v4201
    %4464 = vmatprep.subr.mxu0 0.0
    %4465 = vmatpush1.msra.mxu0 %v4200
    %4466 = vmatprep.subr.mxu0 0.0
    %4467 = vmatpush1.msra.mxu0 %v4199
    %4468 = vmatprep.subr.mxu0 0.0
    %4469 = vmatpush1.msra.mxu0 %v4198
    %4470 = vmatprep.subr.mxu0 0.0
    %4471 = vmatpush1.msra.mxu0 %v4197
    %4472 = vmatprep.subr.mxu0 0.0
    %4473 = vmatpush1.msra.mxu0 %v4196
    %4474 = vmatprep.subr.mxu0 0.0
    %4475 = vmatpush1.msra.mxu0 %v4195
    %4476 = vmatprep.subr.mxu0 0.0
    %4477 = vmatpush2.msra.mxu0 %v4226
    %4478 = vmatprep.subr.mxu0 0.0
    %4479 = vmatpush2.msra.mxu0 %v4225
    %4480 = vmatprep.subr.mxu0 0.0
    %4481 = vmatpush2.msra.mxu0 %v4224
    %4482 = vmatprep.subr.mxu0 0.0
    %4483 = vmatpush2.msra.mxu0 %v4223
    %4484 = vmatprep.subr.mxu0 0.0
    %4485 = vmatpush2.msra.mxu0 %v4222
    %4486 = vmatprep.subr.mxu0 0.0
    %4487 = vmatpush2.msra.mxu0 %v4221
    %4488 = vmatprep.subr.mxu0 0.0
    %4489 = vmatpush2.msra.mxu0 %v4220
    %4490 = vmatprep.subr.mxu0 0.0
    %4491 = vmatpush2.msra.mxu0 %v4219
    %4492 = vmatprep.subr.mxu0 0.0
    %4493 = vmatpush2.msra.mxu0 %v4218
    %4494 = vmatprep.subr.mxu0 0.0
    %4495 = vmatpush2.msra.mxu0 %v4217
    %4496 = vmatprep.subr.mxu0 0.0
    %4497 = vmatpush2.msra.mxu0 %v4216
    %4498 = vmatprep.subr.mxu0 0.0
    %4499 = vmatpush2.msra.mxu0 %v4215
    %4500 = vmatprep.subr.mxu0 0.0
    %4501 = vmatpush2.msra.mxu0 %v4214
    %4502 = vmatprep.subr.mxu0 0.0
    %4503 = vmatpush2.msra.mxu0 %v4213
    %4504 = vmatprep.subr.mxu0 0.0
    %4505 = vmatpush2.msra.mxu0 %v4212
    %4506 = vmatprep.subr.mxu0 0.0
    %4507 = vmatpush2.msra.mxu0 %v4211
    %4508 = vmatprep.mubr.f32.mxu0 %v4098
    %4509 = vmatmul.mubr.f32.gmra.mxu0 %v4097
    %v4510 = vpop.f32.mrf.mxu0
    %v4511 = vadd.f32 %v4441, %v4510
    %v4512 = vpop.f32.mrf.mxu0
    %4513 = vdwg.mxu0
    %4515 = vset.pattern.permute.xlu0 6
    %4516 = vperm.xlu0 %4515, %v4511
    %v4517 = vpop.permute.xlu0 %4516
    %v4519 = vadd.f32 %v4517, %v4511
    %vm4520 = vcmask 41984
    %v4521 = vsel %vm4520, %v4511, 0.0
    %4522 = vadd.xlane.f32.xlu0 %v4521
    %v4523 = vpop.xlane.xlu0 %4522
    %v4524 = vrcp.pop 6.0
    %v4525 = vmul.f32 %v4523, %v4524
    %v4526 = vsub.f32 %v4519, %v4525
    %4527 = vst.msk [vmem:[#allocation2] sm:$0x3] %vm4520, %v4526
    // Predicated region
    $region54: #{ddqn_forward.1} parent=1 // pred_check
      _
    $region55: #{ddqn_forward.1} parent=1 // pred_check_branch
      %4529 = sbr.rel (0) target = $region57
    $region56: #{ddqn_forward.1} parent=1 // pred_region
      %s4531 = ssub.s32 32, 32
      %4532 = vsyncadd [#allocation3], %s4531
      %s4534 = sshll.u32 [#allocation2], 4
      %s4535 = int_to_ptr.vmem [resolvable:$true] %s4534
      %4537 = dma.vmem_to_hbm [thread:$0]  %s4535, 32, %s13, [#allocation3]
    $region57: #{ddqn_forward.1} parent=1 // pred_fallthru
      _
    // Predicated region
    $region58: #{ddqn_forward.1} parent=1 // pred_check
      _
    $region59: #{ddqn_forward.1} parent=1 // pred_check_branch
      %4539 = sbr.rel (0) target = $region61
    $region60: #{ddqn_forward.1} parent=1 // pred_region
      %4540 = dma.done [#allocation3], 32
    $region61: #{ddqn_forward.1} parent=1 // pred_fallthru
      _
    %4541 = vsyncpa [#allocation3], 1

</llo_original>
